<compile_context>
chip_gen: v7x
topology: tpu7x:2x2x1
jax: 0.10.0
libtpu: 0.0.40
codegen_flags: <defaults>
</compile_context>

<pallas_src>
import jax
import jax.numpy as jnp
from jax.experimental import pallas as pl
from jax.experimental.pallas import tpu as pltpu

EPS = 1e-5
MARGIN = 128          # lane-aligned halo; must exceed the largest tap offset (Wp+1)
ONE_PASS_VAR = True   # one-pass sum/sumsq variance (clamped); False -> two-pass masked


def _make_kernel(N, H, W, Cpad, Rp):
    Hp, Wp = H + 2, W + 2
    inv_cnt = 1.0 / float(N * H * W)      # BN statistics over interior pixels only
    # flattened-position offset of conv tap (dy, dx), k = 3*dy + dx
    offsets = [(dy - 1) * Wp + (dx - 1) for dy in range(3) for dx in range(3)]
    assert max(abs(o) for o in offsets) < MARGIN

    def kernel(x_ref, mask_ref, wk1_ref, wk2_ref, p_ref, out_ref, yext_ref):
        mask = mask_ref[...]                         # (1, Rp): 1.0 at interior pixels
        p = p_ref[...]                               # (Cpad, 8) packed per-channel params
        g1, be1, alpha, g2, be2 = (p[:, i:i + 1] for i in range(5))

        def conv3x3(tap, wk_ref):
            # 9 accumulating K=Cpad matmuls; `tap(off)` returns one (Cpad, Rp)
            # bf16 shifted slice.  No im2col slab is ever materialized.
            acc = None
            for k, off in enumerate(offsets):
                contrib = jnp.dot(wk_ref[k], tap(off),
                                  preferred_element_type=jnp.float32)  # (Cpad, Rp)
                acc = contrib if acc is None else acc + contrib
            # Re-impose zero padding / lane padding (needed for BN stats and
            # as conv2's zero-padded input).
            return acc * mask

        def batchnorm(y, g, be):
            # y is already masked (zero outside the N*H*W interior pixels).
            mean = jnp.sum(y, axis=1, keepdims=True) * inv_cnt          # (Cpad, 1)
            if ONE_PASS_VAR:
                ex2 = jnp.sum(y * y, axis=1, keepdims=True) * inv_cnt
                var = jnp.maximum(ex2 - mean * mean, 0.0)
            else:
                dev = (y - mean) * mask
                var = jnp.sum(dev * dev, axis=1, keepdims=True) * inv_cnt
            scale = g * jax.lax.rsqrt(var + EPS)                        # (Cpad, 1)
            shift = be - mean * scale                                   # (Cpad, 1)
            return y * scale + shift                                    # single fused pass

        # ---- conv1 -> BN1 -> PReLU  (conv bias omitted: cancelled by BN mean)
        x_ext_b = x_ref[...].astype(jnp.bfloat16)    # cast once; slice taps in bf16
        y = conv3x3(lambda off: x_ext_b[:, MARGIN + off:MARGIN + off + Rp], wk1_ref)
        y = batchnorm(y, g1, be1)
        y = jnp.where(y >= 0.0, y, alpha * y)

        # ---- conv2 halo staged in a bf16 VMEM scratch (lane-aligned stores) --
        # BN/PReLU output is nonzero on the pad ring, so mask before staging.
        yext_ref[:, :MARGIN] = jnp.zeros((Cpad, MARGIN), jnp.bfloat16)
        yext_ref[:, MARGIN + Rp:] = jnp.zeros((Cpad, MARGIN), jnp.bfloat16)
        yext_ref[:, MARGIN:MARGIN + Rp] = (y * mask).astype(jnp.bfloat16)

        # ---- conv2 -> BN2 -> residual add ------------------------------------
        z = conv3x3(lambda off: yext_ref[:, MARGIN + off:MARGIN + off + Rp], wk2_ref)
        z = batchnorm(z, g2, be2)
        # Non-interior lanes hold don't-care values (the wrapper slices them
        # away); the store itself stays full-width / unmasked / lane-dense.
        out_ref[...] = z + x_ref[:, MARGIN:MARGIN + Rp]

    return kernel


@jax.jit
def residual_pallas(x_nchw, params):
    N, C, H, W = x_nchw.shape
    Hp, Wp = H + 2, W + 2
    R = N * Hp * Wp
    Rp = ((R + 127) // 128) * 128          # lane-dense flattened extent
    Cpad = ((C + 7) // 8) * 8              # sublane-aligned channel count
    E = Rp + 2 * MARGIN

    # NCHW -> channels on sublanes, flattened zero-padded spatial on lanes.
    x_t = jnp.transpose(x_nchw, (1, 0, 2, 3)).astype(jnp.float32)        # (C,N,H,W)
    x_t = jnp.pad(x_t, ((0, Cpad - C), (0, 0), (1, 1), (1, 1)))          # (Cpad,N,Hp,Wp)
    x_slab = jnp.pad(x_t.reshape(Cpad, R),
                     ((0, 0), (MARGIN, E - MARGIN - R)))                 # (Cpad,E)

    # Interior-pixel mask as a single row (broadcast over channels in-kernel).
    interior = jnp.zeros((N, Hp, Wp), jnp.float32).at[:, 1:H + 1, 1:W + 1].set(1.0)
    mask1 = jnp.pad(interior.reshape(1, R), ((0, 0), (0, Rp - R)))       # (1,Rp)

    def fold_w(w):
        # torch (Cout, Cin, 3, 3) -> (9, Cpad, Cpad), tap-major, bf16 for MXU.
        w = jnp.pad(w, ((0, Cpad - C), (0, Cpad - C), (0, 0), (0, 0)))
        return jnp.transpose(w, (2, 3, 0, 1)).reshape(9, Cpad, Cpad).astype(jnp.bfloat16)

    # Pack the five per-channel parameter columns into one (Cpad, 8) array.
    pcols = jnp.stack([params["g1"], params["be1"], params["alpha"],
                       params["g2"], params["be2"]], axis=1)             # (C, 5)
    pcols = jnp.pad(pcols, ((0, Cpad - C), (0, 8 - 5))).astype(jnp.float32)

    kernel = _make_kernel(N, H, W, Cpad, Rp)
    args = (x_slab, mask1, fold_w(params["w1"]), fold_w(params["w2"]), pcols)

    out_slab = pl.pallas_call(
        kernel,
        out_shape=jax.ShapeDtypeStruct((Cpad, Rp), jnp.float32),
        in_specs=[pl.BlockSpec(memory_space=pltpu.MemorySpace.VMEM)] * len(args),
        out_specs=pl.BlockSpec(memory_space=pltpu.MemorySpace.VMEM),
        scratch_shapes=[pltpu.VMEM((Cpad, E), jnp.bfloat16)],   # conv2 halo staging
        # Tiny working set at this shape; safe on every generation (v7x has
        # only 64 MiB physical VMEM).  Raise when spatially tiling on v5e/v6e.
        compiler_params=pltpu.CompilerParams(vmem_limit_bytes=32 * 1024 * 1024),
    )(*args)

    out = out_slab[:C, :R].reshape(C, N, Hp, Wp)[:, :, 1:H + 1, 1:W + 1]
    return jnp.transpose(out, (1, 0, 2, 3))


# --- pure-JAX references (correctness check only) ---------------------------
def residual_ref(x, params, conv_dtype=jnp.float32):
    """conv_dtype=bfloat16 reproduces the kernel's MXU quantization points
    (bf16 operands, f32 accumulation) for a tight check; float32 is the exact
    PyTorch-semantics reference (conv biases included)."""
    dn = ("NCHW", "OIHW", "NCHW")

    def conv(x, w, b):
        y = jax.lax.conv_general_dilated(
            x.astype(conv_dtype), w.astype(conv_dtype), (1, 1), ((1, 1), (1, 1)),
            dimension_numbers=dn, preferred_element_type=jnp.float32,
            precision=jax.lax.Precision.HIGHEST)
        return y + b.reshape(1, -1, 1, 1)

    def bn(x, g, be):
        mean = jnp.mean(x, axis=(0, 2, 3), keepdims=True)
        var = jnp.mean((x - mean) ** 2, axis=(0, 2, 3), keepdims=True)
        return ((x - mean) * jax.lax.rsqrt(var + EPS)
                * g.reshape(1, -1, 1, 1) + be.reshape(1, -1, 1, 1))

    y = conv(x, params["w1"], params["b1"])
    y = bn(y, params["g1"], params["be1"])
    a = params["alpha"].reshape(1, -1, 1, 1)
    y = jnp.where(y >= 0.0, y, a * y)
    y = conv(y, params["w2"], params["b2"])
    y = bn(y, params["g2"], params["be2"])
    return y + x


if __name__ == "__main__":
    N, C, H, W = 2, 4, 16, 16
    key = jax.random.PRNGKey(0)
    ks = jax.random.split(key, 5)
    x = jax.random.normal(ks[0], (N, C, H, W), jnp.float32)

    # Parameter shapes follow Residual.__init__(channels=C); conv biases are
    # kept in the references (the kernel drops them -- training-mode BN cancels
    # them exactly, which the f32 check below confirms).
    params = {
        "w1": jax.random.normal(ks[1], (C, C, 3, 3), jnp.float32) * 0.2,
        "b1": jax.random.normal(ks[2], (C,), jnp.float32) * 0.1,
        "g1": jnp.ones((C,), jnp.float32),            # BatchNorm2d weight init
        "be1": jnp.zeros((C,), jnp.float32),          # BatchNorm2d bias init
        "alpha": jnp.full((C,), 0.25, jnp.float32),   # PReLU per-channel init
        "w2": jax.random.normal(ks[3], (C, C, 3, 3), jnp.float32) * 0.2,
        "b2": jax.random.normal(ks[4], (C,), jnp.float32) * 0.1,
        "g2": jnp.ones((C,), jnp.float32),
        "be2": jnp.zeros((C,), jnp.float32),
    }
    # TODO(synk): BatchNorm running_mean/running_var buffer updates (a training
    # side effect, not part of the returned tensor) are not materialized.

    out = jax.block_until_ready(residual_pallas(x, params))
    assert out.shape == x.shape and out.dtype == jnp.float32

    # Check 1 (tight): against a reference using the same bf16 quantization
    # points -- isolates kernel correctness from bf16 input rounding.
    ref_q = residual_ref(x, params, conv_dtype=jnp.bfloat16)
    err_q = float(jnp.max(jnp.abs(out - ref_q)))

    # Check 2 (loose): against the exact-f32 PyTorch-semantics reference; the
    # difference is dominated by bf16 rounding (~2^-9) of the conv operands.
    ref_f = residual_ref(x, params, conv_dtype=jnp.float32)
    err_f = float(jnp.max(jnp.abs(out - ref_f)))

    if err_q < 1e-2 and err_f < 1e-1:
        print("KERNEL_OK")
    else:
        raise SystemExit(
            f"error too large: vs bf16-matched ref {err_q:.3e}, vs f32 ref {err_f:.3e}")
</pallas_src>

<mosaic_0001>
module attributes {stable_mosaic.version = 11 : i64} {
  func.func @kernel(%arg0: memref<8x1024xf32, #tpu.memory_space<vmem>>, %arg1: memref<1x768xf32, #tpu.memory_space<vmem>>, %arg2: memref<9x8x8xbf16, #tpu.memory_space<vmem>>, %arg3: memref<9x8x8xbf16, #tpu.memory_space<vmem>>, %arg4: memref<8x8xf32, #tpu.memory_space<vmem>>, %arg5: memref<8x768xf32, #tpu.memory_space<vmem>>, %arg6: memref<8x1024xbf16, #tpu.memory_space<vmem>>) attributes {dimension_semantics = [], scalar_prefetch = 0 : i64, scratch_operands = 1 : i64, tpu.core_type = #tpu.core_type<tc>} {
    %c0 = arith.constant 0 : index
    %c0_0 = arith.constant 0 : index
    %0 = vector.load %arg1[%c0, %c0_0] : memref<1x768xf32, #tpu.memory_space<vmem>>, vector<1x768xf32>
    %c0_1 = arith.constant 0 : index
    %c0_2 = arith.constant 0 : index
    %1 = vector.load %arg4[%c0_1, %c0_2] : memref<8x8xf32, #tpu.memory_space<vmem>>, vector<8x8xf32>
    %2 = vector.extract_strided_slice %1 {offsets = [0, 0], sizes = [8, 1], strides = [1, 1]} : vector<8x8xf32> to vector<8x1xf32>
    %3 = vector.extract_strided_slice %1 {offsets = [0, 1], sizes = [8, 1], strides = [1, 1]} : vector<8x8xf32> to vector<8x1xf32>
    %4 = vector.extract_strided_slice %1 {offsets = [0, 2], sizes = [8, 1], strides = [1, 1]} : vector<8x8xf32> to vector<8x1xf32>
    %5 = vector.extract_strided_slice %1 {offsets = [0, 3], sizes = [8, 1], strides = [1, 1]} : vector<8x8xf32> to vector<8x1xf32>
    %6 = vector.extract_strided_slice %1 {offsets = [0, 4], sizes = [8, 1], strides = [1, 1]} : vector<8x8xf32> to vector<8x1xf32>
    %c0_3 = arith.constant 0 : index
    %c0_4 = arith.constant 0 : index
    %7 = vector.load %arg0[%c0_3, %c0_4] : memref<8x1024xf32, #tpu.memory_space<vmem>>, vector<8x1024xf32>
    %8 = arith.truncf %7 : vector<8x1024xf32> to vector<8x1024xbf16>
    %c0_5 = arith.constant 0 : index
    %c0_6 = arith.constant 0 : index
    %c0_7 = arith.constant 0 : index
    %9 = vector.load %arg2[%c0_5, %c0_6, %c0_7] : memref<9x8x8xbf16, #tpu.memory_space<vmem>>, vector<1x8x8xbf16>
    %10 = vector.shape_cast %9 : vector<1x8x8xbf16> to vector<8x8xbf16>
    %11 = vector.extract_strided_slice %8 {offsets = [0, 109], sizes = [8, 768], strides = [1, 1]} : vector<8x1024xbf16> to vector<8x768xbf16>
    %cst = arith.constant dense<0.000000e+00> : vector<8x768xf32>
    %12 = tpu.matmul %10, %11, %cst {dimension_numbers = #tpu.dot_dimension_numbers<[1], [0], [0], [1], [0, 0, 1, 1], [], []>} : vector<8x8xbf16>, vector<8x768xbf16>, vector<8x768xf32> -> vector<8x768xf32>
    %c1 = arith.constant 1 : index
    %c0_8 = arith.constant 0 : index
    %c0_9 = arith.constant 0 : index
    %13 = vector.load %arg2[%c1, %c0_8, %c0_9] : memref<9x8x8xbf16, #tpu.memory_space<vmem>>, vector<1x8x8xbf16>
    %14 = vector.shape_cast %13 : vector<1x8x8xbf16> to vector<8x8xbf16>
    %15 = vector.extract_strided_slice %8 {offsets = [0, 110], sizes = [8, 768], strides = [1, 1]} : vector<8x1024xbf16> to vector<8x768xbf16>
    %cst_10 = arith.constant dense<0.000000e+00> : vector<8x768xf32>
    %16 = tpu.matmul %14, %15, %cst_10 {dimension_numbers = #tpu.dot_dimension_numbers<[1], [0], [0], [1], [0, 0, 1, 1], [], []>} : vector<8x8xbf16>, vector<8x768xbf16>, vector<8x768xf32> -> vector<8x768xf32>
    %17 = arith.addf %12, %16 : vector<8x768xf32>
    %c2 = arith.constant 2 : index
    %c0_11 = arith.constant 0 : index
    %c0_12 = arith.constant 0 : index
    %18 = vector.load %arg2[%c2, %c0_11, %c0_12] : memref<9x8x8xbf16, #tpu.memory_space<vmem>>, vector<1x8x8xbf16>
    %19 = vector.shape_cast %18 : vector<1x8x8xbf16> to vector<8x8xbf16>
    %20 = vector.extract_strided_slice %8 {offsets = [0, 111], sizes = [8, 768], strides = [1, 1]} : vector<8x1024xbf16> to vector<8x768xbf16>
    %cst_13 = arith.constant dense<0.000000e+00> : vector<8x768xf32>
    %21 = tpu.matmul %19, %20, %cst_13 {dimension_numbers = #tpu.dot_dimension_numbers<[1], [0], [0], [1], [0, 0, 1, 1], [], []>} : vector<8x8xbf16>, vector<8x768xbf16>, vector<8x768xf32> -> vector<8x768xf32>
    %22 = arith.addf %17, %21 : vector<8x768xf32>
    %c3 = arith.constant 3 : index
    %c0_14 = arith.constant 0 : index
    %c0_15 = arith.constant 0 : index
    %23 = vector.load %arg2[%c3, %c0_14, %c0_15] : memref<9x8x8xbf16, #tpu.memory_space<vmem>>, vector<1x8x8xbf16>
    %24 = vector.shape_cast %23 : vector<1x8x8xbf16> to vector<8x8xbf16>
    %25 = vector.extract_strided_slice %8 {offsets = [0, 127], sizes = [8, 768], strides = [1, 1]} : vector<8x1024xbf16> to vector<8x768xbf16>
    %cst_16 = arith.constant dense<0.000000e+00> : vector<8x768xf32>
    %26 = tpu.matmul %24, %25, %cst_16 {dimension_numbers = #tpu.dot_dimension_numbers<[1], [0], [0], [1], [0, 0, 1, 1], [], []>} : vector<8x8xbf16>, vector<8x768xbf16>, vector<8x768xf32> -> vector<8x768xf32>
    %27 = arith.addf %22, %26 : vector<8x768xf32>
    %c4 = arith.constant 4 : index
    %c0_17 = arith.constant 0 : index
    %c0_18 = arith.constant 0 : index
    %28 = vector.load %arg2[%c4, %c0_17, %c0_18] : memref<9x8x8xbf16, #tpu.memory_space<vmem>>, vector<1x8x8xbf16>
    %29 = vector.shape_cast %28 : vector<1x8x8xbf16> to vector<8x8xbf16>
    %30 = vector.extract_strided_slice %8 {offsets = [0, 128], sizes = [8, 768], strides = [1, 1]} : vector<8x1024xbf16> to vector<8x768xbf16>
    %cst_19 = arith.constant dense<0.000000e+00> : vector<8x768xf32>
    %31 = tpu.matmul %29, %30, %cst_19 {dimension_numbers = #tpu.dot_dimension_numbers<[1], [0], [0], [1], [0, 0, 1, 1], [], []>} : vector<8x8xbf16>, vector<8x768xbf16>, vector<8x768xf32> -> vector<8x768xf32>
    %32 = arith.addf %27, %31 : vector<8x768xf32>
    %c5 = arith.constant 5 : index
    %c0_20 = arith.constant 0 : index
    %c0_21 = arith.constant 0 : index
    %33 = vector.load %arg2[%c5, %c0_20, %c0_21] : memref<9x8x8xbf16, #tpu.memory_space<vmem>>, vector<1x8x8xbf16>
    %34 = vector.shape_cast %33 : vector<1x8x8xbf16> to vector<8x8xbf16>
    %35 = vector.extract_strided_slice %8 {offsets = [0, 129], sizes = [8, 768], strides = [1, 1]} : vector<8x1024xbf16> to vector<8x768xbf16>
    %cst_22 = arith.constant dense<0.000000e+00> : vector<8x768xf32>
    %36 = tpu.matmul %34, %35, %cst_22 {dimension_numbers = #tpu.dot_dimension_numbers<[1], [0], [0], [1], [0, 0, 1, 1], [], []>} : vector<8x8xbf16>, vector<8x768xbf16>, vector<8x768xf32> -> vector<8x768xf32>
    %37 = arith.addf %32, %36 : vector<8x768xf32>
    %c6 = arith.constant 6 : index
    %c0_23 = arith.constant 0 : index
    %c0_24 = arith.constant 0 : index
    %38 = vector.load %arg2[%c6, %c0_23, %c0_24] : memref<9x8x8xbf16, #tpu.memory_space<vmem>>, vector<1x8x8xbf16>
    %39 = vector.shape_cast %38 : vector<1x8x8xbf16> to vector<8x8xbf16>
    %40 = vector.extract_strided_slice %8 {offsets = [0, 145], sizes = [8, 768], strides = [1, 1]} : vector<8x1024xbf16> to vector<8x768xbf16>
    %cst_25 = arith.constant dense<0.000000e+00> : vector<8x768xf32>
    %41 = tpu.matmul %39, %40, %cst_25 {dimension_numbers = #tpu.dot_dimension_numbers<[1], [0], [0], [1], [0, 0, 1, 1], [], []>} : vector<8x8xbf16>, vector<8x768xbf16>, vector<8x768xf32> -> vector<8x768xf32>
    %42 = arith.addf %37, %41 : vector<8x768xf32>
    %c7 = arith.constant 7 : index
    %c0_26 = arith.constant 0 : index
    %c0_27 = arith.constant 0 : index
    %43 = vector.load %arg2[%c7, %c0_26, %c0_27] : memref<9x8x8xbf16, #tpu.memory_space<vmem>>, vector<1x8x8xbf16>
    %44 = vector.shape_cast %43 : vector<1x8x8xbf16> to vector<8x8xbf16>
    %45 = vector.extract_strided_slice %8 {offsets = [0, 146], sizes = [8, 768], strides = [1, 1]} : vector<8x1024xbf16> to vector<8x768xbf16>
    %cst_28 = arith.constant dense<0.000000e+00> : vector<8x768xf32>
    %46 = tpu.matmul %44, %45, %cst_28 {dimension_numbers = #tpu.dot_dimension_numbers<[1], [0], [0], [1], [0, 0, 1, 1], [], []>} : vector<8x8xbf16>, vector<8x768xbf16>, vector<8x768xf32> -> vector<8x768xf32>
    %47 = arith.addf %42, %46 : vector<8x768xf32>
    %c8 = arith.constant 8 : index
    %c0_29 = arith.constant 0 : index
    %c0_30 = arith.constant 0 : index
    %48 = vector.load %arg2[%c8, %c0_29, %c0_30] : memref<9x8x8xbf16, #tpu.memory_space<vmem>>, vector<1x8x8xbf16>
    %49 = vector.shape_cast %48 : vector<1x8x8xbf16> to vector<8x8xbf16>
    %50 = vector.extract_strided_slice %8 {offsets = [0, 147], sizes = [8, 768], strides = [1, 1]} : vector<8x1024xbf16> to vector<8x768xbf16>
    %cst_31 = arith.constant dense<0.000000e+00> : vector<8x768xf32>
    %51 = tpu.matmul %49, %50, %cst_31 {dimension_numbers = #tpu.dot_dimension_numbers<[1], [0], [0], [1], [0, 0, 1, 1], [], []>} : vector<8x8xbf16>, vector<8x768xbf16>, vector<8x768xf32> -> vector<8x768xf32>
    %52 = arith.addf %47, %51 : vector<8x768xf32>
    %53 = vector.broadcast %0 : vector<1x768xf32> to vector<8x768xf32>
    %54 = arith.mulf %52, %53 : vector<8x768xf32>
    %cst_32 = arith.constant dense<0.000000e+00> : vector<8xf32>
    %55 = vector.multi_reduction <add>, %54, %cst_32 [1] : vector<8x768xf32> to vector<8xf32>
    %56 = vector.shape_cast %55 : vector<8xf32> to vector<8x1xf32>
    %cst_33 = arith.constant 0.001953125 : f32
    %57 = vector.broadcast %cst_33 : f32 to vector<8x1xf32>
    %58 = arith.mulf %56, %57 : vector<8x1xf32>
    %59 = arith.mulf %54, %54 : vector<8x768xf32>
    %cst_34 = arith.constant dense<0.000000e+00> : vector<8xf32>
    %60 = vector.multi_reduction <add>, %59, %cst_34 [1] : vector<8x768xf32> to vector<8xf32>
    %61 = vector.shape_cast %60 : vector<8xf32> to vector<8x1xf32>
    %cst_35 = arith.constant 0.001953125 : f32
    %62 = vector.broadcast %cst_35 : f32 to vector<8x1xf32>
    %63 = arith.mulf %61, %62 : vector<8x1xf32>
    %64 = arith.mulf %58, %58 : vector<8x1xf32>
    %65 = arith.subf %63, %64 : vector<8x1xf32>
    %cst_36 = arith.constant 0.000000e+00 : f32
    %66 = vector.broadcast %cst_36 : f32 to vector<8x1xf32>
    %67 = arith.maximumf %65, %66 : vector<8x1xf32>
    %cst_37 = arith.constant 9.99999974E-6 : f32
    %68 = vector.broadcast %cst_37 : f32 to vector<8x1xf32>
    %69 = arith.addf %67, %68 : vector<8x1xf32>
    %70 = math.rsqrt %69 : vector<8x1xf32>
    %71 = arith.mulf %2, %70 : vector<8x1xf32>
    %72 = arith.mulf %58, %71 : vector<8x1xf32>
    %73 = arith.subf %3, %72 : vector<8x1xf32>
    %74 = vector.broadcast %71 : vector<8x1xf32> to vector<8x768xf32>
    %75 = arith.mulf %54, %74 : vector<8x768xf32>
    %76 = vector.broadcast %73 : vector<8x1xf32> to vector<8x768xf32>
    %77 = arith.addf %75, %76 : vector<8x768xf32>
    %cst_38 = arith.constant 0.000000e+00 : f32
    %78 = vector.broadcast %cst_38 : f32 to vector<8x768xf32>
    %79 = arith.cmpf oge, %77, %78 : vector<8x768xf32>
    %80 = vector.broadcast %4 : vector<8x1xf32> to vector<8x768xf32>
    %81 = arith.mulf %80, %77 : vector<8x768xf32>
    %82 = arith.select %79, %77, %81 : vector<8x768xi1>, vector<8x768xf32>
    %cst_39 = arith.constant 0.000000e+00 : bf16
    %83 = vector.broadcast %cst_39 : bf16 to vector<8x128xbf16>
    %c0_40 = arith.constant 0 : index
    %c0_41 = arith.constant 0 : index
    %84 = vector.load %arg6[%c0_40, %c0_41] : memref<8x1024xbf16, #tpu.memory_space<vmem>>, vector<8x128xbf16>
    tpu.vector_store %arg6[%c0_40, %c0_41], %83 {strides = array<i32>} : memref<8x1024xbf16, #tpu.memory_space<vmem>>, vector<8x128xbf16>,
    %cst_42 = arith.constant 0.000000e+00 : bf16
    %85 = vector.broadcast %cst_42 : bf16 to vector<8x128xbf16>
    %c0_43 = arith.constant 0 : index
    %c896 = arith.constant 896 : index
    %86 = vector.load %arg6[%c0_43, %c896] : memref<8x1024xbf16, #tpu.memory_space<vmem>>, vector<8x128xbf16>
    tpu.vector_store %arg6[%c0_43, %c896], %85 {strides = array<i32>} : memref<8x1024xbf16, #tpu.memory_space<vmem>>, vector<8x128xbf16>,
    %87 = vector.broadcast %0 : vector<1x768xf32> to vector<8x768xf32>
    %88 = arith.mulf %82, %87 : vector<8x768xf32>
    %89 = arith.truncf %88 : vector<8x768xf32> to vector<8x768xbf16>
    %c0_44 = arith.constant 0 : index
    %c128 = arith.constant 128 : index
    %90 = vector.load %arg6[%c0_44, %c128] : memref<8x1024xbf16, #tpu.memory_space<vmem>>, vector<8x768xbf16>
    tpu.vector_store %arg6[%c0_44, %c128], %89 {strides = array<i32>} : memref<8x1024xbf16, #tpu.memory_space<vmem>>, vector<8x768xbf16>,
    %c0_45 = arith.constant 0 : index
    %c0_46 = arith.constant 0 : index
    %c0_47 = arith.constant 0 : index
    %91 = vector.load %arg3[%c0_45, %c0_46, %c0_47] : memref<9x8x8xbf16, #tpu.memory_space<vmem>>, vector<1x8x8xbf16>
    %92 = vector.shape_cast %91 : vector<1x8x8xbf16> to vector<8x8xbf16>
    %c0_48 = arith.constant 0 : index
    %c109 = arith.constant 109 : index
    %93 = vector.load %arg6[%c0_48, %c109] : memref<8x1024xbf16, #tpu.memory_space<vmem>>, vector<8x768xbf16>
    %cst_49 = arith.constant dense<0.000000e+00> : vector<8x768xf32>
    %94 = tpu.matmul %92, %93, %cst_49 {dimension_numbers = #tpu.dot_dimension_numbers<[1], [0], [0], [1], [0, 0, 1, 1], [], []>} : vector<8x8xbf16>, vector<8x768xbf16>, vector<8x768xf32> -> vector<8x768xf32>
    %c1_50 = arith.constant 1 : index
    %c0_51 = arith.constant 0 : index
    %c0_52 = arith.constant 0 : index
    %95 = vector.load %arg3[%c1_50, %c0_51, %c0_52] : memref<9x8x8xbf16, #tpu.memory_space<vmem>>, vector<1x8x8xbf16>
    %96 = vector.shape_cast %95 : vector<1x8x8xbf16> to vector<8x8xbf16>
    %c0_53 = arith.constant 0 : index
    %c110 = arith.constant 110 : index
    %97 = vector.load %arg6[%c0_53, %c110] : memref<8x1024xbf16, #tpu.memory_space<vmem>>, vector<8x768xbf16>
    %cst_54 = arith.constant dense<0.000000e+00> : vector<8x768xf32>
    %98 = tpu.matmul %96, %97, %cst_54 {dimension_numbers = #tpu.dot_dimension_numbers<[1], [0], [0], [1], [0, 0, 1, 1], [], []>} : vector<8x8xbf16>, vector<8x768xbf16>, vector<8x768xf32> -> vector<8x768xf32>
    %99 = arith.addf %94, %98 : vector<8x768xf32>
    %c2_55 = arith.constant 2 : index
    %c0_56 = arith.constant 0 : index
    %c0_57 = arith.constant 0 : index
    %100 = vector.load %arg3[%c2_55, %c0_56, %c0_57] : memref<9x8x8xbf16, #tpu.memory_space<vmem>>, vector<1x8x8xbf16>
    %101 = vector.shape_cast %100 : vector<1x8x8xbf16> to vector<8x8xbf16>
    %c0_58 = arith.constant 0 : index
    %c111 = arith.constant 111 : index
    %102 = vector.load %arg6[%c0_58, %c111] : memref<8x1024xbf16, #tpu.memory_space<vmem>>, vector<8x768xbf16>
    %cst_59 = arith.constant dense<0.000000e+00> : vector<8x768xf32>
    %103 = tpu.matmul %101, %102, %cst_59 {dimension_numbers = #tpu.dot_dimension_numbers<[1], [0], [0], [1], [0, 0, 1, 1], [], []>} : vector<8x8xbf16>, vector<8x768xbf16>, vector<8x768xf32> -> vector<8x768xf32>
    %104 = arith.addf %99, %103 : vector<8x768xf32>
    %c3_60 = arith.constant 3 : index
    %c0_61 = arith.constant 0 : index
    %c0_62 = arith.constant 0 : index
    %105 = vector.load %arg3[%c3_60, %c0_61, %c0_62] : memref<9x8x8xbf16, #tpu.memory_space<vmem>>, vector<1x8x8xbf16>
    %106 = vector.shape_cast %105 : vector<1x8x8xbf16> to vector<8x8xbf16>
    %c0_63 = arith.constant 0 : index
    %c127 = arith.constant 127 : index
    %107 = vector.load %arg6[%c0_63, %c127] : memref<8x1024xbf16, #tpu.memory_space<vmem>>, vector<8x768xbf16>
    %cst_64 = arith.constant dense<0.000000e+00> : vector<8x768xf32>
    %108 = tpu.matmul %106, %107, %cst_64 {dimension_numbers = #tpu.dot_dimension_numbers<[1], [0], [0], [1], [0, 0, 1, 1], [], []>} : vector<8x8xbf16>, vector<8x768xbf16>, vector<8x768xf32> -> vector<8x768xf32>
    %109 = arith.addf %104, %108 : vector<8x768xf32>
    %c4_65 = arith.constant 4 : index
    %c0_66 = arith.constant 0 : index
    %c0_67 = arith.constant 0 : index
    %110 = vector.load %arg3[%c4_65, %c0_66, %c0_67] : memref<9x8x8xbf16, #tpu.memory_space<vmem>>, vector<1x8x8xbf16>
    %111 = vector.shape_cast %110 : vector<1x8x8xbf16> to vector<8x8xbf16>
    %c0_68 = arith.constant 0 : index
    %c128_69 = arith.constant 128 : index
    %112 = vector.load %arg6[%c0_68, %c128_69] : memref<8x1024xbf16, #tpu.memory_space<vmem>>, vector<8x768xbf16>
    %cst_70 = arith.constant dense<0.000000e+00> : vector<8x768xf32>
    %113 = tpu.matmul %111, %112, %cst_70 {dimension_numbers = #tpu.dot_dimension_numbers<[1], [0], [0], [1], [0, 0, 1, 1], [], []>} : vector<8x8xbf16>, vector<8x768xbf16>, vector<8x768xf32> -> vector<8x768xf32>
    %114 = arith.addf %109, %113 : vector<8x768xf32>
    %c5_71 = arith.constant 5 : index
    %c0_72 = arith.constant 0 : index
    %c0_73 = arith.constant 0 : index
    %115 = vector.load %arg3[%c5_71, %c0_72, %c0_73] : memref<9x8x8xbf16, #tpu.memory_space<vmem>>, vector<1x8x8xbf16>
    %116 = vector.shape_cast %115 : vector<1x8x8xbf16> to vector<8x8xbf16>
    %c0_74 = arith.constant 0 : index
    %c129 = arith.constant 129 : index
    %117 = vector.load %arg6[%c0_74, %c129] : memref<8x1024xbf16, #tpu.memory_space<vmem>>, vector<8x768xbf16>
    %cst_75 = arith.constant dense<0.000000e+00> : vector<8x768xf32>
    %118 = tpu.matmul %116, %117, %cst_75 {dimension_numbers = #tpu.dot_dimension_numbers<[1], [0], [0], [1], [0, 0, 1, 1], [], []>} : vector<8x8xbf16>, vector<8x768xbf16>, vector<8x768xf32> -> vector<8x768xf32>
    %119 = arith.addf %114, %118 : vector<8x768xf32>
    %c6_76 = arith.constant 6 : index
    %c0_77 = arith.constant 0 : index
    %c0_78 = arith.constant 0 : index
    %120 = vector.load %arg3[%c6_76, %c0_77, %c0_78] : memref<9x8x8xbf16, #tpu.memory_space<vmem>>, vector<1x8x8xbf16>
    %121 = vector.shape_cast %120 : vector<1x8x8xbf16> to vector<8x8xbf16>
    %c0_79 = arith.constant 0 : index
    %c145 = arith.constant 145 : index
    %122 = vector.load %arg6[%c0_79, %c145] : memref<8x1024xbf16, #tpu.memory_space<vmem>>, vector<8x768xbf16>
    %cst_80 = arith.constant dense<0.000000e+00> : vector<8x768xf32>
    %123 = tpu.matmul %121, %122, %cst_80 {dimension_numbers = #tpu.dot_dimension_numbers<[1], [0], [0], [1], [0, 0, 1, 1], [], []>} : vector<8x8xbf16>, vector<8x768xbf16>, vector<8x768xf32> -> vector<8x768xf32>
    %124 = arith.addf %119, %123 : vector<8x768xf32>
    %c7_81 = arith.constant 7 : index
    %c0_82 = arith.constant 0 : index
    %c0_83 = arith.constant 0 : index
    %125 = vector.load %arg3[%c7_81, %c0_82, %c0_83] : memref<9x8x8xbf16, #tpu.memory_space<vmem>>, vector<1x8x8xbf16>
    %126 = vector.shape_cast %125 : vector<1x8x8xbf16> to vector<8x8xbf16>
    %c0_84 = arith.constant 0 : index
    %c146 = arith.constant 146 : index
    %127 = vector.load %arg6[%c0_84, %c146] : memref<8x1024xbf16, #tpu.memory_space<vmem>>, vector<8x768xbf16>
    %cst_85 = arith.constant dense<0.000000e+00> : vector<8x768xf32>
    %128 = tpu.matmul %126, %127, %cst_85 {dimension_numbers = #tpu.dot_dimension_numbers<[1], [0], [0], [1], [0, 0, 1, 1], [], []>} : vector<8x8xbf16>, vector<8x768xbf16>, vector<8x768xf32> -> vector<8x768xf32>
    %129 = arith.addf %124, %128 : vector<8x768xf32>
    %c8_86 = arith.constant 8 : index
    %c0_87 = arith.constant 0 : index
    %c0_88 = arith.constant 0 : index
    %130 = vector.load %arg3[%c8_86, %c0_87, %c0_88] : memref<9x8x8xbf16, #tpu.memory_space<vmem>>, vector<1x8x8xbf16>
    %131 = vector.shape_cast %130 : vector<1x8x8xbf16> to vector<8x8xbf16>
    %c0_89 = arith.constant 0 : index
    %c147 = arith.constant 147 : index
    %132 = vector.load %arg6[%c0_89, %c147] : memref<8x1024xbf16, #tpu.memory_space<vmem>>, vector<8x768xbf16>
    %cst_90 = arith.constant dense<0.000000e+00> : vector<8x768xf32>
    %133 = tpu.matmul %131, %132, %cst_90 {dimension_numbers = #tpu.dot_dimension_numbers<[1], [0], [0], [1], [0, 0, 1, 1], [], []>} : vector<8x8xbf16>, vector<8x768xbf16>, vector<8x768xf32> -> vector<8x768xf32>
    %134 = arith.addf %129, %133 : vector<8x768xf32>
    %135 = vector.broadcast %0 : vector<1x768xf32> to vector<8x768xf32>
    %136 = arith.mulf %134, %135 : vector<8x768xf32>
    %cst_91 = arith.constant dense<0.000000e+00> : vector<8xf32>
    %137 = vector.multi_reduction <add>, %136, %cst_91 [1] : vector<8x768xf32> to vector<8xf32>
    %138 = vector.shape_cast %137 : vector<8xf32> to vector<8x1xf32>
    %cst_92 = arith.constant 0.001953125 : f32
    %139 = vector.broadcast %cst_92 : f32 to vector<8x1xf32>
    %140 = arith.mulf %138, %139 : vector<8x1xf32>
    %141 = arith.mulf %136, %136 : vector<8x768xf32>
    %cst_93 = arith.constant dense<0.000000e+00> : vector<8xf32>
    %142 = vector.multi_reduction <add>, %141, %cst_93 [1] : vector<8x768xf32> to vector<8xf32>
    %143 = vector.shape_cast %142 : vector<8xf32> to vector<8x1xf32>
    %cst_94 = arith.constant 0.001953125 : f32
    %144 = vector.broadcast %cst_94 : f32 to vector<8x1xf32>
    %145 = arith.mulf %143, %144 : vector<8x1xf32>
    %146 = arith.mulf %140, %140 : vector<8x1xf32>
    %147 = arith.subf %145, %146 : vector<8x1xf32>
    %cst_95 = arith.constant 0.000000e+00 : f32
    %148 = vector.broadcast %cst_95 : f32 to vector<8x1xf32>
    %149 = arith.maximumf %147, %148 : vector<8x1xf32>
    %cst_96 = arith.constant 9.99999974E-6 : f32
    %150 = vector.broadcast %cst_96 : f32 to vector<8x1xf32>
    %151 = arith.addf %149, %150 : vector<8x1xf32>
    %152 = math.rsqrt %151 : vector<8x1xf32>
    %153 = arith.mulf %5, %152 : vector<8x1xf32>
    %154 = arith.mulf %140, %153 : vector<8x1xf32>
    %155 = arith.subf %6, %154 : vector<8x1xf32>
    %156 = vector.broadcast %153 : vector<8x1xf32> to vector<8x768xf32>
    %157 = arith.mulf %136, %156 : vector<8x768xf32>
    %158 = vector.broadcast %155 : vector<8x1xf32> to vector<8x768xf32>
    %159 = arith.addf %157, %158 : vector<8x768xf32>
    %c0_97 = arith.constant 0 : index
    %c128_98 = arith.constant 128 : index
    %160 = vector.load %arg0[%c0_97, %c128_98] : memref<8x1024xf32, #tpu.memory_space<vmem>>, vector<8x768xf32>
    %161 = arith.addf %159, %160 : vector<8x768xf32>
    %c0_99 = arith.constant 0 : index
    %c0_100 = arith.constant 0 : index
    %162 = vector.load %arg5[%c0_99, %c0_100] : memref<8x768xf32, #tpu.memory_space<vmem>>, vector<8x768xf32>
    tpu.vector_store %arg5[%c0_99, %c0_100], %161 {strides = array<i32>} : memref<8x768xf32, #tpu.memory_space<vmem>>, vector<8x768xf32>,
    return
  }
}

</mosaic_0001>

<llo_original>
// kernel: residual_pallas.1
$region0: #{residual_pallas.1}
  #allocation0 [shape = 'u32[]', space=smem, size = 0x4, offset = 0x4, fixed_abs, tag = 'smem constant byte address 0x4 - core index']
  #allocation1 [shape = 'u32[144,128]{1,0:T(1,128)}', space=vmem, size = 0x12000, scoped, tag = 'internal scratch']
  #allocation2 [shape = 'bf16[8,1024]{1,0:T(8,128)(2,1)}', space=vmem, size = 0x4000, scoped, tag = 'scratch operand']
  %s0 = inlined_call_operand.vmem [shape: f32[8,1024], index: 0, kind: input, shape index: {}]
  %s1 = inlined_call_operand.vmem [shape: f32[1,768], index: 1, kind: input, shape index: {}]
  %s2 = inlined_call_operand.vmem [shape: bf16[9,8,8], index: 2, kind: input, shape index: {}]
  %s3 = inlined_call_operand.vmem [shape: bf16[9,8,8], index: 3, kind: input, shape index: {}]
  %s4 = inlined_call_operand.vmem [shape: f32[8,8], index: 4, kind: input, shape index: {}]
  %s5 = inlined_call_operand.vmem [shape: f32[8,768], index: 5, kind: output, shape index: {}]
  %s6 = sld [smem:[#allocation0]]
  $region30: #{residual_pallas.1} parent=0
    _
  %s8 = ssub.s32 1, %s6
  %s9 = scalar_select 0, %s8, %s6
  // Predicated region
  $region2: #{residual_pallas.1} parent=0 // pred_check
    _
  $region3: #{residual_pallas.1} parent=0 // pred_check_branch
    %11 = sbr.rel (0) target = $region5
  $region4: #{residual_pallas.1} parent=0 // pred_region
    _
  $region5: #{residual_pallas.1} parent=0 // pred_fallthru
    _
  // Predicated region
  $region6: #{residual_pallas.1} parent=0 // pred_check
    _
  $region7: #{residual_pallas.1} parent=0 // pred_check_branch
    %13 = sbr.rel (0) target = $region9
  $region8: #{residual_pallas.1} parent=0 // pred_region
    _
  $region9: #{residual_pallas.1} parent=0 // pred_fallthru
    _
  // Predicated region
  $region10: #{residual_pallas.1} parent=0 // pred_check
    _
  $region11: #{residual_pallas.1} parent=0 // pred_check_branch
    %15 = sbr.rel (0) target = $region13
  $region12: #{residual_pallas.1} parent=0 // pred_region
    _
  $region13: #{residual_pallas.1} parent=0 // pred_fallthru
    _
  // Predicated region
  $region14: #{residual_pallas.1} parent=0 // pred_check
    _
  $region15: #{residual_pallas.1} parent=0 // pred_check_branch
    %17 = sbr.rel (0) target = $region17
  $region16: #{residual_pallas.1} parent=0 // pred_region
    _
  $region17: #{residual_pallas.1} parent=0 // pred_fallthru
    _
  // Predicated region
  $region18: #{residual_pallas.1} parent=0 // pred_check
    _
  $region19: #{residual_pallas.1} parent=0 // pred_check_branch
    %19 = sbr.rel (0) target = $region21
  $region20: #{residual_pallas.1} parent=0 // pred_region
    _
  $region21: #{residual_pallas.1} parent=0 // pred_fallthru
    _
  %v21 = vld [vmem:[%s1] sm:$0x3f]
  %v22 = vld [vmem:[%s4] sm:$0xff]
  %v23 = vld [vmem:[%s0] sm:$0xff]
  %v24 = vld [vmem:[%s0 + $0x8] sm:$0xff]
  %v25 = vld [vmem:[%s0 + $0x10] sm:$0xff]
  %v26 = vld [vmem:[%s0 + $0x18] sm:$0xff]
  %v27 = vld [vmem:[%s0 + $0x20] sm:$0xff]
  %v28 = vld [vmem:[%s0 + $0x28] sm:$0xff]
  %v29 = vld [vmem:[%s0 + $0x30] sm:$0xff]
  %v30 = vld [vmem:[%s0 + $0x38] sm:$0xff]
  %v31 = vpack.c.bf16 %v23, %v23
  %v32 = vpack.c.bf16 %v24, %v24
  %v33 = vpack.c.bf16 %v25, %v25
  %v34 = vpack.c.bf16 %v26, %v26
  %v35 = vpack.c.bf16 %v27, %v27
  %v36 = vpack.c.bf16 %v28, %v28
  %v37 = vpack.c.bf16 %v29, %v29
  %v38 = vpack.c.bf16 %v30, %v30
  %v39 = vld [vmem:[%s2] sm:$0xf]
  %s40 = scalar_lea.vmem %s2, 4
  %v41 = vld [vmem:[%s40] sm:$0xf]
  %49 = vrot.lane.b32.xlu0 %v31, 18
  %v50 = vpop.permute.xlu0 %49
  %51 = vrot.lane.b32.xlu0 %v32, 18
  %v52 = vpop.permute.xlu0 %51
  %53 = vrot.lane.b32.xlu0 %v33, 18
  %v54 = vpop.permute.xlu0 %53
  %55 = vrot.lane.b32.xlu0 %v34, 18
  %v56 = vpop.permute.xlu0 %55
  %57 = vrot.lane.b32.xlu0 %v35, 18
  %v58 = vpop.permute.xlu0 %57
  %59 = vrot.lane.b32.xlu0 %v36, 18
  %v60 = vpop.permute.xlu0 %59
  %61 = vrot.lane.b32.xlu0 %v37, 18
  %v62 = vpop.permute.xlu0 %61
  %vm63 = vcmask 146432
  %v64 = vsel %vm63, %v50, %v52
  %v65 = vsel %vm63, %v52, %v54
  %v66 = vsel %vm63, %v54, %v56
  %v67 = vsel %vm63, %v56, %v58
  %v68 = vsel %vm63, %v58, %v60
  %v69 = vsel %vm63, %v60, %v62
  %vm70 = vcmask 64512
  %v72 = vsel %vm70, %v41, 0
  %vm74 = vcmask 1043456
  %v76 = vsel %vm74, %v64, 0
  %v79 = vsel %vm74, %v65, 0
  %v82 = vsel %vm74, %v66, 0
  %v85 = vsel %vm74, %v67, 0
  %v88 = vsel %vm74, %v68, 0
  %v91 = vsel %vm74, %v69, 0
  %93 = vmatprep.subr.bf16.mxu0 %v79
  %94 = vmatpush1.bf16.msra.mxu0 %v76
  %95 = vmatprep.subr.bf16.mxu0 0
  %96 = vmatpush1.bf16.msra.mxu0 0
  %97 = vmatprep.subr.bf16.mxu0 0
  %98 = vmatpush1.bf16.msra.mxu0 0
  %99 = vmatprep.subr.bf16.mxu0 0
  %100 = vmatpush1.bf16.msra.mxu0 0
  %101 = vmatprep.subr.bf16.mxu0 0
  %102 = vmatpush1.bf16.msra.mxu0 0
  %103 = vmatprep.subr.bf16.mxu0 0
  %104 = vmatpush1.bf16.msra.mxu0 0
  %105 = vmatprep.subr.bf16.mxu0 0
  %106 = vmatpush1.bf16.msra.mxu0 0
  %107 = vmatprep.subr.bf16.mxu0 0
  %108 = vmatpush1.bf16.msra.mxu0 0
  %109 = vmatprep.subr.bf16.mxu0 0
  %110 = vmatpush1.bf16.msra.mxu0 0
  %111 = vmatprep.subr.bf16.mxu0 0
  %112 = vmatpush1.bf16.msra.mxu0 0
  %113 = vmatprep.subr.bf16.mxu0 0
  %114 = vmatpush1.bf16.msra.mxu0 0
  %115 = vmatprep.subr.bf16.mxu0 0
  %116 = vmatpush1.bf16.msra.mxu0 0
  %117 = vmatprep.subr.bf16.mxu0 0
  %118 = vmatpush1.bf16.msra.mxu0 0
  %119 = vmatprep.subr.bf16.mxu0 0
  %120 = vmatpush1.bf16.msra.mxu0 0
  %121 = vmatprep.subr.bf16.mxu0 0
  %122 = vmatpush1.bf16.msra.mxu0 0
  %123 = vmatprep.subr.bf16.mxu0 0
  %124 = vmatpush1.bf16.msra.mxu0 0
  %125 = vmatprep.mubr.bf16.mxu0 0
  %126 = vmatmul.mubr.bf16.gmra.mrb[0].mxu0 %v72
  %v127 = vpop.f32.mrb[0].mxu0
  %v128 = vadd.f32 0.0, %v127
  %v129 = vpop.f32.mrb[0].mxu0
  %v130 = vadd.f32 0.0, %v129
  %v131 = vpop.f32.mrb[0].mxu0
  %v132 = vpop.f32.mrb[0].mxu0
  %133 = vdwg.mxu0
  %134 = vmatprep.subr.bf16.mxu0 %v85
  %135 = vmatpush1.bf16.msra.mxu0 %v82
  %136 = vmatprep.subr.bf16.mxu0 0
  %137 = vmatpush1.bf16.msra.mxu0 0
  %138 = vmatprep.subr.bf16.mxu0 0
  %139 = vmatpush1.bf16.msra.mxu0 0
  %140 = vmatprep.subr.bf16.mxu0 0
  %141 = vmatpush1.bf16.msra.mxu0 0
  %142 = vmatprep.subr.bf16.mxu0 0
  %143 = vmatpush1.bf16.msra.mxu0 0
  %144 = vmatprep.subr.bf16.mxu0 0
  %145 = vmatpush1.bf16.msra.mxu0 0
  %146 = vmatprep.subr.bf16.mxu0 0
  %147 = vmatpush1.bf16.msra.mxu0 0
  %148 = vmatprep.subr.bf16.mxu0 0
  %149 = vmatpush1.bf16.msra.mxu0 0
  %150 = vmatprep.subr.bf16.mxu0 0
  %151 = vmatpush1.bf16.msra.mxu0 0
  %152 = vmatprep.subr.bf16.mxu0 0
  %153 = vmatpush1.bf16.msra.mxu0 0
  %154 = vmatprep.subr.bf16.mxu0 0
  %155 = vmatpush1.bf16.msra.mxu0 0
  %156 = vmatprep.subr.bf16.mxu0 0
  %157 = vmatpush1.bf16.msra.mxu0 0
  %158 = vmatprep.subr.bf16.mxu0 0
  %159 = vmatpush1.bf16.msra.mxu0 0
  %160 = vmatprep.subr.bf16.mxu0 0
  %161 = vmatpush1.bf16.msra.mxu0 0
  %162 = vmatprep.subr.bf16.mxu0 0
  %163 = vmatpush1.bf16.msra.mxu0 0
  %164 = vmatprep.subr.bf16.mxu0 0
  %165 = vmatpush1.bf16.msra.mxu0 0
  %166 = vmatprep.mubr.bf16.mxu0 0
  %167 = vmatmul.mubr.bf16.gmra.mrb[0].mxu0 %v72
  %v168 = vpop.f32.mrb[0].mxu0
  %v169 = vadd.f32 0.0, %v168
  %v170 = vpop.f32.mrb[0].mxu0
  %v171 = vadd.f32 0.0, %v170
  %v172 = vpop.f32.mrb[0].mxu0
  %v173 = vpop.f32.mrb[0].mxu0
  %174 = vdwg.mxu0
  %175 = vmatprep.subr.bf16.mxu0 %v91
  %176 = vmatpush1.bf16.msra.mxu0 %v88
  %177 = vmatprep.subr.bf16.mxu0 0
  %178 = vmatpush1.bf16.msra.mxu0 0
  %179 = vmatprep.subr.bf16.mxu0 0
  %180 = vmatpush1.bf16.msra.mxu0 0
  %181 = vmatprep.subr.bf16.mxu0 0
  %182 = vmatpush1.bf16.msra.mxu0 0
  %183 = vmatprep.subr.bf16.mxu0 0
  %184 = vmatpush1.bf16.msra.mxu0 0
  %185 = vmatprep.subr.bf16.mxu0 0
  %186 = vmatpush1.bf16.msra.mxu0 0
  %187 = vmatprep.subr.bf16.mxu0 0
  %188 = vmatpush1.bf16.msra.mxu0 0
  %189 = vmatprep.subr.bf16.mxu0 0
  %190 = vmatpush1.bf16.msra.mxu0 0
  %191 = vmatprep.subr.bf16.mxu0 0
  %192 = vmatpush1.bf16.msra.mxu0 0
  %193 = vmatprep.subr.bf16.mxu0 0
  %194 = vmatpush1.bf16.msra.mxu0 0
  %195 = vmatprep.subr.bf16.mxu0 0
  %196 = vmatpush1.bf16.msra.mxu0 0
  %197 = vmatprep.subr.bf16.mxu0 0
  %198 = vmatpush1.bf16.msra.mxu0 0
  %199 = vmatprep.subr.bf16.mxu0 0
  %200 = vmatpush1.bf16.msra.mxu0 0
  %201 = vmatprep.subr.bf16.mxu0 0
  %202 = vmatpush1.bf16.msra.mxu0 0
  %203 = vmatprep.subr.bf16.mxu0 0
  %204 = vmatpush1.bf16.msra.mxu0 0
  %205 = vmatprep.subr.bf16.mxu0 0
  %206 = vmatpush1.bf16.msra.mxu0 0
  %207 = vmatprep.mubr.bf16.mxu0 0
  %208 = vmatmul.mubr.bf16.gmra.mrb[0].mxu0 %v72
  %v209 = vpop.f32.mrb[0].mxu0
  %v210 = vadd.f32 0.0, %v209
  %v211 = vpop.f32.mrb[0].mxu0
  %v212 = vadd.f32 0.0, %v211
  %v213 = vpop.f32.mrb[0].mxu0
  %v214 = vpop.f32.mrb[0].mxu0
  %215 = vdwg.mxu0
  %216 = vrot.lane.b32.xlu0 %v31, 19
  %v217 = vpop.permute.xlu0 %216
  %218 = vrot.lane.b32.xlu0 %v32, 19
  %v219 = vpop.permute.xlu0 %218
  %220 = vrot.lane.b32.xlu0 %v33, 19
  %v221 = vpop.permute.xlu0 %220
  %222 = vrot.lane.b32.xlu0 %v34, 19
  %v223 = vpop.permute.xlu0 %222
  %224 = vrot.lane.b32.xlu0 %v35, 19
  %v225 = vpop.permute.xlu0 %224
  %226 = vrot.lane.b32.xlu0 %v36, 19
  %v227 = vpop.permute.xlu0 %226
  %228 = vrot.lane.b32.xlu0 %v37, 19
  %v229 = vpop.permute.xlu0 %228
  %vm230 = vcmask 154624
  %v231 = vsel %vm230, %v217, %v219
  %v232 = vsel %vm230, %v219, %v221
  %v233 = vsel %vm230, %v221, %v223
  %v234 = vsel %vm230, %v223, %v225
  %v235 = vsel %vm230, %v225, %v227
  %v236 = vsel %vm230, %v227, %v229
  %v238 = vsel %vm70, %v39, 0
  %v241 = vsel %vm74, %v231, 0
  %v244 = vsel %vm74, %v232, 0
  %v247 = vsel %vm74, %v233, 0
  %v250 = vsel %vm74, %v234, 0
  %v253 = vsel %vm74, %v235, 0
  %v256 = vsel %vm74, %v236, 0
  %258 = vmatprep.subr.bf16.mxu0 %v244
  %259 = vmatpush1.bf16.msra.mxu0 %v241
  %260 = vmatprep.subr.bf16.mxu0 0
  %261 = vmatpush1.bf16.msra.mxu0 0
  %262 = vmatprep.subr.bf16.mxu0 0
  %263 = vmatpush1.bf16.msra.mxu0 0
  %264 = vmatprep.subr.bf16.mxu0 0
  %265 = vmatpush1.bf16.msra.mxu0 0
  %266 = vmatprep.subr.bf16.mxu0 0
  %267 = vmatpush1.bf16.msra.mxu0 0
  %268 = vmatprep.subr.bf16.mxu0 0
  %269 = vmatpush1.bf16.msra.mxu0 0
  %270 = vmatprep.subr.bf16.mxu0 0
  %271 = vmatpush1.bf16.msra.mxu0 0
  %272 = vmatprep.subr.bf16.mxu0 0
  %273 = vmatpush1.bf16.msra.mxu0 0
  %274 = vmatprep.subr.bf16.mxu0 0
  %275 = vmatpush1.bf16.msra.mxu0 0
  %276 = vmatprep.subr.bf16.mxu0 0
  %277 = vmatpush1.bf16.msra.mxu0 0
  %278 = vmatprep.subr.bf16.mxu0 0
  %279 = vmatpush1.bf16.msra.mxu0 0
  %280 = vmatprep.subr.bf16.mxu0 0
  %281 = vmatpush1.bf16.msra.mxu0 0
  %282 = vmatprep.subr.bf16.mxu0 0
  %283 = vmatpush1.bf16.msra.mxu0 0
  %284 = vmatprep.subr.bf16.mxu0 0
  %285 = vmatpush1.bf16.msra.mxu0 0
  %286 = vmatprep.subr.bf16.mxu0 0
  %287 = vmatpush1.bf16.msra.mxu0 0
  %288 = vmatprep.subr.bf16.mxu0 0
  %289 = vmatpush1.bf16.msra.mxu0 0
  %290 = vmatprep.mubr.bf16.mxu0 0
  %291 = vmatmul.mubr.bf16.gmra.mrb[0].mxu0 %v238
  %v292 = vpop.f32.mrb[0].mxu0
  %v293 = vadd.f32 %v128, %v292
  %v294 = vpop.f32.mrb[0].mxu0
  %v295 = vadd.f32 %v130, %v294
  %v296 = vpop.f32.mrb[0].mxu0
  %v297 = vpop.f32.mrb[0].mxu0
  %298 = vdwg.mxu0
  %299 = vmatprep.subr.bf16.mxu0 %v250
  %300 = vmatpush1.bf16.msra.mxu0 %v247
  %301 = vmatprep.subr.bf16.mxu0 0
  %302 = vmatpush1.bf16.msra.mxu0 0
  %303 = vmatprep.subr.bf16.mxu0 0
  %304 = vmatpush1.bf16.msra.mxu0 0
  %305 = vmatprep.subr.bf16.mxu0 0
  %306 = vmatpush1.bf16.msra.mxu0 0
  %307 = vmatprep.subr.bf16.mxu0 0
  %308 = vmatpush1.bf16.msra.mxu0 0
  %309 = vmatprep.subr.bf16.mxu0 0
  %310 = vmatpush1.bf16.msra.mxu0 0
  %311 = vmatprep.subr.bf16.mxu0 0
  %312 = vmatpush1.bf16.msra.mxu0 0
  %313 = vmatprep.subr.bf16.mxu0 0
  %314 = vmatpush1.bf16.msra.mxu0 0
  %315 = vmatprep.subr.bf16.mxu0 0
  %316 = vmatpush1.bf16.msra.mxu0 0
  %317 = vmatprep.subr.bf16.mxu0 0
  %318 = vmatpush1.bf16.msra.mxu0 0
  %319 = vmatprep.subr.bf16.mxu0 0
  %320 = vmatpush1.bf16.msra.mxu0 0
  %321 = vmatprep.subr.bf16.mxu0 0
  %322 = vmatpush1.bf16.msra.mxu0 0
  %323 = vmatprep.subr.bf16.mxu0 0
  %324 = vmatpush1.bf16.msra.mxu0 0
  %325 = vmatprep.subr.bf16.mxu0 0
  %326 = vmatpush1.bf16.msra.mxu0 0
  %327 = vmatprep.subr.bf16.mxu0 0
  %328 = vmatpush1.bf16.msra.mxu0 0
  %329 = vmatprep.subr.bf16.mxu0 0
  %330 = vmatpush1.bf16.msra.mxu0 0
  %331 = vmatprep.mubr.bf16.mxu0 0
  %332 = vmatmul.mubr.bf16.gmra.mrb[0].mxu0 %v238
  %v333 = vpop.f32.mrb[0].mxu0
  %v334 = vadd.f32 %v169, %v333
  %v335 = vpop.f32.mrb[0].mxu0
  %v336 = vadd.f32 %v171, %v335
  %v337 = vpop.f32.mrb[0].mxu0
  %v338 = vpop.f32.mrb[0].mxu0
  %339 = vdwg.mxu0
  %340 = vmatprep.subr.bf16.mxu0 %v256
  %341 = vmatpush1.bf16.msra.mxu0 %v253
  %342 = vmatprep.subr.bf16.mxu0 0
  %343 = vmatpush1.bf16.msra.mxu0 0
  %344 = vmatprep.subr.bf16.mxu0 0
  %345 = vmatpush1.bf16.msra.mxu0 0
  %346 = vmatprep.subr.bf16.mxu0 0
  %347 = vmatpush1.bf16.msra.mxu0 0
  %348 = vmatprep.subr.bf16.mxu0 0
  %349 = vmatpush1.bf16.msra.mxu0 0
  %350 = vmatprep.subr.bf16.mxu0 0
  %351 = vmatpush1.bf16.msra.mxu0 0
  %352 = vmatprep.subr.bf16.mxu0 0
  %353 = vmatpush1.bf16.msra.mxu0 0
  %354 = vmatprep.subr.bf16.mxu0 0
  %355 = vmatpush1.bf16.msra.mxu0 0
  %356 = vmatprep.subr.bf16.mxu0 0
  %357 = vmatpush1.bf16.msra.mxu0 0
  %358 = vmatprep.subr.bf16.mxu0 0
  %359 = vmatpush1.bf16.msra.mxu0 0
  %360 = vmatprep.subr.bf16.mxu0 0
  %361 = vmatpush1.bf16.msra.mxu0 0
  %362 = vmatprep.subr.bf16.mxu0 0
  %363 = vmatpush1.bf16.msra.mxu0 0
  %364 = vmatprep.subr.bf16.mxu0 0
  %365 = vmatpush1.bf16.msra.mxu0 0
  %366 = vmatprep.subr.bf16.mxu0 0
  %367 = vmatpush1.bf16.msra.mxu0 0
  %368 = vmatprep.subr.bf16.mxu0 0
  %369 = vmatpush1.bf16.msra.mxu0 0
  %370 = vmatprep.subr.bf16.mxu0 0
  %371 = vmatpush1.bf16.msra.mxu0 0
  %372 = vmatprep.mubr.bf16.mxu0 0
  %373 = vmatmul.mubr.bf16.gmra.mrb[0].mxu0 %v238
  %v374 = vpop.f32.mrb[0].mxu0
  %v375 = vadd.f32 %v210, %v374
  %v376 = vpop.f32.mrb[0].mxu0
  %v377 = vadd.f32 %v212, %v376
  %v378 = vpop.f32.mrb[0].mxu0
  %v379 = vpop.f32.mrb[0].mxu0
  %380 = vdwg.mxu0
  %s381 = scalar_lea.vmem %s2, 8
  %v382 = vld [vmem:[%s381] sm:$0xf]
  %383 = vrot.lane.b32.xlu0 %v31, 17
  %v384 = vpop.permute.xlu0 %383
  %385 = vrot.lane.b32.xlu0 %v32, 17
  %v386 = vpop.permute.xlu0 %385
  %387 = vrot.lane.b32.xlu0 %v33, 17
  %v388 = vpop.permute.xlu0 %387
  %389 = vrot.lane.b32.xlu0 %v34, 17
  %v390 = vpop.permute.xlu0 %389
  %391 = vrot.lane.b32.xlu0 %v35, 17
  %v392 = vpop.permute.xlu0 %391
  %393 = vrot.lane.b32.xlu0 %v36, 17
  %v394 = vpop.permute.xlu0 %393
  %395 = vrot.lane.b32.xlu0 %v37, 17
  %v396 = vpop.permute.xlu0 %395
  %vm397 = vcmask 138240
  %v398 = vsel %vm397, %v384, %v386
  %v399 = vsel %vm397, %v386, %v388
  %v400 = vsel %vm397, %v388, %v390
  %v401 = vsel %vm397, %v390, %v392
  %v402 = vsel %vm397, %v392, %v394
  %v403 = vsel %vm397, %v394, %v396
  %v405 = vsel %vm70, %v382, 0
  %v408 = vsel %vm74, %v398, 0
  %v411 = vsel %vm74, %v399, 0
  %v414 = vsel %vm74, %v400, 0
  %v417 = vsel %vm74, %v401, 0
  %v420 = vsel %vm74, %v402, 0
  %v423 = vsel %vm74, %v403, 0
  %425 = vmatprep.subr.bf16.mxu0 %v411
  %426 = vmatpush1.bf16.msra.mxu0 %v408
  %427 = vmatprep.subr.bf16.mxu0 0
  %428 = vmatpush1.bf16.msra.mxu0 0
  %429 = vmatprep.subr.bf16.mxu0 0
  %430 = vmatpush1.bf16.msra.mxu0 0
  %431 = vmatprep.subr.bf16.mxu0 0
  %432 = vmatpush1.bf16.msra.mxu0 0
  %433 = vmatprep.subr.bf16.mxu0 0
  %434 = vmatpush1.bf16.msra.mxu0 0
  %435 = vmatprep.subr.bf16.mxu0 0
  %436 = vmatpush1.bf16.msra.mxu0 0
  %437 = vmatprep.subr.bf16.mxu0 0
  %438 = vmatpush1.bf16.msra.mxu0 0
  %439 = vmatprep.subr.bf16.mxu0 0
  %440 = vmatpush1.bf16.msra.mxu0 0
  %441 = vmatprep.subr.bf16.mxu0 0
  %442 = vmatpush1.bf16.msra.mxu0 0
  %443 = vmatprep.subr.bf16.mxu0 0
  %444 = vmatpush1.bf16.msra.mxu0 0
  %445 = vmatprep.subr.bf16.mxu0 0
  %446 = vmatpush1.bf16.msra.mxu0 0
  %447 = vmatprep.subr.bf16.mxu0 0
  %448 = vmatpush1.bf16.msra.mxu0 0
  %449 = vmatprep.subr.bf16.mxu0 0
  %450 = vmatpush1.bf16.msra.mxu0 0
  %451 = vmatprep.subr.bf16.mxu0 0
  %452 = vmatpush1.bf16.msra.mxu0 0
  %453 = vmatprep.subr.bf16.mxu0 0
  %454 = vmatpush1.bf16.msra.mxu0 0
  %455 = vmatprep.subr.bf16.mxu0 0
  %456 = vmatpush1.bf16.msra.mxu0 0
  %457 = vmatprep.mubr.bf16.mxu0 0
  %458 = vmatmul.mubr.bf16.gmra.mrb[0].mxu0 %v405
  %v459 = vpop.f32.mrb[0].mxu0
  %v460 = vadd.f32 0.0, %v459
  %v461 = vpop.f32.mrb[0].mxu0
  %v462 = vadd.f32 0.0, %v461
  %v463 = vpop.f32.mrb[0].mxu0
  %v464 = vpop.f32.mrb[0].mxu0
  %465 = vdwg.mxu0
  %466 = vmatprep.subr.bf16.mxu0 %v417
  %467 = vmatpush1.bf16.msra.mxu0 %v414
  %468 = vmatprep.subr.bf16.mxu0 0
  %469 = vmatpush1.bf16.msra.mxu0 0
  %470 = vmatprep.subr.bf16.mxu0 0
  %471 = vmatpush1.bf16.msra.mxu0 0
  %472 = vmatprep.subr.bf16.mxu0 0
  %473 = vmatpush1.bf16.msra.mxu0 0
  %474 = vmatprep.subr.bf16.mxu0 0
  %475 = vmatpush1.bf16.msra.mxu0 0
  %476 = vmatprep.subr.bf16.mxu0 0
  %477 = vmatpush1.bf16.msra.mxu0 0
  %478 = vmatprep.subr.bf16.mxu0 0
  %479 = vmatpush1.bf16.msra.mxu0 0
  %480 = vmatprep.subr.bf16.mxu0 0
  %481 = vmatpush1.bf16.msra.mxu0 0
  %482 = vmatprep.subr.bf16.mxu0 0
  %483 = vmatpush1.bf16.msra.mxu0 0
  %484 = vmatprep.subr.bf16.mxu0 0
  %485 = vmatpush1.bf16.msra.mxu0 0
  %486 = vmatprep.subr.bf16.mxu0 0
  %487 = vmatpush1.bf16.msra.mxu0 0
  %488 = vmatprep.subr.bf16.mxu0 0
  %489 = vmatpush1.bf16.msra.mxu0 0
  %490 = vmatprep.subr.bf16.mxu0 0
  %491 = vmatpush1.bf16.msra.mxu0 0
  %492 = vmatprep.subr.bf16.mxu0 0
  %493 = vmatpush1.bf16.msra.mxu0 0
  %494 = vmatprep.subr.bf16.mxu0 0
  %495 = vmatpush1.bf16.msra.mxu0 0
  %496 = vmatprep.subr.bf16.mxu0 0
  %497 = vmatpush1.bf16.msra.mxu0 0
  %498 = vmatprep.mubr.bf16.mxu0 0
  %499 = vmatmul.mubr.bf16.gmra.mrb[0].mxu0 %v405
  %v500 = vpop.f32.mrb[0].mxu0
  %v501 = vadd.f32 0.0, %v500
  %v502 = vpop.f32.mrb[0].mxu0
  %v503 = vadd.f32 0.0, %v502
  %v504 = vpop.f32.mrb[0].mxu0
  %v505 = vpop.f32.mrb[0].mxu0
  %506 = vdwg.mxu0
  %507 = vmatprep.subr.bf16.mxu0 %v423
  %508 = vmatpush1.bf16.msra.mxu0 %v420
  %509 = vmatprep.subr.bf16.mxu0 0
  %510 = vmatpush1.bf16.msra.mxu0 0
  %511 = vmatprep.subr.bf16.mxu0 0
  %512 = vmatpush1.bf16.msra.mxu0 0
  %513 = vmatprep.subr.bf16.mxu0 0
  %514 = vmatpush1.bf16.msra.mxu0 0
  %515 = vmatprep.subr.bf16.mxu0 0
  %516 = vmatpush1.bf16.msra.mxu0 0
  %517 = vmatprep.subr.bf16.mxu0 0
  %518 = vmatpush1.bf16.msra.mxu0 0
  %519 = vmatprep.subr.bf16.mxu0 0
  %520 = vmatpush1.bf16.msra.mxu0 0
  %521 = vmatprep.subr.bf16.mxu0 0
  %522 = vmatpush1.bf16.msra.mxu0 0
  %523 = vmatprep.subr.bf16.mxu0 0
  %524 = vmatpush1.bf16.msra.mxu0 0
  %525 = vmatprep.subr.bf16.mxu0 0
  %526 = vmatpush1.bf16.msra.mxu0 0
  %527 = vmatprep.subr.bf16.mxu0 0
  %528 = vmatpush1.bf16.msra.mxu0 0
  %529 = vmatprep.subr.bf16.mxu0 0
  %530 = vmatpush1.bf16.msra.mxu0 0
  %531 = vmatprep.subr.bf16.mxu0 0
  %532 = vmatpush1.bf16.msra.mxu0 0
  %533 = vmatprep.subr.bf16.mxu0 0
  %534 = vmatpush1.bf16.msra.mxu0 0
  %535 = vmatprep.subr.bf16.mxu0 0
  %536 = vmatpush1.bf16.msra.mxu0 0
  %537 = vmatprep.subr.bf16.mxu0 0
  %538 = vmatpush1.bf16.msra.mxu0 0
  %539 = vmatprep.mubr.bf16.mxu0 0
  %540 = vmatmul.mubr.bf16.gmra.mrb[0].mxu0 %v405
  %v541 = vpop.f32.mrb[0].mxu0
  %v542 = vadd.f32 0.0, %v541
  %v543 = vpop.f32.mrb[0].mxu0
  %v544 = vadd.f32 0.0, %v543
  %v545 = vpop.f32.mrb[0].mxu0
  %v546 = vpop.f32.mrb[0].mxu0
  %547 = vdwg.mxu0
  %v548 = vadd.f32 %v293, %v460
  %v549 = vadd.f32 %v295, %v462
  %v550 = vadd.f32 %v334, %v501
  %v551 = vadd.f32 %v336, %v503
  %v552 = vadd.f32 %v375, %v542
  %v553 = vadd.f32 %v377, %v544
  %s554 = scalar_lea.vmem %s2, 12
  %v555 = vld [vmem:[%s554] sm:$0xf]
  %556 = vrot.lane.b32.xlu0 %v31, 1
  %v557 = vpop.permute.xlu0 %556
  %558 = vrot.lane.b32.xlu0 %v32, 1
  %v559 = vpop.permute.xlu0 %558
  %560 = vrot.lane.b32.xlu0 %v33, 1
  %v561 = vpop.permute.xlu0 %560
  %562 = vrot.lane.b32.xlu0 %v34, 1
  %v563 = vpop.permute.xlu0 %562
  %564 = vrot.lane.b32.xlu0 %v35, 1
  %v565 = vpop.permute.xlu0 %564
  %566 = vrot.lane.b32.xlu0 %v36, 1
  %v567 = vpop.permute.xlu0 %566
  %568 = vrot.lane.b32.xlu0 %v37, 1
  %v569 = vpop.permute.xlu0 %568
  %vm570 = vcmask 7168
  %v571 = vsel %vm570, %v557, %v559
  %v572 = vsel %vm570, %v559, %v561
  %v573 = vsel %vm570, %v561, %v563
  %v574 = vsel %vm570, %v563, %v565
  %v575 = vsel %vm570, %v565, %v567
  %v576 = vsel %vm570, %v567, %v569
  %v578 = vsel %vm70, %v555, 0
  %v581 = vsel %vm74, %v571, 0
  %v584 = vsel %vm74, %v572, 0
  %v587 = vsel %vm74, %v573, 0
  %v590 = vsel %vm74, %v574, 0
  %v593 = vsel %vm74, %v575, 0
  %v596 = vsel %vm74, %v576, 0
  %598 = vmatprep.subr.bf16.mxu0 %v584
  %599 = vmatpush1.bf16.msra.mxu0 %v581
  %600 = vmatprep.subr.bf16.mxu0 0
  %601 = vmatpush1.bf16.msra.mxu0 0
  %602 = vmatprep.subr.bf16.mxu0 0
  %603 = vmatpush1.bf16.msra.mxu0 0
  %604 = vmatprep.subr.bf16.mxu0 0
  %605 = vmatpush1.bf16.msra.mxu0 0
  %606 = vmatprep.subr.bf16.mxu0 0
  %607 = vmatpush1.bf16.msra.mxu0 0
  %608 = vmatprep.subr.bf16.mxu0 0
  %609 = vmatpush1.bf16.msra.mxu0 0
  %610 = vmatprep.subr.bf16.mxu0 0
  %611 = vmatpush1.bf16.msra.mxu0 0
  %612 = vmatprep.subr.bf16.mxu0 0
  %613 = vmatpush1.bf16.msra.mxu0 0
  %614 = vmatprep.subr.bf16.mxu0 0
  %615 = vmatpush1.bf16.msra.mxu0 0
  %616 = vmatprep.subr.bf16.mxu0 0
  %617 = vmatpush1.bf16.msra.mxu0 0
  %618 = vmatprep.subr.bf16.mxu0 0
  %619 = vmatpush1.bf16.msra.mxu0 0
  %620 = vmatprep.subr.bf16.mxu0 0
  %621 = vmatpush1.bf16.msra.mxu0 0
  %622 = vmatprep.subr.bf16.mxu0 0
  %623 = vmatpush1.bf16.msra.mxu0 0
  %624 = vmatprep.subr.bf16.mxu0 0
  %625 = vmatpush1.bf16.msra.mxu0 0
  %626 = vmatprep.subr.bf16.mxu0 0
  %627 = vmatpush1.bf16.msra.mxu0 0
  %628 = vmatprep.subr.bf16.mxu0 0
  %629 = vmatpush1.bf16.msra.mxu0 0
  %630 = vmatprep.mubr.bf16.mxu0 0
  %631 = vmatmul.mubr.bf16.gmra.mrb[0].mxu0 %v578
  %v632 = vpop.f32.mrb[0].mxu0
  %v633 = vadd.f32 0.0, %v632
  %v634 = vpop.f32.mrb[0].mxu0
  %v635 = vadd.f32 0.0, %v634
  %v636 = vpop.f32.mrb[0].mxu0
  %v637 = vpop.f32.mrb[0].mxu0
  %638 = vdwg.mxu0
  %639 = vmatprep.subr.bf16.mxu0 %v590
  %640 = vmatpush1.bf16.msra.mxu0 %v587
  %641 = vmatprep.subr.bf16.mxu0 0
  %642 = vmatpush1.bf16.msra.mxu0 0
  %643 = vmatprep.subr.bf16.mxu0 0
  %644 = vmatpush1.bf16.msra.mxu0 0
  %645 = vmatprep.subr.bf16.mxu0 0
  %646 = vmatpush1.bf16.msra.mxu0 0
  %647 = vmatprep.subr.bf16.mxu0 0
  %648 = vmatpush1.bf16.msra.mxu0 0
  %649 = vmatprep.subr.bf16.mxu0 0
  %650 = vmatpush1.bf16.msra.mxu0 0
  %651 = vmatprep.subr.bf16.mxu0 0
  %652 = vmatpush1.bf16.msra.mxu0 0
  %653 = vmatprep.subr.bf16.mxu0 0
  %654 = vmatpush1.bf16.msra.mxu0 0
  %655 = vmatprep.subr.bf16.mxu0 0
  %656 = vmatpush1.bf16.msra.mxu0 0
  %657 = vmatprep.subr.bf16.mxu0 0
  %658 = vmatpush1.bf16.msra.mxu0 0
  %659 = vmatprep.subr.bf16.mxu0 0
  %660 = vmatpush1.bf16.msra.mxu0 0
  %661 = vmatprep.subr.bf16.mxu0 0
  %662 = vmatpush1.bf16.msra.mxu0 0
  %663 = vmatprep.subr.bf16.mxu0 0
  %664 = vmatpush1.bf16.msra.mxu0 0
  %665 = vmatprep.subr.bf16.mxu0 0
  %666 = vmatpush1.bf16.msra.mxu0 0
  %667 = vmatprep.subr.bf16.mxu0 0
  %668 = vmatpush1.bf16.msra.mxu0 0
  %669 = vmatprep.subr.bf16.mxu0 0
  %670 = vmatpush1.bf16.msra.mxu0 0
  %671 = vmatprep.mubr.bf16.mxu0 0
  %672 = vmatmul.mubr.bf16.gmra.mrb[0].mxu0 %v578
  %v673 = vpop.f32.mrb[0].mxu0
  %v674 = vadd.f32 0.0, %v673
  %v675 = vpop.f32.mrb[0].mxu0
  %v676 = vadd.f32 0.0, %v675
  %v677 = vpop.f32.mrb[0].mxu0
  %v678 = vpop.f32.mrb[0].mxu0
  %679 = vdwg.mxu0
  %680 = vmatprep.subr.bf16.mxu0 %v596
  %681 = vmatpush1.bf16.msra.mxu0 %v593
  %682 = vmatprep.subr.bf16.mxu0 0
  %683 = vmatpush1.bf16.msra.mxu0 0
  %684 = vmatprep.subr.bf16.mxu0 0
  %685 = vmatpush1.bf16.msra.mxu0 0
  %686 = vmatprep.subr.bf16.mxu0 0
  %687 = vmatpush1.bf16.msra.mxu0 0
  %688 = vmatprep.subr.bf16.mxu0 0
  %689 = vmatpush1.bf16.msra.mxu0 0
  %690 = vmatprep.subr.bf16.mxu0 0
  %691 = vmatpush1.bf16.msra.mxu0 0
  %692 = vmatprep.subr.bf16.mxu0 0
  %693 = vmatpush1.bf16.msra.mxu0 0
  %694 = vmatprep.subr.bf16.mxu0 0
  %695 = vmatpush1.bf16.msra.mxu0 0
  %696 = vmatprep.subr.bf16.mxu0 0
  %697 = vmatpush1.bf16.msra.mxu0 0
  %698 = vmatprep.subr.bf16.mxu0 0
  %699 = vmatpush1.bf16.msra.mxu0 0
  %700 = vmatprep.subr.bf16.mxu0 0
  %701 = vmatpush1.bf16.msra.mxu0 0
  %702 = vmatprep.subr.bf16.mxu0 0
  %703 = vmatpush1.bf16.msra.mxu0 0
  %704 = vmatprep.subr.bf16.mxu0 0
  %705 = vmatpush1.bf16.msra.mxu0 0
  %706 = vmatprep.subr.bf16.mxu0 0
  %707 = vmatpush1.bf16.msra.mxu0 0
  %708 = vmatprep.subr.bf16.mxu0 0
  %709 = vmatpush1.bf16.msra.mxu0 0
  %710 = vmatprep.subr.bf16.mxu0 0
  %711 = vmatpush1.bf16.msra.mxu0 0
  %712 = vmatprep.mubr.bf16.mxu0 0
  %713 = vmatmul.mubr.bf16.gmra.mrb[0].mxu0 %v578
  %v714 = vpop.f32.mrb[0].mxu0
  %v715 = vadd.f32 0.0, %v714
  %v716 = vpop.f32.mrb[0].mxu0
  %v717 = vadd.f32 0.0, %v716
  %v718 = vpop.f32.mrb[0].mxu0
  %v719 = vpop.f32.mrb[0].mxu0
  %720 = vdwg.mxu0
  %v721 = vadd.f32 %v548, %v633
  %v722 = vadd.f32 %v549, %v635
  %v723 = vadd.f32 %v550, %v674
  %v724 = vadd.f32 %v551, %v676
  %v725 = vadd.f32 %v552, %v715
  %v726 = vadd.f32 %v553, %v717
  %s727 = scalar_lea.vmem %s2, 16
  %v728 = vld [vmem:[%s727] sm:$0xf]
  %v730 = vsel %vm70, %v728, 0
  %v733 = vsel %vm74, %v32, 0
  %v736 = vsel %vm74, %v33, 0
  %v739 = vsel %vm74, %v34, 0
  %v742 = vsel %vm74, %v35, 0
  %v745 = vsel %vm74, %v36, 0
  %v748 = vsel %vm74, %v37, 0
  %750 = vmatprep.subr.bf16.mxu0 %v736
  %751 = vmatpush1.bf16.msra.mxu0 %v733
  %752 = vmatprep.subr.bf16.mxu0 0
  %753 = vmatpush1.bf16.msra.mxu0 0
  %754 = vmatprep.subr.bf16.mxu0 0
  %755 = vmatpush1.bf16.msra.mxu0 0
  %756 = vmatprep.subr.bf16.mxu0 0
  %757 = vmatpush1.bf16.msra.mxu0 0
  %758 = vmatprep.subr.bf16.mxu0 0
  %759 = vmatpush1.bf16.msra.mxu0 0
  %760 = vmatprep.subr.bf16.mxu0 0
  %761 = vmatpush1.bf16.msra.mxu0 0
  %762 = vmatprep.subr.bf16.mxu0 0
  %763 = vmatpush1.bf16.msra.mxu0 0
  %764 = vmatprep.subr.bf16.mxu0 0
  %765 = vmatpush1.bf16.msra.mxu0 0
  %766 = vmatprep.subr.bf16.mxu0 0
  %767 = vmatpush1.bf16.msra.mxu0 0
  %768 = vmatprep.subr.bf16.mxu0 0
  %769 = vmatpush1.bf16.msra.mxu0 0
  %770 = vmatprep.subr.bf16.mxu0 0
  %771 = vmatpush1.bf16.msra.mxu0 0
  %772 = vmatprep.subr.bf16.mxu0 0
  %773 = vmatpush1.bf16.msra.mxu0 0
  %774 = vmatprep.subr.bf16.mxu0 0
  %775 = vmatpush1.bf16.msra.mxu0 0
  %776 = vmatprep.subr.bf16.mxu0 0
  %777 = vmatpush1.bf16.msra.mxu0 0
  %778 = vmatprep.subr.bf16.mxu0 0
  %779 = vmatpush1.bf16.msra.mxu0 0
  %780 = vmatprep.subr.bf16.mxu0 0
  %781 = vmatpush1.bf16.msra.mxu0 0
  %782 = vmatprep.mubr.bf16.mxu0 0
  %783 = vmatmul.mubr.bf16.gmra.mrb[0].mxu0 %v730
  %v784 = vpop.f32.mrb[0].mxu0
  %v785 = vadd.f32 0.0, %v784
  %v786 = vpop.f32.mrb[0].mxu0
  %v787 = vadd.f32 0.0, %v786
  %v788 = vpop.f32.mrb[0].mxu0
  %v789 = vpop.f32.mrb[0].mxu0
  %790 = vdwg.mxu0
  %791 = vmatprep.subr.bf16.mxu0 %v742
  %792 = vmatpush1.bf16.msra.mxu0 %v739
  %793 = vmatprep.subr.bf16.mxu0 0
  %794 = vmatpush1.bf16.msra.mxu0 0
  %795 = vmatprep.subr.bf16.mxu0 0
  %796 = vmatpush1.bf16.msra.mxu0 0
  %797 = vmatprep.subr.bf16.mxu0 0
  %798 = vmatpush1.bf16.msra.mxu0 0
  %799 = vmatprep.subr.bf16.mxu0 0
  %800 = vmatpush1.bf16.msra.mxu0 0
  %801 = vmatprep.subr.bf16.mxu0 0
  %802 = vmatpush1.bf16.msra.mxu0 0
  %803 = vmatprep.subr.bf16.mxu0 0
  %804 = vmatpush1.bf16.msra.mxu0 0
  %805 = vmatprep.subr.bf16.mxu0 0
  %806 = vmatpush1.bf16.msra.mxu0 0
  %807 = vmatprep.subr.bf16.mxu0 0
  %808 = vmatpush1.bf16.msra.mxu0 0
  %809 = vmatprep.subr.bf16.mxu0 0
  %810 = vmatpush1.bf16.msra.mxu0 0
  %811 = vmatprep.subr.bf16.mxu0 0
  %812 = vmatpush1.bf16.msra.mxu0 0
  %813 = vmatprep.subr.bf16.mxu0 0
  %814 = vmatpush1.bf16.msra.mxu0 0
  %815 = vmatprep.subr.bf16.mxu0 0
  %816 = vmatpush1.bf16.msra.mxu0 0
  %817 = vmatprep.subr.bf16.mxu0 0
  %818 = vmatpush1.bf16.msra.mxu0 0
  %819 = vmatprep.subr.bf16.mxu0 0
  %820 = vmatpush1.bf16.msra.mxu0 0
  %821 = vmatprep.subr.bf16.mxu0 0
  %822 = vmatpush1.bf16.msra.mxu0 0
  %823 = vmatprep.mubr.bf16.mxu0 0
  %824 = vmatmul.mubr.bf16.gmra.mrb[0].mxu0 %v730
  %v825 = vpop.f32.mrb[0].mxu0
  %v826 = vadd.f32 0.0, %v825
  %v827 = vpop.f32.mrb[0].mxu0
  %v828 = vadd.f32 0.0, %v827
  %v829 = vpop.f32.mrb[0].mxu0
  %v830 = vpop.f32.mrb[0].mxu0
  %831 = vdwg.mxu0
  %832 = vmatprep.subr.bf16.mxu0 %v748
  %833 = vmatpush1.bf16.msra.mxu0 %v745
  %834 = vmatprep.subr.bf16.mxu0 0
  %835 = vmatpush1.bf16.msra.mxu0 0
  %836 = vmatprep.subr.bf16.mxu0 0
  %837 = vmatpush1.bf16.msra.mxu0 0
  %838 = vmatprep.subr.bf16.mxu0 0
  %839 = vmatpush1.bf16.msra.mxu0 0
  %840 = vmatprep.subr.bf16.mxu0 0
  %841 = vmatpush1.bf16.msra.mxu0 0
  %842 = vmatprep.subr.bf16.mxu0 0
  %843 = vmatpush1.bf16.msra.mxu0 0
  %844 = vmatprep.subr.bf16.mxu0 0
  %845 = vmatpush1.bf16.msra.mxu0 0
  %846 = vmatprep.subr.bf16.mxu0 0
  %847 = vmatpush1.bf16.msra.mxu0 0
  %848 = vmatprep.subr.bf16.mxu0 0
  %849 = vmatpush1.bf16.msra.mxu0 0
  %850 = vmatprep.subr.bf16.mxu0 0
  %851 = vmatpush1.bf16.msra.mxu0 0
  %852 = vmatprep.subr.bf16.mxu0 0
  %853 = vmatpush1.bf16.msra.mxu0 0
  %854 = vmatprep.subr.bf16.mxu0 0
  %855 = vmatpush1.bf16.msra.mxu0 0
  %856 = vmatprep.subr.bf16.mxu0 0
  %857 = vmatpush1.bf16.msra.mxu0 0
  %858 = vmatprep.subr.bf16.mxu0 0
  %859 = vmatpush1.bf16.msra.mxu0 0
  %860 = vmatprep.subr.bf16.mxu0 0
  %861 = vmatpush1.bf16.msra.mxu0 0
  %862 = vmatprep.subr.bf16.mxu0 0
  %863 = vmatpush1.bf16.msra.mxu0 0
  %864 = vmatprep.mubr.bf16.mxu0 0
  %865 = vmatmul.mubr.bf16.gmra.mrb[0].mxu0 %v730
  %v866 = vpop.f32.mrb[0].mxu0
  %v867 = vadd.f32 0.0, %v866
  %v868 = vpop.f32.mrb[0].mxu0
  %v869 = vadd.f32 0.0, %v868
  %v870 = vpop.f32.mrb[0].mxu0
  %v871 = vpop.f32.mrb[0].mxu0
  %872 = vdwg.mxu0
  %v873 = vadd.f32 %v721, %v785
  %v874 = vadd.f32 %v722, %v787
  %v875 = vadd.f32 %v723, %v826
  %v876 = vadd.f32 %v724, %v828
  %v877 = vadd.f32 %v725, %v867
  %v878 = vadd.f32 %v726, %v869
  %s879 = scalar_lea.vmem %s2, 20
  %v880 = vld [vmem:[%s879] sm:$0xf]
  %882 = vrot.lane.b32.xlu0 %v32, 127
  %v883 = vpop.permute.xlu0 %882
  %884 = vrot.lane.b32.xlu0 %v33, 127
  %v885 = vpop.permute.xlu0 %884
  %886 = vrot.lane.b32.xlu0 %v34, 127
  %v887 = vpop.permute.xlu0 %886
  %888 = vrot.lane.b32.xlu0 %v35, 127
  %v889 = vpop.permute.xlu0 %888
  %890 = vrot.lane.b32.xlu0 %v36, 127
  %v891 = vpop.permute.xlu0 %890
  %892 = vrot.lane.b32.xlu0 %v37, 127
  %v893 = vpop.permute.xlu0 %892
  %894 = vrot.lane.b32.xlu0 %v38, 127
  %v895 = vpop.permute.xlu0 %894
  %vm896 = vcmask 1039360
  %v897 = vsel %vm896, %v883, %v885
  %v898 = vsel %vm896, %v885, %v887
  %v899 = vsel %vm896, %v887, %v889
  %v900 = vsel %vm896, %v889, %v891
  %v901 = vsel %vm896, %v891, %v893
  %v902 = vsel %vm896, %v893, %v895
  %v904 = vsel %vm70, %v880, 0
  %v907 = vsel %vm74, %v897, 0
  %v910 = vsel %vm74, %v898, 0
  %v913 = vsel %vm74, %v899, 0
  %v916 = vsel %vm74, %v900, 0
  %v919 = vsel %vm74, %v901, 0
  %v922 = vsel %vm74, %v902, 0
  %924 = vmatprep.subr.bf16.mxu0 %v910
  %925 = vmatpush1.bf16.msra.mxu0 %v907
  %926 = vmatprep.subr.bf16.mxu0 0
  %927 = vmatpush1.bf16.msra.mxu0 0
  %928 = vmatprep.subr.bf16.mxu0 0
  %929 = vmatpush1.bf16.msra.mxu0 0
  %930 = vmatprep.subr.bf16.mxu0 0
  %931 = vmatpush1.bf16.msra.mxu0 0
  %932 = vmatprep.subr.bf16.mxu0 0
  %933 = vmatpush1.bf16.msra.mxu0 0
  %934 = vmatprep.subr.bf16.mxu0 0
  %935 = vmatpush1.bf16.msra.mxu0 0
  %936 = vmatprep.subr.bf16.mxu0 0
  %937 = vmatpush1.bf16.msra.mxu0 0
  %938 = vmatprep.subr.bf16.mxu0 0
  %939 = vmatpush1.bf16.msra.mxu0 0
  %940 = vmatprep.subr.bf16.mxu0 0
  %941 = vmatpush1.bf16.msra.mxu0 0
  %942 = vmatprep.subr.bf16.mxu0 0
  %943 = vmatpush1.bf16.msra.mxu0 0
  %944 = vmatprep.subr.bf16.mxu0 0
  %945 = vmatpush1.bf16.msra.mxu0 0
  %946 = vmatprep.subr.bf16.mxu0 0
  %947 = vmatpush1.bf16.msra.mxu0 0
  %948 = vmatprep.subr.bf16.mxu0 0
  %949 = vmatpush1.bf16.msra.mxu0 0
  %950 = vmatprep.subr.bf16.mxu0 0
  %951 = vmatpush1.bf16.msra.mxu0 0
  %952 = vmatprep.subr.bf16.mxu0 0
  %953 = vmatpush1.bf16.msra.mxu0 0
  %954 = vmatprep.subr.bf16.mxu0 0
  %955 = vmatpush1.bf16.msra.mxu0 0
  %956 = vmatprep.mubr.bf16.mxu0 0
  %957 = vmatmul.mubr.bf16.gmra.mrb[0].mxu0 %v904
  %v958 = vpop.f32.mrb[0].mxu0
  %v959 = vadd.f32 0.0, %v958
  %v960 = vpop.f32.mrb[0].mxu0
  %v961 = vadd.f32 0.0, %v960
  %v962 = vpop.f32.mrb[0].mxu0
  %v963 = vpop.f32.mrb[0].mxu0
  %964 = vdwg.mxu0
  %965 = vmatprep.subr.bf16.mxu0 %v916
  %966 = vmatpush1.bf16.msra.mxu0 %v913
  %967 = vmatprep.subr.bf16.mxu0 0
  %968 = vmatpush1.bf16.msra.mxu0 0
  %969 = vmatprep.subr.bf16.mxu0 0
  %970 = vmatpush1.bf16.msra.mxu0 0
  %971 = vmatprep.subr.bf16.mxu0 0
  %972 = vmatpush1.bf16.msra.mxu0 0
  %973 = vmatprep.subr.bf16.mxu0 0
  %974 = vmatpush1.bf16.msra.mxu0 0
  %975 = vmatprep.subr.bf16.mxu0 0
  %976 = vmatpush1.bf16.msra.mxu0 0
  %977 = vmatprep.subr.bf16.mxu0 0
  %978 = vmatpush1.bf16.msra.mxu0 0
  %979 = vmatprep.subr.bf16.mxu0 0
  %980 = vmatpush1.bf16.msra.mxu0 0
  %981 = vmatprep.subr.bf16.mxu0 0
  %982 = vmatpush1.bf16.msra.mxu0 0
  %983 = vmatprep.subr.bf16.mxu0 0
  %984 = vmatpush1.bf16.msra.mxu0 0
  %985 = vmatprep.subr.bf16.mxu0 0
  %986 = vmatpush1.bf16.msra.mxu0 0
  %987 = vmatprep.subr.bf16.mxu0 0
  %988 = vmatpush1.bf16.msra.mxu0 0
  %989 = vmatprep.subr.bf16.mxu0 0
  %990 = vmatpush1.bf16.msra.mxu0 0
  %991 = vmatprep.subr.bf16.mxu0 0
  %992 = vmatpush1.bf16.msra.mxu0 0
  %993 = vmatprep.subr.bf16.mxu0 0
  %994 = vmatpush1.bf16.msra.mxu0 0
  %995 = vmatprep.subr.bf16.mxu0 0
  %996 = vmatpush1.bf16.msra.mxu0 0
  %997 = vmatprep.mubr.bf16.mxu0 0
  %998 = vmatmul.mubr.bf16.gmra.mrb[0].mxu0 %v904
  %v999 = vpop.f32.mrb[0].mxu0
  %v1000 = vadd.f32 0.0, %v999
  %v1001 = vpop.f32.mrb[0].mxu0
  %v1002 = vadd.f32 0.0, %v1001
  %v1003 = vpop.f32.mrb[0].mxu0
  %v1004 = vpop.f32.mrb[0].mxu0
  %1005 = vdwg.mxu0
  %1006 = vmatprep.subr.bf16.mxu0 %v922
  %1007 = vmatpush1.bf16.msra.mxu0 %v919
  %1008 = vmatprep.subr.bf16.mxu0 0
  %1009 = vmatpush1.bf16.msra.mxu0 0
  %1010 = vmatprep.subr.bf16.mxu0 0
  %1011 = vmatpush1.bf16.msra.mxu0 0
  %1012 = vmatprep.subr.bf16.mxu0 0
  %1013 = vmatpush1.bf16.msra.mxu0 0
  %1014 = vmatprep.subr.bf16.mxu0 0
  %1015 = vmatpush1.bf16.msra.mxu0 0
  %1016 = vmatprep.subr.bf16.mxu0 0
  %1017 = vmatpush1.bf16.msra.mxu0 0
  %1018 = vmatprep.subr.bf16.mxu0 0
  %1019 = vmatpush1.bf16.msra.mxu0 0
  %1020 = vmatprep.subr.bf16.mxu0 0
  %1021 = vmatpush1.bf16.msra.mxu0 0
  %1022 = vmatprep.subr.bf16.mxu0 0
  %1023 = vmatpush1.bf16.msra.mxu0 0
  %1024 = vmatprep.subr.bf16.mxu0 0
  %1025 = vmatpush1.bf16.msra.mxu0 0
  %1026 = vmatprep.subr.bf16.mxu0 0
  %1027 = vmatpush1.bf16.msra.mxu0 0
  %1028 = vmatprep.subr.bf16.mxu0 0
  %1029 = vmatpush1.bf16.msra.mxu0 0
  %1030 = vmatprep.subr.bf16.mxu0 0
  %1031 = vmatpush1.bf16.msra.mxu0 0
  %1032 = vmatprep.subr.bf16.mxu0 0
  %1033 = vmatpush1.bf16.msra.mxu0 0
  %1034 = vmatprep.subr.bf16.mxu0 0
  %1035 = vmatpush1.bf16.msra.mxu0 0
  %1036 = vmatprep.subr.bf16.mxu0 0
  %1037 = vmatpush1.bf16.msra.mxu0 0
  %1038 = vmatprep.mubr.bf16.mxu0 0
  %1039 = vmatmul.mubr.bf16.gmra.mrb[0].mxu0 %v904
  %v1040 = vpop.f32.mrb[0].mxu0
  %v1041 = vadd.f32 0.0, %v1040
  %v1042 = vpop.f32.mrb[0].mxu0
  %v1043 = vadd.f32 0.0, %v1042
  %v1044 = vpop.f32.mrb[0].mxu0
  %v1045 = vpop.f32.mrb[0].mxu0
  %1046 = vdwg.mxu0
  %v1047 = vadd.f32 %v873, %v959
  %v1048 = vadd.f32 %v874, %v961
  %v1049 = vadd.f32 %v875, %v1000
  %v1050 = vadd.f32 %v876, %v1002
  %v1051 = vadd.f32 %v877, %v1041
  %v1052 = vadd.f32 %v878, %v1043
  %s1053 = scalar_lea.vmem %s2, 24
  %v1054 = vld [vmem:[%s1053] sm:$0xf]
  %1055 = vrot.lane.b32.xlu0 %v32, 111
  %v1056 = vpop.permute.xlu0 %1055
  %1057 = vrot.lane.b32.xlu0 %v33, 111
  %v1058 = vpop.permute.xlu0 %1057
  %1059 = vrot.lane.b32.xlu0 %v34, 111
  %v1060 = vpop.permute.xlu0 %1059
  %1061 = vrot.lane.b32.xlu0 %v35, 111
  %v1062 = vpop.permute.xlu0 %1061
  %1063 = vrot.lane.b32.xlu0 %v36, 111
  %v1064 = vpop.permute.xlu0 %1063
  %1065 = vrot.lane.b32.xlu0 %v37, 111
  %v1066 = vpop.permute.xlu0 %1065
  %1067 = vrot.lane.b32.xlu0 %v38, 111
  %v1068 = vpop.permute.xlu0 %1067
  %vm1069 = vcmask 908288
  %v1070 = vsel %vm1069, %v1056, %v1058
  %v1071 = vsel %vm1069, %v1058, %v1060
  %v1072 = vsel %vm1069, %v1060, %v1062
  %v1073 = vsel %vm1069, %v1062, %v1064
  %v1074 = vsel %vm1069, %v1064, %v1066
  %v1075 = vsel %vm1069, %v1066, %v1068
  %v1077 = vsel %vm70, %v1054, 0
  %v1080 = vsel %vm74, %v1070, 0
  %v1083 = vsel %vm74, %v1071, 0
  %v1086 = vsel %vm74, %v1072, 0
  %v1089 = vsel %vm74, %v1073, 0
  %v1092 = vsel %vm74, %v1074, 0
  %v1095 = vsel %vm74, %v1075, 0
  %1097 = vmatprep.subr.bf16.mxu0 %v1083
  %1098 = vmatpush1.bf16.msra.mxu0 %v1080
  %1099 = vmatprep.subr.bf16.mxu0 0
  %1100 = vmatpush1.bf16.msra.mxu0 0
  %1101 = vmatprep.subr.bf16.mxu0 0
  %1102 = vmatpush1.bf16.msra.mxu0 0
  %1103 = vmatprep.subr.bf16.mxu0 0
  %1104 = vmatpush1.bf16.msra.mxu0 0
  %1105 = vmatprep.subr.bf16.mxu0 0
  %1106 = vmatpush1.bf16.msra.mxu0 0
  %1107 = vmatprep.subr.bf16.mxu0 0
  %1108 = vmatpush1.bf16.msra.mxu0 0
  %1109 = vmatprep.subr.bf16.mxu0 0
  %1110 = vmatpush1.bf16.msra.mxu0 0
  %1111 = vmatprep.subr.bf16.mxu0 0
  %1112 = vmatpush1.bf16.msra.mxu0 0
  %1113 = vmatprep.subr.bf16.mxu0 0
  %1114 = vmatpush1.bf16.msra.mxu0 0
  %1115 = vmatprep.subr.bf16.mxu0 0
  %1116 = vmatpush1.bf16.msra.mxu0 0
  %1117 = vmatprep.subr.bf16.mxu0 0
  %1118 = vmatpush1.bf16.msra.mxu0 0
  %1119 = vmatprep.subr.bf16.mxu0 0
  %1120 = vmatpush1.bf16.msra.mxu0 0
  %1121 = vmatprep.subr.bf16.mxu0 0
  %1122 = vmatpush1.bf16.msra.mxu0 0
  %1123 = vmatprep.subr.bf16.mxu0 0
  %1124 = vmatpush1.bf16.msra.mxu0 0
  %1125 = vmatprep.subr.bf16.mxu0 0
  %1126 = vmatpush1.bf16.msra.mxu0 0
  %1127 = vmatprep.subr.bf16.mxu0 0
  %1128 = vmatpush1.bf16.msra.mxu0 0
  %1129 = vmatprep.mubr.bf16.mxu0 0
  %1130 = vmatmul.mubr.bf16.gmra.mrb[0].mxu0 %v1077
  %v1131 = vpop.f32.mrb[0].mxu0
  %v1132 = vadd.f32 0.0, %v1131
  %v1133 = vpop.f32.mrb[0].mxu0
  %v1134 = vadd.f32 0.0, %v1133
  %v1135 = vpop.f32.mrb[0].mxu0
  %v1136 = vpop.f32.mrb[0].mxu0
  %1137 = vdwg.mxu0
  %1138 = vmatprep.subr.bf16.mxu0 %v1089
  %1139 = vmatpush1.bf16.msra.mxu0 %v1086
  %1140 = vmatprep.subr.bf16.mxu0 0
  %1141 = vmatpush1.bf16.msra.mxu0 0
  %1142 = vmatprep.subr.bf16.mxu0 0
  %1143 = vmatpush1.bf16.msra.mxu0 0
  %1144 = vmatprep.subr.bf16.mxu0 0
  %1145 = vmatpush1.bf16.msra.mxu0 0
  %1146 = vmatprep.subr.bf16.mxu0 0
  %1147 = vmatpush1.bf16.msra.mxu0 0
  %1148 = vmatprep.subr.bf16.mxu0 0
  %1149 = vmatpush1.bf16.msra.mxu0 0
  %1150 = vmatprep.subr.bf16.mxu0 0
  %1151 = vmatpush1.bf16.msra.mxu0 0
  %1152 = vmatprep.subr.bf16.mxu0 0
  %1153 = vmatpush1.bf16.msra.mxu0 0
  %1154 = vmatprep.subr.bf16.mxu0 0
  %1155 = vmatpush1.bf16.msra.mxu0 0
  %1156 = vmatprep.subr.bf16.mxu0 0
  %1157 = vmatpush1.bf16.msra.mxu0 0
  %1158 = vmatprep.subr.bf16.mxu0 0
  %1159 = vmatpush1.bf16.msra.mxu0 0
  %1160 = vmatprep.subr.bf16.mxu0 0
  %1161 = vmatpush1.bf16.msra.mxu0 0
  %1162 = vmatprep.subr.bf16.mxu0 0
  %1163 = vmatpush1.bf16.msra.mxu0 0
  %1164 = vmatprep.subr.bf16.mxu0 0
  %1165 = vmatpush1.bf16.msra.mxu0 0
  %1166 = vmatprep.subr.bf16.mxu0 0
  %1167 = vmatpush1.bf16.msra.mxu0 0
  %1168 = vmatprep.subr.bf16.mxu0 0
  %1169 = vmatpush1.bf16.msra.mxu0 0
  %1170 = vmatprep.mubr.bf16.mxu0 0
  %1171 = vmatmul.mubr.bf16.gmra.mrb[0].mxu0 %v1077
  %v1172 = vpop.f32.mrb[0].mxu0
  %v1173 = vadd.f32 0.0, %v1172
  %v1174 = vpop.f32.mrb[0].mxu0
  %v1175 = vadd.f32 0.0, %v1174
  %v1176 = vpop.f32.mrb[0].mxu0
  %v1177 = vpop.f32.mrb[0].mxu0
  %1178 = vdwg.mxu0
  %1179 = vmatprep.subr.bf16.mxu0 %v1095
  %1180 = vmatpush1.bf16.msra.mxu0 %v1092
  %1181 = vmatprep.subr.bf16.mxu0 0
  %1182 = vmatpush1.bf16.msra.mxu0 0
  %1183 = vmatprep.subr.bf16.mxu0 0
  %1184 = vmatpush1.bf16.msra.mxu0 0
  %1185 = vmatprep.subr.bf16.mxu0 0
  %1186 = vmatpush1.bf16.msra.mxu0 0
  %1187 = vmatprep.subr.bf16.mxu0 0
  %1188 = vmatpush1.bf16.msra.mxu0 0
  %1189 = vmatprep.subr.bf16.mxu0 0
  %1190 = vmatpush1.bf16.msra.mxu0 0
  %1191 = vmatprep.subr.bf16.mxu0 0
  %1192 = vmatpush1.bf16.msra.mxu0 0
  %1193 = vmatprep.subr.bf16.mxu0 0
  %1194 = vmatpush1.bf16.msra.mxu0 0
  %1195 = vmatprep.subr.bf16.mxu0 0
  %1196 = vmatpush1.bf16.msra.mxu0 0
  %1197 = vmatprep.subr.bf16.mxu0 0
  %1198 = vmatpush1.bf16.msra.mxu0 0
  %1199 = vmatprep.subr.bf16.mxu0 0
  %1200 = vmatpush1.bf16.msra.mxu0 0
  %1201 = vmatprep.subr.bf16.mxu0 0
  %1202 = vmatpush1.bf16.msra.mxu0 0
  %1203 = vmatprep.subr.bf16.mxu0 0
  %1204 = vmatpush1.bf16.msra.mxu0 0
  %1205 = vmatprep.subr.bf16.mxu0 0
  %1206 = vmatpush1.bf16.msra.mxu0 0
  %1207 = vmatprep.subr.bf16.mxu0 0
  %1208 = vmatpush1.bf16.msra.mxu0 0
  %1209 = vmatprep.subr.bf16.mxu0 0
  %1210 = vmatpush1.bf16.msra.mxu0 0
  %1211 = vmatprep.mubr.bf16.mxu0 0
  %1212 = vmatmul.mubr.bf16.gmra.mrb[0].mxu0 %v1077
  %v1213 = vpop.f32.mrb[0].mxu0
  %v1214 = vadd.f32 0.0, %v1213
  %v1215 = vpop.f32.mrb[0].mxu0
  %v1216 = vadd.f32 0.0, %v1215
  %v1217 = vpop.f32.mrb[0].mxu0
  %v1218 = vpop.f32.mrb[0].mxu0
  %1219 = vdwg.mxu0
  %v1220 = vadd.f32 %v1047, %v1132
  %v1221 = vadd.f32 %v1048, %v1134
  %v1222 = vadd.f32 %v1049, %v1173
  %v1223 = vadd.f32 %v1050, %v1175
  %v1224 = vadd.f32 %v1051, %v1214
  %v1225 = vadd.f32 %v1052, %v1216
  %s1226 = scalar_lea.vmem %s2, 28
  %v1227 = vld [vmem:[%s1226] sm:$0xf]
  %1228 = vrot.lane.b32.xlu0 %v32, 110
  %v1229 = vpop.permute.xlu0 %1228
  %1230 = vrot.lane.b32.xlu0 %v33, 110
  %v1231 = vpop.permute.xlu0 %1230
  %1232 = vrot.lane.b32.xlu0 %v34, 110
  %v1233 = vpop.permute.xlu0 %1232
  %1234 = vrot.lane.b32.xlu0 %v35, 110
  %v1235 = vpop.permute.xlu0 %1234
  %1236 = vrot.lane.b32.xlu0 %v36, 110
  %v1237 = vpop.permute.xlu0 %1236
  %1238 = vrot.lane.b32.xlu0 %v37, 110
  %v1239 = vpop.permute.xlu0 %1238
  %1240 = vrot.lane.b32.xlu0 %v38, 110
  %v1241 = vpop.permute.xlu0 %1240
  %vm1242 = vcmask 900096
  %v1243 = vsel %vm1242, %v1229, %v1231
  %v1244 = vsel %vm1242, %v1231, %v1233
  %v1245 = vsel %vm1242, %v1233, %v1235
  %v1246 = vsel %vm1242, %v1235, %v1237
  %v1247 = vsel %vm1242, %v1237, %v1239
  %v1248 = vsel %vm1242, %v1239, %v1241
  %v1250 = vsel %vm70, %v1227, 0
  %v1253 = vsel %vm74, %v1243, 0
  %v1256 = vsel %vm74, %v1244, 0
  %v1259 = vsel %vm74, %v1245, 0
  %v1262 = vsel %vm74, %v1246, 0
  %v1265 = vsel %vm74, %v1247, 0
  %v1268 = vsel %vm74, %v1248, 0
  %1270 = vmatprep.subr.bf16.mxu0 %v1256
  %1271 = vmatpush1.bf16.msra.mxu0 %v1253
  %1272 = vmatprep.subr.bf16.mxu0 0
  %1273 = vmatpush1.bf16.msra.mxu0 0
  %1274 = vmatprep.subr.bf16.mxu0 0
  %1275 = vmatpush1.bf16.msra.mxu0 0
  %1276 = vmatprep.subr.bf16.mxu0 0
  %1277 = vmatpush1.bf16.msra.mxu0 0
  %1278 = vmatprep.subr.bf16.mxu0 0
  %1279 = vmatpush1.bf16.msra.mxu0 0
  %1280 = vmatprep.subr.bf16.mxu0 0
  %1281 = vmatpush1.bf16.msra.mxu0 0
  %1282 = vmatprep.subr.bf16.mxu0 0
  %1283 = vmatpush1.bf16.msra.mxu0 0
  %1284 = vmatprep.subr.bf16.mxu0 0
  %1285 = vmatpush1.bf16.msra.mxu0 0
  %1286 = vmatprep.subr.bf16.mxu0 0
  %1287 = vmatpush1.bf16.msra.mxu0 0
  %1288 = vmatprep.subr.bf16.mxu0 0
  %1289 = vmatpush1.bf16.msra.mxu0 0
  %1290 = vmatprep.subr.bf16.mxu0 0
  %1291 = vmatpush1.bf16.msra.mxu0 0
  %1292 = vmatprep.subr.bf16.mxu0 0
  %1293 = vmatpush1.bf16.msra.mxu0 0
  %1294 = vmatprep.subr.bf16.mxu0 0
  %1295 = vmatpush1.bf16.msra.mxu0 0
  %1296 = vmatprep.subr.bf16.mxu0 0
  %1297 = vmatpush1.bf16.msra.mxu0 0
  %1298 = vmatprep.subr.bf16.mxu0 0
  %1299 = vmatpush1.bf16.msra.mxu0 0
  %1300 = vmatprep.subr.bf16.mxu0 0
  %1301 = vmatpush1.bf16.msra.mxu0 0
  %1302 = vmatprep.mubr.bf16.mxu0 0
  %1303 = vmatmul.mubr.bf16.gmra.mrb[0].mxu0 %v1250
  %v1304 = vpop.f32.mrb[0].mxu0
  %v1305 = vadd.f32 0.0, %v1304
  %v1306 = vpop.f32.mrb[0].mxu0
  %v1307 = vadd.f32 0.0, %v1306
  %v1308 = vpop.f32.mrb[0].mxu0
  %v1309 = vpop.f32.mrb[0].mxu0
  %1310 = vdwg.mxu0
  %1311 = vmatprep.subr.bf16.mxu0 %v1262
  %1312 = vmatpush1.bf16.msra.mxu0 %v1259
  %1313 = vmatprep.subr.bf16.mxu0 0
  %1314 = vmatpush1.bf16.msra.mxu0 0
  %1315 = vmatprep.subr.bf16.mxu0 0
  %1316 = vmatpush1.bf16.msra.mxu0 0
  %1317 = vmatprep.subr.bf16.mxu0 0
  %1318 = vmatpush1.bf16.msra.mxu0 0
  %1319 = vmatprep.subr.bf16.mxu0 0
  %1320 = vmatpush1.bf16.msra.mxu0 0
  %1321 = vmatprep.subr.bf16.mxu0 0
  %1322 = vmatpush1.bf16.msra.mxu0 0
  %1323 = vmatprep.subr.bf16.mxu0 0
  %1324 = vmatpush1.bf16.msra.mxu0 0
  %1325 = vmatprep.subr.bf16.mxu0 0
  %1326 = vmatpush1.bf16.msra.mxu0 0
  %1327 = vmatprep.subr.bf16.mxu0 0
  %1328 = vmatpush1.bf16.msra.mxu0 0
  %1329 = vmatprep.subr.bf16.mxu0 0
  %1330 = vmatpush1.bf16.msra.mxu0 0
  %1331 = vmatprep.subr.bf16.mxu0 0
  %1332 = vmatpush1.bf16.msra.mxu0 0
  %1333 = vmatprep.subr.bf16.mxu0 0
  %1334 = vmatpush1.bf16.msra.mxu0 0
  %1335 = vmatprep.subr.bf16.mxu0 0
  %1336 = vmatpush1.bf16.msra.mxu0 0
  %1337 = vmatprep.subr.bf16.mxu0 0
  %1338 = vmatpush1.bf16.msra.mxu0 0
  %1339 = vmatprep.subr.bf16.mxu0 0
  %1340 = vmatpush1.bf16.msra.mxu0 0
  %1341 = vmatprep.subr.bf16.mxu0 0
  %1342 = vmatpush1.bf16.msra.mxu0 0
  %1343 = vmatprep.mubr.bf16.mxu0 0
  %1344 = vmatmul.mubr.bf16.gmra.mrb[0].mxu0 %v1250
  %v1345 = vpop.f32.mrb[0].mxu0
  %v1346 = vadd.f32 0.0, %v1345
  %v1347 = vpop.f32.mrb[0].mxu0
  %v1348 = vadd.f32 0.0, %v1347
  %v1349 = vpop.f32.mrb[0].mxu0
  %v1350 = vpop.f32.mrb[0].mxu0
  %1351 = vdwg.mxu0
  %1352 = vmatprep.subr.bf16.mxu0 %v1268
  %1353 = vmatpush1.bf16.msra.mxu0 %v1265
  %1354 = vmatprep.subr.bf16.mxu0 0
  %1355 = vmatpush1.bf16.msra.mxu0 0
  %1356 = vmatprep.subr.bf16.mxu0 0
  %1357 = vmatpush1.bf16.msra.mxu0 0
  %1358 = vmatprep.subr.bf16.mxu0 0
  %1359 = vmatpush1.bf16.msra.mxu0 0
  %1360 = vmatprep.subr.bf16.mxu0 0
  %1361 = vmatpush1.bf16.msra.mxu0 0
  %1362 = vmatprep.subr.bf16.mxu0 0
  %1363 = vmatpush1.bf16.msra.mxu0 0
  %1364 = vmatprep.subr.bf16.mxu0 0
  %1365 = vmatpush1.bf16.msra.mxu0 0
  %1366 = vmatprep.subr.bf16.mxu0 0
  %1367 = vmatpush1.bf16.msra.mxu0 0
  %1368 = vmatprep.subr.bf16.mxu0 0
  %1369 = vmatpush1.bf16.msra.mxu0 0
  %1370 = vmatprep.subr.bf16.mxu0 0
  %1371 = vmatpush1.bf16.msra.mxu0 0
  %1372 = vmatprep.subr.bf16.mxu0 0
  %1373 = vmatpush1.bf16.msra.mxu0 0
  %1374 = vmatprep.subr.bf16.mxu0 0
  %1375 = vmatpush1.bf16.msra.mxu0 0
  %1376 = vmatprep.subr.bf16.mxu0 0
  %1377 = vmatpush1.bf16.msra.mxu0 0
  %1378 = vmatprep.subr.bf16.mxu0 0
  %1379 = vmatpush1.bf16.msra.mxu0 0
  %1380 = vmatprep.subr.bf16.mxu0 0
  %1381 = vmatpush1.bf16.msra.mxu0 0
  %1382 = vmatprep.subr.bf16.mxu0 0
  %1383 = vmatpush1.bf16.msra.mxu0 0
  %1384 = vmatprep.mubr.bf16.mxu0 0
  %1385 = vmatmul.mubr.bf16.gmra.mrb[0].mxu0 %v1250
  %v1386 = vpop.f32.mrb[0].mxu0
  %v1387 = vadd.f32 0.0, %v1386
  %v1388 = vpop.f32.mrb[0].mxu0
  %v1389 = vadd.f32 0.0, %v1388
  %v1390 = vpop.f32.mrb[0].mxu0
  %v1391 = vpop.f32.mrb[0].mxu0
  %1392 = vdwg.mxu0
  %v1393 = vadd.f32 %v1220, %v1305
  %v1394 = vadd.f32 %v1221, %v1307
  %v1395 = vadd.f32 %v1222, %v1346
  %v1396 = vadd.f32 %v1223, %v1348
  %v1397 = vadd.f32 %v1224, %v1387
  %v1398 = vadd.f32 %v1225, %v1389
  %s1399 = scalar_lea.vmem %s2, 32
  %v1400 = vld [vmem:[%s1399] sm:$0xf]
  %1401 = vrot.lane.b32.xlu0 %v32, 109
  %v1402 = vpop.permute.xlu0 %1401
  %1403 = vrot.lane.b32.xlu0 %v33, 109
  %v1404 = vpop.permute.xlu0 %1403
  %1405 = vrot.lane.b32.xlu0 %v34, 109
  %v1406 = vpop.permute.xlu0 %1405
  %1407 = vrot.lane.b32.xlu0 %v35, 109
  %v1408 = vpop.permute.xlu0 %1407
  %1409 = vrot.lane.b32.xlu0 %v36, 109
  %v1410 = vpop.permute.xlu0 %1409
  %1411 = vrot.lane.b32.xlu0 %v37, 109
  %v1412 = vpop.permute.xlu0 %1411
  %1413 = vrot.lane.b32.xlu0 %v38, 109
  %v1414 = vpop.permute.xlu0 %1413
  %vm1415 = vcmask 891904
  %v1416 = vsel %vm1415, %v1402, %v1404
  %v1417 = vsel %vm1415, %v1404, %v1406
  %v1418 = vsel %vm1415, %v1406, %v1408
  %v1419 = vsel %vm1415, %v1408, %v1410
  %v1420 = vsel %vm1415, %v1410, %v1412
  %v1421 = vsel %vm1415, %v1412, %v1414
  %v1423 = vsel %vm70, %v1400, 0
  %v1426 = vsel %vm74, %v1416, 0
  %v1429 = vsel %vm74, %v1417, 0
  %v1432 = vsel %vm74, %v1418, 0
  %v1435 = vsel %vm74, %v1419, 0
  %v1438 = vsel %vm74, %v1420, 0
  %v1441 = vsel %vm74, %v1421, 0
  %1443 = vmatprep.subr.bf16.mxu0 %v1429
  %1444 = vmatpush1.bf16.msra.mxu0 %v1426
  %1445 = vmatprep.subr.bf16.mxu0 0
  %1446 = vmatpush1.bf16.msra.mxu0 0
  %1447 = vmatprep.subr.bf16.mxu0 0
  %1448 = vmatpush1.bf16.msra.mxu0 0
  %1449 = vmatprep.subr.bf16.mxu0 0
  %1450 = vmatpush1.bf16.msra.mxu0 0
  %1451 = vmatprep.subr.bf16.mxu0 0
  %1452 = vmatpush1.bf16.msra.mxu0 0
  %1453 = vmatprep.subr.bf16.mxu0 0
  %1454 = vmatpush1.bf16.msra.mxu0 0
  %1455 = vmatprep.subr.bf16.mxu0 0
  %1456 = vmatpush1.bf16.msra.mxu0 0
  %1457 = vmatprep.subr.bf16.mxu0 0
  %1458 = vmatpush1.bf16.msra.mxu0 0
  %1459 = vmatprep.subr.bf16.mxu0 0
  %1460 = vmatpush1.bf16.msra.mxu0 0
  %1461 = vmatprep.subr.bf16.mxu0 0
  %1462 = vmatpush1.bf16.msra.mxu0 0
  %1463 = vmatprep.subr.bf16.mxu0 0
  %1464 = vmatpush1.bf16.msra.mxu0 0
  %1465 = vmatprep.subr.bf16.mxu0 0
  %1466 = vmatpush1.bf16.msra.mxu0 0
  %1467 = vmatprep.subr.bf16.mxu0 0
  %1468 = vmatpush1.bf16.msra.mxu0 0
  %1469 = vmatprep.subr.bf16.mxu0 0
  %1470 = vmatpush1.bf16.msra.mxu0 0
  %1471 = vmatprep.subr.bf16.mxu0 0
  %1472 = vmatpush1.bf16.msra.mxu0 0
  %1473 = vmatprep.subr.bf16.mxu0 0
  %1474 = vmatpush1.bf16.msra.mxu0 0
  %1475 = vmatprep.mubr.bf16.mxu0 0
  %1476 = vmatmul.mubr.bf16.gmra.mrb[0].mxu0 %v1423
  %v1477 = vpop.f32.mrb[0].mxu0
  %v1478 = vadd.f32 0.0, %v1477
  %v1479 = vpop.f32.mrb[0].mxu0
  %v1480 = vadd.f32 0.0, %v1479
  %v1481 = vpop.f32.mrb[0].mxu0
  %v1482 = vpop.f32.mrb[0].mxu0
  %1483 = vdwg.mxu0
  %1484 = vmatprep.subr.bf16.mxu0 %v1435
  %1485 = vmatpush1.bf16.msra.mxu0 %v1432
  %1486 = vmatprep.subr.bf16.mxu0 0
  %1487 = vmatpush1.bf16.msra.mxu0 0
  %1488 = vmatprep.subr.bf16.mxu0 0
  %1489 = vmatpush1.bf16.msra.mxu0 0
  %1490 = vmatprep.subr.bf16.mxu0 0
  %1491 = vmatpush1.bf16.msra.mxu0 0
  %1492 = vmatprep.subr.bf16.mxu0 0
  %1493 = vmatpush1.bf16.msra.mxu0 0
  %1494 = vmatprep.subr.bf16.mxu0 0
  %1495 = vmatpush1.bf16.msra.mxu0 0
  %1496 = vmatprep.subr.bf16.mxu0 0
  %1497 = vmatpush1.bf16.msra.mxu0 0
  %1498 = vmatprep.subr.bf16.mxu0 0
  %1499 = vmatpush1.bf16.msra.mxu0 0
  %1500 = vmatprep.subr.bf16.mxu0 0
  %1501 = vmatpush1.bf16.msra.mxu0 0
  %1502 = vmatprep.subr.bf16.mxu0 0
  %1503 = vmatpush1.bf16.msra.mxu0 0
  %1504 = vmatprep.subr.bf16.mxu0 0
  %1505 = vmatpush1.bf16.msra.mxu0 0
  %1506 = vmatprep.subr.bf16.mxu0 0
  %1507 = vmatpush1.bf16.msra.mxu0 0
  %1508 = vmatprep.subr.bf16.mxu0 0
  %1509 = vmatpush1.bf16.msra.mxu0 0
  %1510 = vmatprep.subr.bf16.mxu0 0
  %1511 = vmatpush1.bf16.msra.mxu0 0
  %1512 = vmatprep.subr.bf16.mxu0 0
  %1513 = vmatpush1.bf16.msra.mxu0 0
  %1514 = vmatprep.subr.bf16.mxu0 0
  %1515 = vmatpush1.bf16.msra.mxu0 0
  %1516 = vmatprep.mubr.bf16.mxu0 0
  %1517 = vmatmul.mubr.bf16.gmra.mrb[0].mxu0 %v1423
  %v1518 = vpop.f32.mrb[0].mxu0
  %v1519 = vadd.f32 0.0, %v1518
  %v1520 = vpop.f32.mrb[0].mxu0
  %v1521 = vadd.f32 0.0, %v1520
  %v1522 = vpop.f32.mrb[0].mxu0
  %v1523 = vpop.f32.mrb[0].mxu0
  %1524 = vdwg.mxu0
  %1525 = vmatprep.subr.bf16.mxu0 %v1441
  %1526 = vmatpush1.bf16.msra.mxu0 %v1438
  %1527 = vmatprep.subr.bf16.mxu0 0
  %1528 = vmatpush1.bf16.msra.mxu0 0
  %1529 = vmatprep.subr.bf16.mxu0 0
  %1530 = vmatpush1.bf16.msra.mxu0 0
  %1531 = vmatprep.subr.bf16.mxu0 0
  %1532 = vmatpush1.bf16.msra.mxu0 0
  %1533 = vmatprep.subr.bf16.mxu0 0
  %1534 = vmatpush1.bf16.msra.mxu0 0
  %1535 = vmatprep.subr.bf16.mxu0 0
  %1536 = vmatpush1.bf16.msra.mxu0 0
  %1537 = vmatprep.subr.bf16.mxu0 0
  %1538 = vmatpush1.bf16.msra.mxu0 0
  %1539 = vmatprep.subr.bf16.mxu0 0
  %1540 = vmatpush1.bf16.msra.mxu0 0
  %1541 = vmatprep.subr.bf16.mxu0 0
  %1542 = vmatpush1.bf16.msra.mxu0 0
  %1543 = vmatprep.subr.bf16.mxu0 0
  %1544 = vmatpush1.bf16.msra.mxu0 0
  %1545 = vmatprep.subr.bf16.mxu0 0
  %1546 = vmatpush1.bf16.msra.mxu0 0
  %1547 = vmatprep.subr.bf16.mxu0 0
  %1548 = vmatpush1.bf16.msra.mxu0 0
  %1549 = vmatprep.subr.bf16.mxu0 0
  %1550 = vmatpush1.bf16.msra.mxu0 0
  %1551 = vmatprep.subr.bf16.mxu0 0
  %1552 = vmatpush1.bf16.msra.mxu0 0
  %1553 = vmatprep.subr.bf16.mxu0 0
  %1554 = vmatpush1.bf16.msra.mxu0 0
  %1555 = vmatprep.subr.bf16.mxu0 0
  %1556 = vmatpush1.bf16.msra.mxu0 0
  %1557 = vmatprep.mubr.bf16.mxu0 0
  %1558 = vmatmul.mubr.bf16.gmra.mrb[0].mxu0 %v1423
  %v1559 = vpop.f32.mrb[0].mxu0
  %v1560 = vadd.f32 0.0, %v1559
  %v1561 = vpop.f32.mrb[0].mxu0
  %v1562 = vadd.f32 0.0, %v1561
  %v1563 = vpop.f32.mrb[0].mxu0
  %v1564 = vpop.f32.mrb[0].mxu0
  %1565 = vdwg.mxu0
  %v1566 = vadd.f32 %v1393, %v1478
  %v1567 = vadd.f32 %v1394, %v1480
  %v1568 = vadd.f32 %v1395, %v1519
  %v1569 = vadd.f32 %v1396, %v1521
  %v1570 = vadd.f32 %v1397, %v1560
  %v1571 = vadd.f32 %v1398, %v1562
  %v1573 = vlaneseq
  %v1574 = vshrl.u32 %v1573, 7
  %v1575 = vsub.s32 0, %v1574
  %v1576 = vrot.slane %v21, %v1575
  %v1577 = vlaneseq
  %v1578 = vshrl.u32 %v1577, 7
  %v1579 = vsub.s32 1, %v1578
  %v1580 = vrot.slane %v21, %v1579
  %v1581 = vlaneseq
  %v1582 = vshrl.u32 %v1581, 7
  %v1583 = vsub.s32 2, %v1582
  %v1584 = vrot.slane %v21, %v1583
  %v1585 = vlaneseq
  %v1586 = vshrl.u32 %v1585, 7
  %v1587 = vsub.s32 3, %v1586
  %v1588 = vrot.slane %v21, %v1587
  %v1589 = vlaneseq
  %v1590 = vshrl.u32 %v1589, 7
  %v1591 = vsub.s32 4, %v1590
  %v1592 = vrot.slane %v21, %v1591
  %v1593 = vlaneseq
  %v1594 = vshrl.u32 %v1593, 7
  %v1595 = vsub.s32 5, %v1594
  %v1596 = vrot.slane %v21, %v1595
  %v1603 = vmul.f32 %v1566, %v1576
  %v1604 = vmul.f32 %v1567, %v1580
  %v1605 = vmul.f32 %v1568, %v1584
  %v1606 = vmul.f32 %v1569, %v1588
  %v1607 = vmul.f32 %v1570, %v1592
  %v1608 = vmul.f32 %v1571, %v1596
  %v1609 = vadd.f32 %v1603, %v1604
  %v1610 = vadd.f32 %v1609, %v1605
  %v1611 = vadd.f32 %v1610, %v1606
  %v1612 = vadd.f32 %v1611, %v1607
  %v1613 = vadd.f32 %v1612, %v1608
  %1614 = vadd.xlane.f32.xlu0 %v1613
  %v1615 = vpop.xlane.xlu0 %1614
  %v1616 = vmul.f32 %v1615, 0.001953125
  %v1617 = vmul.f32 %v1603, %v1603
  %v1618 = vmul.f32 %v1604, %v1604
  %v1619 = vmul.f32 %v1605, %v1605
  %v1620 = vmul.f32 %v1606, %v1606
  %v1621 = vmul.f32 %v1607, %v1607
  %v1622 = vmul.f32 %v1608, %v1608
  %v1623 = vadd.f32 %v1617, %v1618
  %v1624 = vadd.f32 %v1623, %v1619
  %v1625 = vadd.f32 %v1624, %v1620
  %v1626 = vadd.f32 %v1625, %v1621
  %v1627 = vadd.f32 %v1626, %v1622
  %1628 = vadd.xlane.f32.xlu0 %v1627
  %v1629 = vpop.xlane.xlu0 %1628
  %v1630 = vmul.f32 %v1629, 0.001953125
  %v1631 = vmul.f32 %v1616, %v1616
  %v1632 = vsub.f32 %v1630, %v1631
  %v1633 = vmax.f32 %v1632, 0.0
  %v1634 = vadd.f32 %v1633, 1e-05
  %v1635 = vrsqrt.pop %v1634
  %v1636 = vmul.f32 %v22, %v1635
  %v1637 = vmul.f32 %v1616, %v1636
  %1639 = vrot.lane.b32.xlu0 %v1637, 1
  %v1640 = vpop.permute.xlu0 %1639
  %v1642 = vsub.f32 %v22, %v1640
  %1644 = vset.pattern.permute.xlu0 0
  %1645 = vperm.xlu0 %1644, %v1636
  %v1646 = vpop.permute.xlu0 %1645
  %v1648 = vmul.f32 %v1603, %v1646
  %v1649 = vmul.f32 %v1604, %v1646
  %v1650 = vmul.f32 %v1605, %v1646
  %v1651 = vmul.f32 %v1606, %v1646
  %v1652 = vmul.f32 %v1607, %v1646
  %v1653 = vmul.f32 %v1608, %v1646
  %1655 = vset.pattern.permute.xlu0 1
  %1656 = vperm.xlu0 %1655, %v1642
  %v1657 = vpop.permute.xlu0 %1656
  %v1659 = vadd.f32 %v1648, %v1657
  %v1660 = vadd.f32 %v1649, %v1657
  %v1661 = vadd.f32 %v1650, %v1657
  %v1662 = vadd.f32 %v1651, %v1657
  %v1663 = vadd.f32 %v1652, %v1657
  %v1664 = vadd.f32 %v1653, %v1657
  %vm1665 = vcmp.ge.f32.partialorder %v1659, 0.0
  %vm1666 = vcmp.ge.f32.partialorder %v1660, 0.0
  %vm1667 = vcmp.ge.f32.partialorder %v1661, 0.0
  %vm1668 = vcmp.ge.f32.partialorder %v1662, 0.0
  %vm1669 = vcmp.ge.f32.partialorder %v1663, 0.0
  %vm1670 = vcmp.ge.f32.partialorder %v1664, 0.0
  %1672 = vset.pattern.permute.xlu0 2
  %1673 = vperm.xlu0 %1672, %v22
  %v1674 = vpop.permute.xlu0 %1673
  %v1676 = vmul.f32 %v1674, %v1659
  %v1677 = vmul.f32 %v1674, %v1660
  %v1678 = vmul.f32 %v1674, %v1661
  %v1679 = vmul.f32 %v1674, %v1662
  %v1680 = vmul.f32 %v1674, %v1663
  %v1681 = vmul.f32 %v1674, %v1664
  %v1682 = vsel %vm1665, %v1659, %v1676
  %v1683 = vsel %vm1666, %v1660, %v1677
  %v1684 = vsel %vm1667, %v1661, %v1678
  %v1685 = vsel %vm1668, %v1662, %v1679
  %v1686 = vsel %vm1669, %v1663, %v1680
  %v1687 = vsel %vm1670, %v1664, %v1681
  %1688 = vst [vmem:[#allocation2] sm:$0xf] 0
  %1689 = vst [vmem:[#allocation2 + $0x1c] sm:$0xf] 0
  %v1690 = vmul.f32 %v1682, %v1576
  %v1691 = vmul.f32 %v1683, %v1580
  %v1692 = vmul.f32 %v1684, %v1584
  %v1693 = vmul.f32 %v1685, %v1588
  %v1694 = vmul.f32 %v1686, %v1592
  %v1695 = vmul.f32 %v1687, %v1596
  %v1696 = vpack.c.bf16 %v1690, %v1690
  %v1697 = vpack.c.bf16 %v1691, %v1691
  %v1698 = vpack.c.bf16 %v1692, %v1692
  %v1699 = vpack.c.bf16 %v1693, %v1693
  %v1700 = vpack.c.bf16 %v1694, %v1694
  %v1701 = vpack.c.bf16 %v1695, %v1695
  %v1708 = vunpack.c.l.b16 %v1696
  %v1709 = vunpack.c.l.b16 %v1697
  %v1710 = vunpack.c.l.b16 %v1698
  %v1711 = vunpack.c.l.b16 %v1699
  %v1712 = vunpack.c.l.b16 %v1700
  %v1713 = vunpack.c.l.b16 %v1701
  %v1714 = vpack.c.b16 %v1709, %v1708
  %v1715 = vpack.c.b16 %v1711, %v1710
  %v1716 = vpack.c.b16 %v1713, %v1712
  %1720 = vst [vmem:[#allocation2 + $0x4] sm:$0xff] %v1714
  %1721 = vst [vmem:[#allocation2 + $0xc] sm:$0xff] %v1715
  %1722 = vst [vmem:[#allocation2 + $0x14] sm:$0xff] %v1716
  %v1723 = vld [vmem:[%s3] sm:$0xf]
  %v1724 = vld [vmem:[#allocation2] sm:$0xff]
  %v1725 = vld [vmem:[#allocation2 + $0x8] sm:$0xff]
  %v1726 = vld [vmem:[#allocation2 + $0x10] sm:$0xff]
  %v1727 = vld [vmem:[#allocation2 + $0x18] sm:$0xf]
  %s1728 = scalar_lea.vmem %s3, 4
  %v1729 = vld [vmem:[%s1728] sm:$0xf]
  %v1734 = vunpack.c.l.b16 %v1724
  %v1735 = vunpack.c.h.b16 %v1724
  %v1736 = vunpack.c.l.b16 %v1725
  %v1737 = vunpack.c.h.b16 %v1725
  %v1738 = vunpack.c.l.b16 %v1726
  %v1739 = vunpack.c.h.b16 %v1726
  %v1740 = vunpack.c.l.b16 %v1727
  %v1741 = vpack.c.b16 %v1734, %v1734
  %v1742 = vpack.c.b16 %v1735, %v1735
  %v1743 = vpack.c.b16 %v1736, %v1736
  %v1744 = vpack.c.b16 %v1737, %v1737
  %v1745 = vpack.c.b16 %v1738, %v1738
  %v1746 = vpack.c.b16 %v1739, %v1739
  %v1747 = vpack.c.b16 %v1740, %v1740
  %1748 = vrot.lane.b32.xlu0 %v1741, 18
  %v1749 = vpop.permute.xlu0 %1748
  %1750 = vrot.lane.b32.xlu0 %v1742, 18
  %v1751 = vpop.permute.xlu0 %1750
  %1752 = vrot.lane.b32.xlu0 %v1743, 18
  %v1753 = vpop.permute.xlu0 %1752
  %1754 = vrot.lane.b32.xlu0 %v1744, 18
  %v1755 = vpop.permute.xlu0 %1754
  %1756 = vrot.lane.b32.xlu0 %v1745, 18
  %v1757 = vpop.permute.xlu0 %1756
  %1758 = vrot.lane.b32.xlu0 %v1746, 18
  %v1759 = vpop.permute.xlu0 %1758
  %1760 = vrot.lane.b32.xlu0 %v1747, 18
  %v1761 = vpop.permute.xlu0 %1760
  %v1762 = vsel %vm63, %v1749, %v1751
  %v1763 = vsel %vm63, %v1751, %v1753
  %v1764 = vsel %vm63, %v1753, %v1755
  %v1765 = vsel %vm63, %v1755, %v1757
  %v1766 = vsel %vm63, %v1757, %v1759
  %v1767 = vsel %vm63, %v1759, %v1761
  %v1769 = vsel %vm70, %v1729, 0
  %v1772 = vsel %vm74, %v1762, 0
  %v1775 = vsel %vm74, %v1763, 0
  %v1778 = vsel %vm74, %v1764, 0
  %v1781 = vsel %vm74, %v1765, 0
  %v1784 = vsel %vm74, %v1766, 0
  %v1787 = vsel %vm74, %v1767, 0
  %1789 = vmatprep.subr.bf16.mxu0 %v1775
  %1790 = vmatpush1.bf16.msra.mxu0 %v1772
  %1791 = vmatprep.subr.bf16.mxu0 0
  %1792 = vmatpush1.bf16.msra.mxu0 0
  %1793 = vmatprep.subr.bf16.mxu0 0
  %1794 = vmatpush1.bf16.msra.mxu0 0
  %1795 = vmatprep.subr.bf16.mxu0 0
  %1796 = vmatpush1.bf16.msra.mxu0 0
  %1797 = vmatprep.subr.bf16.mxu0 0
  %1798 = vmatpush1.bf16.msra.mxu0 0
  %1799 = vmatprep.subr.bf16.mxu0 0
  %1800 = vmatpush1.bf16.msra.mxu0 0
  %1801 = vmatprep.subr.bf16.mxu0 0
  %1802 = vmatpush1.bf16.msra.mxu0 0
  %1803 = vmatprep.subr.bf16.mxu0 0
  %1804 = vmatpush1.bf16.msra.mxu0 0
  %1805 = vmatprep.subr.bf16.mxu0 0
  %1806 = vmatpush1.bf16.msra.mxu0 0
  %1807 = vmatprep.subr.bf16.mxu0 0
  %1808 = vmatpush1.bf16.msra.mxu0 0
  %1809 = vmatprep.subr.bf16.mxu0 0
  %1810 = vmatpush1.bf16.msra.mxu0 0
  %1811 = vmatprep.subr.bf16.mxu0 0
  %1812 = vmatpush1.bf16.msra.mxu0 0
  %1813 = vmatprep.subr.bf16.mxu0 0
  %1814 = vmatpush1.bf16.msra.mxu0 0
  %1815 = vmatprep.subr.bf16.mxu0 0
  %1816 = vmatpush1.bf16.msra.mxu0 0
  %1817 = vmatprep.subr.bf16.mxu0 0
  %1818 = vmatpush1.bf16.msra.mxu0 0
  %1819 = vmatprep.subr.bf16.mxu0 0
  %1820 = vmatpush1.bf16.msra.mxu0 0
  %1821 = vmatprep.mubr.bf16.mxu0 0
  %1822 = vmatmul.mubr.bf16.gmra.mrb[0].mxu0 %v1769
  %v1823 = vpop.f32.mrb[0].mxu0
  %v1824 = vadd.f32 0.0, %v1823
  %v1825 = vpop.f32.mrb[0].mxu0
  %v1826 = vadd.f32 0.0, %v1825
  %v1827 = vpop.f32.mrb[0].mxu0
  %v1828 = vpop.f32.mrb[0].mxu0
  %1829 = vdwg.mxu0
  %1830 = vmatprep.subr.bf16.mxu0 %v1781
  %1831 = vmatpush1.bf16.msra.mxu0 %v1778
  %1832 = vmatprep.subr.bf16.mxu0 0
  %1833 = vmatpush1.bf16.msra.mxu0 0
  %1834 = vmatprep.subr.bf16.mxu0 0
  %1835 = vmatpush1.bf16.msra.mxu0 0
  %1836 = vmatprep.subr.bf16.mxu0 0
  %1837 = vmatpush1.bf16.msra.mxu0 0
  %1838 = vmatprep.subr.bf16.mxu0 0
  %1839 = vmatpush1.bf16.msra.mxu0 0
  %1840 = vmatprep.subr.bf16.mxu0 0
  %1841 = vmatpush1.bf16.msra.mxu0 0
  %1842 = vmatprep.subr.bf16.mxu0 0
  %1843 = vmatpush1.bf16.msra.mxu0 0
  %1844 = vmatprep.subr.bf16.mxu0 0
  %1845 = vmatpush1.bf16.msra.mxu0 0
  %1846 = vmatprep.subr.bf16.mxu0 0
  %1847 = vmatpush1.bf16.msra.mxu0 0
  %1848 = vmatprep.subr.bf16.mxu0 0
  %1849 = vmatpush1.bf16.msra.mxu0 0
  %1850 = vmatprep.subr.bf16.mxu0 0
  %1851 = vmatpush1.bf16.msra.mxu0 0
  %1852 = vmatprep.subr.bf16.mxu0 0
  %1853 = vmatpush1.bf16.msra.mxu0 0
  %1854 = vmatprep.subr.bf16.mxu0 0
  %1855 = vmatpush1.bf16.msra.mxu0 0
  %1856 = vmatprep.subr.bf16.mxu0 0
  %1857 = vmatpush1.bf16.msra.mxu0 0
  %1858 = vmatprep.subr.bf16.mxu0 0
  %1859 = vmatpush1.bf16.msra.mxu0 0
  %1860 = vmatprep.subr.bf16.mxu0 0
  %1861 = vmatpush1.bf16.msra.mxu0 0
  %1862 = vmatprep.mubr.bf16.mxu0 0
  %1863 = vmatmul.mubr.bf16.gmra.mrb[0].mxu0 %v1769
  %v1864 = vpop.f32.mrb[0].mxu0
  %v1865 = vadd.f32 0.0, %v1864
  %v1866 = vpop.f32.mrb[0].mxu0
  %v1867 = vadd.f32 0.0, %v1866
  %v1868 = vpop.f32.mrb[0].mxu0
  %v1869 = vpop.f32.mrb[0].mxu0
  %1870 = vdwg.mxu0
  %1871 = vmatprep.subr.bf16.mxu0 %v1787
  %1872 = vmatpush1.bf16.msra.mxu0 %v1784
  %1873 = vmatprep.subr.bf16.mxu0 0
  %1874 = vmatpush1.bf16.msra.mxu0 0
  %1875 = vmatprep.subr.bf16.mxu0 0
  %1876 = vmatpush1.bf16.msra.mxu0 0
  %1877 = vmatprep.subr.bf16.mxu0 0
  %1878 = vmatpush1.bf16.msra.mxu0 0
  %1879 = vmatprep.subr.bf16.mxu0 0
  %1880 = vmatpush1.bf16.msra.mxu0 0
  %1881 = vmatprep.subr.bf16.mxu0 0
  %1882 = vmatpush1.bf16.msra.mxu0 0
  %1883 = vmatprep.subr.bf16.mxu0 0
  %1884 = vmatpush1.bf16.msra.mxu0 0
  %1885 = vmatprep.subr.bf16.mxu0 0
  %1886 = vmatpush1.bf16.msra.mxu0 0
  %1887 = vmatprep.subr.bf16.mxu0 0
  %1888 = vmatpush1.bf16.msra.mxu0 0
  %1889 = vmatprep.subr.bf16.mxu0 0
  %1890 = vmatpush1.bf16.msra.mxu0 0
  %1891 = vmatprep.subr.bf16.mxu0 0
  %1892 = vmatpush1.bf16.msra.mxu0 0
  %1893 = vmatprep.subr.bf16.mxu0 0
  %1894 = vmatpush1.bf16.msra.mxu0 0
  %1895 = vmatprep.subr.bf16.mxu0 0
  %1896 = vmatpush1.bf16.msra.mxu0 0
  %1897 = vmatprep.subr.bf16.mxu0 0
  %1898 = vmatpush1.bf16.msra.mxu0 0
  %1899 = vmatprep.subr.bf16.mxu0 0
  %1900 = vmatpush1.bf16.msra.mxu0 0
  %1901 = vmatprep.subr.bf16.mxu0 0
  %1902 = vmatpush1.bf16.msra.mxu0 0
  %1903 = vmatprep.mubr.bf16.mxu0 0
  %1904 = vmatmul.mubr.bf16.gmra.mrb[0].mxu0 %v1769
  %v1905 = vpop.f32.mrb[0].mxu0
  %v1906 = vadd.f32 0.0, %v1905
  %v1907 = vpop.f32.mrb[0].mxu0
  %v1908 = vadd.f32 0.0, %v1907
  %v1909 = vpop.f32.mrb[0].mxu0
  %v1910 = vpop.f32.mrb[0].mxu0
  %1911 = vdwg.mxu0
  %1912 = vrot.lane.b32.xlu0 %v1741, 19
  %v1913 = vpop.permute.xlu0 %1912
  %1914 = vrot.lane.b32.xlu0 %v1742, 19
  %v1915 = vpop.permute.xlu0 %1914
  %1916 = vrot.lane.b32.xlu0 %v1743, 19
  %v1917 = vpop.permute.xlu0 %1916
  %1918 = vrot.lane.b32.xlu0 %v1744, 19
  %v1919 = vpop.permute.xlu0 %1918
  %1920 = vrot.lane.b32.xlu0 %v1745, 19
  %v1921 = vpop.permute.xlu0 %1920
  %1922 = vrot.lane.b32.xlu0 %v1746, 19
  %v1923 = vpop.permute.xlu0 %1922
  %1924 = vrot.lane.b32.xlu0 %v1747, 19
  %v1925 = vpop.permute.xlu0 %1924
  %v1926 = vsel %vm230, %v1913, %v1915
  %v1927 = vsel %vm230, %v1915, %v1917
  %v1928 = vsel %vm230, %v1917, %v1919
  %v1929 = vsel %vm230, %v1919, %v1921
  %v1930 = vsel %vm230, %v1921, %v1923
  %v1931 = vsel %vm230, %v1923, %v1925
  %v1933 = vsel %vm70, %v1723, 0
  %v1936 = vsel %vm74, %v1926, 0
  %v1939 = vsel %vm74, %v1927, 0
  %v1942 = vsel %vm74, %v1928, 0
  %v1945 = vsel %vm74, %v1929, 0
  %v1948 = vsel %vm74, %v1930, 0
  %v1951 = vsel %vm74, %v1931, 0
  %1953 = vmatprep.subr.bf16.mxu0 %v1939
  %1954 = vmatpush1.bf16.msra.mxu0 %v1936
  %1955 = vmatprep.subr.bf16.mxu0 0
  %1956 = vmatpush1.bf16.msra.mxu0 0
  %1957 = vmatprep.subr.bf16.mxu0 0
  %1958 = vmatpush1.bf16.msra.mxu0 0
  %1959 = vmatprep.subr.bf16.mxu0 0
  %1960 = vmatpush1.bf16.msra.mxu0 0
  %1961 = vmatprep.subr.bf16.mxu0 0
  %1962 = vmatpush1.bf16.msra.mxu0 0
  %1963 = vmatprep.subr.bf16.mxu0 0
  %1964 = vmatpush1.bf16.msra.mxu0 0
  %1965 = vmatprep.subr.bf16.mxu0 0
  %1966 = vmatpush1.bf16.msra.mxu0 0
  %1967 = vmatprep.subr.bf16.mxu0 0
  %1968 = vmatpush1.bf16.msra.mxu0 0
  %1969 = vmatprep.subr.bf16.mxu0 0
  %1970 = vmatpush1.bf16.msra.mxu0 0
  %1971 = vmatprep.subr.bf16.mxu0 0
  %1972 = vmatpush1.bf16.msra.mxu0 0
  %1973 = vmatprep.subr.bf16.mxu0 0
  %1974 = vmatpush1.bf16.msra.mxu0 0
  %1975 = vmatprep.subr.bf16.mxu0 0
  %1976 = vmatpush1.bf16.msra.mxu0 0
  %1977 = vmatprep.subr.bf16.mxu0 0
  %1978 = vmatpush1.bf16.msra.mxu0 0
  %1979 = vmatprep.subr.bf16.mxu0 0
  %1980 = vmatpush1.bf16.msra.mxu0 0
  %1981 = vmatprep.subr.bf16.mxu0 0
  %1982 = vmatpush1.bf16.msra.mxu0 0
  %1983 = vmatprep.subr.bf16.mxu0 0
  %1984 = vmatpush1.bf16.msra.mxu0 0
  %1985 = vmatprep.mubr.bf16.mxu0 0
  %1986 = vmatmul.mubr.bf16.gmra.mrb[0].mxu0 %v1933
  %v1987 = vpop.f32.mrb[0].mxu0
  %v1988 = vadd.f32 %v1824, %v1987
  %v1989 = vpop.f32.mrb[0].mxu0
  %v1990 = vadd.f32 %v1826, %v1989
  %v1991 = vpop.f32.mrb[0].mxu0
  %v1992 = vpop.f32.mrb[0].mxu0
  %1993 = vdwg.mxu0
  %1994 = vmatprep.subr.bf16.mxu0 %v1945
  %1995 = vmatpush1.bf16.msra.mxu0 %v1942
  %1996 = vmatprep.subr.bf16.mxu0 0
  %1997 = vmatpush1.bf16.msra.mxu0 0
  %1998 = vmatprep.subr.bf16.mxu0 0
  %1999 = vmatpush1.bf16.msra.mxu0 0
  %2000 = vmatprep.subr.bf16.mxu0 0
  %2001 = vmatpush1.bf16.msra.mxu0 0
  %2002 = vmatprep.subr.bf16.mxu0 0
  %2003 = vmatpush1.bf16.msra.mxu0 0
  %2004 = vmatprep.subr.bf16.mxu0 0
  %2005 = vmatpush1.bf16.msra.mxu0 0
  %2006 = vmatprep.subr.bf16.mxu0 0
  %2007 = vmatpush1.bf16.msra.mxu0 0
  %2008 = vmatprep.subr.bf16.mxu0 0
  %2009 = vmatpush1.bf16.msra.mxu0 0
  %2010 = vmatprep.subr.bf16.mxu0 0
  %2011 = vmatpush1.bf16.msra.mxu0 0
  %2012 = vmatprep.subr.bf16.mxu0 0
  %2013 = vmatpush1.bf16.msra.mxu0 0
  %2014 = vmatprep.subr.bf16.mxu0 0
  %2015 = vmatpush1.bf16.msra.mxu0 0
  %2016 = vmatprep.subr.bf16.mxu0 0
  %2017 = vmatpush1.bf16.msra.mxu0 0
  %2018 = vmatprep.subr.bf16.mxu0 0
  %2019 = vmatpush1.bf16.msra.mxu0 0
  %2020 = vmatprep.subr.bf16.mxu0 0
  %2021 = vmatpush1.bf16.msra.mxu0 0
  %2022 = vmatprep.subr.bf16.mxu0 0
  %2023 = vmatpush1.bf16.msra.mxu0 0
  %2024 = vmatprep.subr.bf16.mxu0 0
  %2025 = vmatpush1.bf16.msra.mxu0 0
  %2026 = vmatprep.mubr.bf16.mxu0 0
  %2027 = vmatmul.mubr.bf16.gmra.mrb[0].mxu0 %v1933
  %v2028 = vpop.f32.mrb[0].mxu0
  %v2029 = vadd.f32 %v1865, %v2028
  %v2030 = vpop.f32.mrb[0].mxu0
  %v2031 = vadd.f32 %v1867, %v2030
  %v2032 = vpop.f32.mrb[0].mxu0
  %v2033 = vpop.f32.mrb[0].mxu0
  %2034 = vdwg.mxu0
  %2035 = vmatprep.subr.bf16.mxu0 %v1951
  %2036 = vmatpush1.bf16.msra.mxu0 %v1948
  %2037 = vmatprep.subr.bf16.mxu0 0
  %2038 = vmatpush1.bf16.msra.mxu0 0
  %2039 = vmatprep.subr.bf16.mxu0 0
  %2040 = vmatpush1.bf16.msra.mxu0 0
  %2041 = vmatprep.subr.bf16.mxu0 0
  %2042 = vmatpush1.bf16.msra.mxu0 0
  %2043 = vmatprep.subr.bf16.mxu0 0
  %2044 = vmatpush1.bf16.msra.mxu0 0
  %2045 = vmatprep.subr.bf16.mxu0 0
  %2046 = vmatpush1.bf16.msra.mxu0 0
  %2047 = vmatprep.subr.bf16.mxu0 0
  %2048 = vmatpush1.bf16.msra.mxu0 0
  %2049 = vmatprep.subr.bf16.mxu0 0
  %2050 = vmatpush1.bf16.msra.mxu0 0
  %2051 = vmatprep.subr.bf16.mxu0 0
  %2052 = vmatpush1.bf16.msra.mxu0 0
  %2053 = vmatprep.subr.bf16.mxu0 0
  %2054 = vmatpush1.bf16.msra.mxu0 0
  %2055 = vmatprep.subr.bf16.mxu0 0
  %2056 = vmatpush1.bf16.msra.mxu0 0
  %2057 = vmatprep.subr.bf16.mxu0 0
  %2058 = vmatpush1.bf16.msra.mxu0 0
  %2059 = vmatprep.subr.bf16.mxu0 0
  %2060 = vmatpush1.bf16.msra.mxu0 0
  %2061 = vmatprep.subr.bf16.mxu0 0
  %2062 = vmatpush1.bf16.msra.mxu0 0
  %2063 = vmatprep.subr.bf16.mxu0 0
  %2064 = vmatpush1.bf16.msra.mxu0 0
  %2065 = vmatprep.subr.bf16.mxu0 0
  %2066 = vmatpush1.bf16.msra.mxu0 0
  %2067 = vmatprep.mubr.bf16.mxu0 0
  %2068 = vmatmul.mubr.bf16.gmra.mrb[0].mxu0 %v1933
  %v2069 = vpop.f32.mrb[0].mxu0
  %v2070 = vadd.f32 %v1906, %v2069
  %v2071 = vpop.f32.mrb[0].mxu0
  %v2072 = vadd.f32 %v1908, %v2071
  %v2073 = vpop.f32.mrb[0].mxu0
  %v2074 = vpop.f32.mrb[0].mxu0
  %2075 = vdwg.mxu0
  %s2076 = scalar_lea.vmem %s3, 8
  %v2077 = vld [vmem:[%s2076] sm:$0xf]
  %2078 = vrot.lane.b32.xlu0 %v1741, 17
  %v2079 = vpop.permute.xlu0 %2078
  %2080 = vrot.lane.b32.xlu0 %v1742, 17
  %v2081 = vpop.permute.xlu0 %2080
  %2082 = vrot.lane.b32.xlu0 %v1743, 17
  %v2083 = vpop.permute.xlu0 %2082
  %2084 = vrot.lane.b32.xlu0 %v1744, 17
  %v2085 = vpop.permute.xlu0 %2084
  %2086 = vrot.lane.b32.xlu0 %v1745, 17
  %v2087 = vpop.permute.xlu0 %2086
  %2088 = vrot.lane.b32.xlu0 %v1746, 17
  %v2089 = vpop.permute.xlu0 %2088
  %2090 = vrot.lane.b32.xlu0 %v1747, 17
  %v2091 = vpop.permute.xlu0 %2090
  %v2092 = vsel %vm397, %v2079, %v2081
  %v2093 = vsel %vm397, %v2081, %v2083
  %v2094 = vsel %vm397, %v2083, %v2085
  %v2095 = vsel %vm397, %v2085, %v2087
  %v2096 = vsel %vm397, %v2087, %v2089
  %v2097 = vsel %vm397, %v2089, %v2091
  %v2099 = vsel %vm70, %v2077, 0
  %v2102 = vsel %vm74, %v2092, 0
  %v2105 = vsel %vm74, %v2093, 0
  %v2108 = vsel %vm74, %v2094, 0
  %v2111 = vsel %vm74, %v2095, 0
  %v2114 = vsel %vm74, %v2096, 0
  %v2117 = vsel %vm74, %v2097, 0
  %2119 = vmatprep.subr.bf16.mxu0 %v2105
  %2120 = vmatpush1.bf16.msra.mxu0 %v2102
  %2121 = vmatprep.subr.bf16.mxu0 0
  %2122 = vmatpush1.bf16.msra.mxu0 0
  %2123 = vmatprep.subr.bf16.mxu0 0
  %2124 = vmatpush1.bf16.msra.mxu0 0
  %2125 = vmatprep.subr.bf16.mxu0 0
  %2126 = vmatpush1.bf16.msra.mxu0 0
  %2127 = vmatprep.subr.bf16.mxu0 0
  %2128 = vmatpush1.bf16.msra.mxu0 0
  %2129 = vmatprep.subr.bf16.mxu0 0
  %2130 = vmatpush1.bf16.msra.mxu0 0
  %2131 = vmatprep.subr.bf16.mxu0 0
  %2132 = vmatpush1.bf16.msra.mxu0 0
  %2133 = vmatprep.subr.bf16.mxu0 0
  %2134 = vmatpush1.bf16.msra.mxu0 0
  %2135 = vmatprep.subr.bf16.mxu0 0
  %2136 = vmatpush1.bf16.msra.mxu0 0
  %2137 = vmatprep.subr.bf16.mxu0 0
  %2138 = vmatpush1.bf16.msra.mxu0 0
  %2139 = vmatprep.subr.bf16.mxu0 0
  %2140 = vmatpush1.bf16.msra.mxu0 0
  %2141 = vmatprep.subr.bf16.mxu0 0
  %2142 = vmatpush1.bf16.msra.mxu0 0
  %2143 = vmatprep.subr.bf16.mxu0 0
  %2144 = vmatpush1.bf16.msra.mxu0 0
  %2145 = vmatprep.subr.bf16.mxu0 0
  %2146 = vmatpush1.bf16.msra.mxu0 0
  %2147 = vmatprep.subr.bf16.mxu0 0
  %2148 = vmatpush1.bf16.msra.mxu0 0
  %2149 = vmatprep.subr.bf16.mxu0 0
  %2150 = vmatpush1.bf16.msra.mxu0 0
  %2151 = vmatprep.mubr.bf16.mxu0 0
  %2152 = vmatmul.mubr.bf16.gmra.mrb[0].mxu0 %v2099
  %v2153 = vpop.f32.mrb[0].mxu0
  %v2154 = vadd.f32 0.0, %v2153
  %v2155 = vpop.f32.mrb[0].mxu0
  %v2156 = vadd.f32 0.0, %v2155
  %v2157 = vpop.f32.mrb[0].mxu0
  %v2158 = vpop.f32.mrb[0].mxu0
  %2159 = vdwg.mxu0
  %2160 = vmatprep.subr.bf16.mxu0 %v2111
  %2161 = vmatpush1.bf16.msra.mxu0 %v2108
  %2162 = vmatprep.subr.bf16.mxu0 0
  %2163 = vmatpush1.bf16.msra.mxu0 0
  %2164 = vmatprep.subr.bf16.mxu0 0
  %2165 = vmatpush1.bf16.msra.mxu0 0
  %2166 = vmatprep.subr.bf16.mxu0 0
  %2167 = vmatpush1.bf16.msra.mxu0 0
  %2168 = vmatprep.subr.bf16.mxu0 0
  %2169 = vmatpush1.bf16.msra.mxu0 0
  %2170 = vmatprep.subr.bf16.mxu0 0
  %2171 = vmatpush1.bf16.msra.mxu0 0
  %2172 = vmatprep.subr.bf16.mxu0 0
  %2173 = vmatpush1.bf16.msra.mxu0 0
  %2174 = vmatprep.subr.bf16.mxu0 0
  %2175 = vmatpush1.bf16.msra.mxu0 0
  %2176 = vmatprep.subr.bf16.mxu0 0
  %2177 = vmatpush1.bf16.msra.mxu0 0
  %2178 = vmatprep.subr.bf16.mxu0 0
  %2179 = vmatpush1.bf16.msra.mxu0 0
  %2180 = vmatprep.subr.bf16.mxu0 0
  %2181 = vmatpush1.bf16.msra.mxu0 0
  %2182 = vmatprep.subr.bf16.mxu0 0
  %2183 = vmatpush1.bf16.msra.mxu0 0
  %2184 = vmatprep.subr.bf16.mxu0 0
  %2185 = vmatpush1.bf16.msra.mxu0 0
  %2186 = vmatprep.subr.bf16.mxu0 0
  %2187 = vmatpush1.bf16.msra.mxu0 0
  %2188 = vmatprep.subr.bf16.mxu0 0
  %2189 = vmatpush1.bf16.msra.mxu0 0
  %2190 = vmatprep.subr.bf16.mxu0 0
  %2191 = vmatpush1.bf16.msra.mxu0 0
  %2192 = vmatprep.mubr.bf16.mxu0 0
  %2193 = vmatmul.mubr.bf16.gmra.mrb[0].mxu0 %v2099
  %v2194 = vpop.f32.mrb[0].mxu0
  %v2195 = vadd.f32 0.0, %v2194
  %v2196 = vpop.f32.mrb[0].mxu0
  %v2197 = vadd.f32 0.0, %v2196
  %v2198 = vpop.f32.mrb[0].mxu0
  %v2199 = vpop.f32.mrb[0].mxu0
  %2200 = vdwg.mxu0
  %2201 = vmatprep.subr.bf16.mxu0 %v2117
  %2202 = vmatpush1.bf16.msra.mxu0 %v2114
  %2203 = vmatprep.subr.bf16.mxu0 0
  %2204 = vmatpush1.bf16.msra.mxu0 0
  %2205 = vmatprep.subr.bf16.mxu0 0
  %2206 = vmatpush1.bf16.msra.mxu0 0
  %2207 = vmatprep.subr.bf16.mxu0 0
  %2208 = vmatpush1.bf16.msra.mxu0 0
  %2209 = vmatprep.subr.bf16.mxu0 0
  %2210 = vmatpush1.bf16.msra.mxu0 0
  %2211 = vmatprep.subr.bf16.mxu0 0
  %2212 = vmatpush1.bf16.msra.mxu0 0
  %2213 = vmatprep.subr.bf16.mxu0 0
  %2214 = vmatpush1.bf16.msra.mxu0 0
  %2215 = vmatprep.subr.bf16.mxu0 0
  %2216 = vmatpush1.bf16.msra.mxu0 0
  %2217 = vmatprep.subr.bf16.mxu0 0
  %2218 = vmatpush1.bf16.msra.mxu0 0
  %2219 = vmatprep.subr.bf16.mxu0 0
  %2220 = vmatpush1.bf16.msra.mxu0 0
  %2221 = vmatprep.subr.bf16.mxu0 0
  %2222 = vmatpush1.bf16.msra.mxu0 0
  %2223 = vmatprep.subr.bf16.mxu0 0
  %2224 = vmatpush1.bf16.msra.mxu0 0
  %2225 = vmatprep.subr.bf16.mxu0 0
  %2226 = vmatpush1.bf16.msra.mxu0 0
  %2227 = vmatprep.subr.bf16.mxu0 0
  %2228 = vmatpush1.bf16.msra.mxu0 0
  %2229 = vmatprep.subr.bf16.mxu0 0
  %2230 = vmatpush1.bf16.msra.mxu0 0
  %2231 = vmatprep.subr.bf16.mxu0 0
  %2232 = vmatpush1.bf16.msra.mxu0 0
  %2233 = vmatprep.mubr.bf16.mxu0 0
  %2234 = vmatmul.mubr.bf16.gmra.mrb[0].mxu0 %v2099
  %v2235 = vpop.f32.mrb[0].mxu0
  %v2236 = vadd.f32 0.0, %v2235
  %v2237 = vpop.f32.mrb[0].mxu0
  %v2238 = vadd.f32 0.0, %v2237
  %v2239 = vpop.f32.mrb[0].mxu0
  %v2240 = vpop.f32.mrb[0].mxu0
  %2241 = vdwg.mxu0
  %v2242 = vadd.f32 %v1988, %v2154
  %v2243 = vadd.f32 %v1990, %v2156
  %v2244 = vadd.f32 %v2029, %v2195
  %v2245 = vadd.f32 %v2031, %v2197
  %v2246 = vadd.f32 %v2070, %v2236
  %v2247 = vadd.f32 %v2072, %v2238
  %s2248 = scalar_lea.vmem %s3, 12
  %v2249 = vld [vmem:[%s2248] sm:$0xf]
  %2250 = vrot.lane.b32.xlu0 %v1741, 1
  %v2251 = vpop.permute.xlu0 %2250
  %2252 = vrot.lane.b32.xlu0 %v1742, 1
  %v2253 = vpop.permute.xlu0 %2252
  %2254 = vrot.lane.b32.xlu0 %v1743, 1
  %v2255 = vpop.permute.xlu0 %2254
  %2256 = vrot.lane.b32.xlu0 %v1744, 1
  %v2257 = vpop.permute.xlu0 %2256
  %2258 = vrot.lane.b32.xlu0 %v1745, 1
  %v2259 = vpop.permute.xlu0 %2258
  %2260 = vrot.lane.b32.xlu0 %v1746, 1
  %v2261 = vpop.permute.xlu0 %2260
  %2262 = vrot.lane.b32.xlu0 %v1747, 1
  %v2263 = vpop.permute.xlu0 %2262
  %v2264 = vsel %vm570, %v2251, %v2253
  %v2265 = vsel %vm570, %v2253, %v2255
  %v2266 = vsel %vm570, %v2255, %v2257
  %v2267 = vsel %vm570, %v2257, %v2259
  %v2268 = vsel %vm570, %v2259, %v2261
  %v2269 = vsel %vm570, %v2261, %v2263
  %v2271 = vsel %vm70, %v2249, 0
  %v2274 = vsel %vm74, %v2264, 0
  %v2277 = vsel %vm74, %v2265, 0
  %v2280 = vsel %vm74, %v2266, 0
  %v2283 = vsel %vm74, %v2267, 0
  %v2286 = vsel %vm74, %v2268, 0
  %v2289 = vsel %vm74, %v2269, 0
  %2291 = vmatprep.subr.bf16.mxu0 %v2277
  %2292 = vmatpush1.bf16.msra.mxu0 %v2274
  %2293 = vmatprep.subr.bf16.mxu0 0
  %2294 = vmatpush1.bf16.msra.mxu0 0
  %2295 = vmatprep.subr.bf16.mxu0 0
  %2296 = vmatpush1.bf16.msra.mxu0 0
  %2297 = vmatprep.subr.bf16.mxu0 0
  %2298 = vmatpush1.bf16.msra.mxu0 0
  %2299 = vmatprep.subr.bf16.mxu0 0
  %2300 = vmatpush1.bf16.msra.mxu0 0
  %2301 = vmatprep.subr.bf16.mxu0 0
  %2302 = vmatpush1.bf16.msra.mxu0 0
  %2303 = vmatprep.subr.bf16.mxu0 0
  %2304 = vmatpush1.bf16.msra.mxu0 0
  %2305 = vmatprep.subr.bf16.mxu0 0
  %2306 = vmatpush1.bf16.msra.mxu0 0
  %2307 = vmatprep.subr.bf16.mxu0 0
  %2308 = vmatpush1.bf16.msra.mxu0 0
  %2309 = vmatprep.subr.bf16.mxu0 0
  %2310 = vmatpush1.bf16.msra.mxu0 0
  %2311 = vmatprep.subr.bf16.mxu0 0
  %2312 = vmatpush1.bf16.msra.mxu0 0
  %2313 = vmatprep.subr.bf16.mxu0 0
  %2314 = vmatpush1.bf16.msra.mxu0 0
  %2315 = vmatprep.subr.bf16.mxu0 0
  %2316 = vmatpush1.bf16.msra.mxu0 0
  %2317 = vmatprep.subr.bf16.mxu0 0
  %2318 = vmatpush1.bf16.msra.mxu0 0
  %2319 = vmatprep.subr.bf16.mxu0 0
  %2320 = vmatpush1.bf16.msra.mxu0 0
  %2321 = vmatprep.subr.bf16.mxu0 0
  %2322 = vmatpush1.bf16.msra.mxu0 0
  %2323 = vmatprep.mubr.bf16.mxu0 0
  %2324 = vmatmul.mubr.bf16.gmra.mrb[0].mxu0 %v2271
  %v2325 = vpop.f32.mrb[0].mxu0
  %v2326 = vadd.f32 0.0, %v2325
  %v2327 = vpop.f32.mrb[0].mxu0
  %v2328 = vadd.f32 0.0, %v2327
  %v2329 = vpop.f32.mrb[0].mxu0
  %v2330 = vpop.f32.mrb[0].mxu0
  %2331 = vdwg.mxu0
  %2332 = vmatprep.subr.bf16.mxu0 %v2283
  %2333 = vmatpush1.bf16.msra.mxu0 %v2280
  %2334 = vmatprep.subr.bf16.mxu0 0
  %2335 = vmatpush1.bf16.msra.mxu0 0
  %2336 = vmatprep.subr.bf16.mxu0 0
  %2337 = vmatpush1.bf16.msra.mxu0 0
  %2338 = vmatprep.subr.bf16.mxu0 0
  %2339 = vmatpush1.bf16.msra.mxu0 0
  %2340 = vmatprep.subr.bf16.mxu0 0
  %2341 = vmatpush1.bf16.msra.mxu0 0
  %2342 = vmatprep.subr.bf16.mxu0 0
  %2343 = vmatpush1.bf16.msra.mxu0 0
  %2344 = vmatprep.subr.bf16.mxu0 0
  %2345 = vmatpush1.bf16.msra.mxu0 0
  %2346 = vmatprep.subr.bf16.mxu0 0
  %2347 = vmatpush1.bf16.msra.mxu0 0
  %2348 = vmatprep.subr.bf16.mxu0 0
  %2349 = vmatpush1.bf16.msra.mxu0 0
  %2350 = vmatprep.subr.bf16.mxu0 0
  %2351 = vmatpush1.bf16.msra.mxu0 0
  %2352 = vmatprep.subr.bf16.mxu0 0
  %2353 = vmatpush1.bf16.msra.mxu0 0
  %2354 = vmatprep.subr.bf16.mxu0 0
  %2355 = vmatpush1.bf16.msra.mxu0 0
  %2356 = vmatprep.subr.bf16.mxu0 0
  %2357 = vmatpush1.bf16.msra.mxu0 0
  %2358 = vmatprep.subr.bf16.mxu0 0
  %2359 = vmatpush1.bf16.msra.mxu0 0
  %2360 = vmatprep.subr.bf16.mxu0 0
  %2361 = vmatpush1.bf16.msra.mxu0 0
  %2362 = vmatprep.subr.bf16.mxu0 0
  %2363 = vmatpush1.bf16.msra.mxu0 0
  %2364 = vmatprep.mubr.bf16.mxu0 0
  %2365 = vmatmul.mubr.bf16.gmra.mrb[0].mxu0 %v2271
  %v2366 = vpop.f32.mrb[0].mxu0
  %v2367 = vadd.f32 0.0, %v2366
  %v2368 = vpop.f32.mrb[0].mxu0
  %v2369 = vadd.f32 0.0, %v2368
  %v2370 = vpop.f32.mrb[0].mxu0
  %v2371 = vpop.f32.mrb[0].mxu0
  %2372 = vdwg.mxu0
  %2373 = vmatprep.subr.bf16.mxu0 %v2289
  %2374 = vmatpush1.bf16.msra.mxu0 %v2286
  %2375 = vmatprep.subr.bf16.mxu0 0
  %2376 = vmatpush1.bf16.msra.mxu0 0
  %2377 = vmatprep.subr.bf16.mxu0 0
  %2378 = vmatpush1.bf16.msra.mxu0 0
  %2379 = vmatprep.subr.bf16.mxu0 0
  %2380 = vmatpush1.bf16.msra.mxu0 0
  %2381 = vmatprep.subr.bf16.mxu0 0
  %2382 = vmatpush1.bf16.msra.mxu0 0
  %2383 = vmatprep.subr.bf16.mxu0 0
  %2384 = vmatpush1.bf16.msra.mxu0 0
  %2385 = vmatprep.subr.bf16.mxu0 0
  %2386 = vmatpush1.bf16.msra.mxu0 0
  %2387 = vmatprep.subr.bf16.mxu0 0
  %2388 = vmatpush1.bf16.msra.mxu0 0
  %2389 = vmatprep.subr.bf16.mxu0 0
  %2390 = vmatpush1.bf16.msra.mxu0 0
  %2391 = vmatprep.subr.bf16.mxu0 0
  %2392 = vmatpush1.bf16.msra.mxu0 0
  %2393 = vmatprep.subr.bf16.mxu0 0
  %2394 = vmatpush1.bf16.msra.mxu0 0
  %2395 = vmatprep.subr.bf16.mxu0 0
  %2396 = vmatpush1.bf16.msra.mxu0 0
  %2397 = vmatprep.subr.bf16.mxu0 0
  %2398 = vmatpush1.bf16.msra.mxu0 0
  %2399 = vmatprep.subr.bf16.mxu0 0
  %2400 = vmatpush1.bf16.msra.mxu0 0
  %2401 = vmatprep.subr.bf16.mxu0 0
  %2402 = vmatpush1.bf16.msra.mxu0 0
  %2403 = vmatprep.subr.bf16.mxu0 0
  %2404 = vmatpush1.bf16.msra.mxu0 0
  %2405 = vmatprep.mubr.bf16.mxu0 0
  %2406 = vmatmul.mubr.bf16.gmra.mrb[0].mxu0 %v2271
  %v2407 = vpop.f32.mrb[0].mxu0
  %v2408 = vadd.f32 0.0, %v2407
  %v2409 = vpop.f32.mrb[0].mxu0
  %v2410 = vadd.f32 0.0, %v2409
  %v2411 = vpop.f32.mrb[0].mxu0
  %v2412 = vpop.f32.mrb[0].mxu0
  %2413 = vdwg.mxu0
  %v2414 = vadd.f32 %v2242, %v2326
  %v2415 = vadd.f32 %v2243, %v2328
  %v2416 = vadd.f32 %v2244, %v2367
  %v2417 = vadd.f32 %v2245, %v2369
  %v2418 = vadd.f32 %v2246, %v2408
  %v2419 = vadd.f32 %v2247, %v2410
  %s2420 = scalar_lea.vmem %s3, 16
  %v2421 = vld [vmem:[%s2420] sm:$0xf]
  %v2422 = vld [vmem:[#allocation2 + $0x4] sm:$0xff]
  %v2423 = vld [vmem:[#allocation2 + $0xc] sm:$0xff]
  %v2424 = vld [vmem:[#allocation2 + $0x14] sm:$0xff]
  %v2428 = vunpack.c.l.b16 %v2422
  %v2429 = vunpack.c.h.b16 %v2422
  %v2430 = vunpack.c.l.b16 %v2423
  %v2431 = vunpack.c.h.b16 %v2423
  %v2432 = vunpack.c.l.b16 %v2424
  %v2433 = vunpack.c.h.b16 %v2424
  %v2434 = vpack.c.b16 %v2428, %v2428
  %v2435 = vpack.c.b16 %v2429, %v2429
  %v2436 = vpack.c.b16 %v2430, %v2430
  %v2437 = vpack.c.b16 %v2431, %v2431
  %v2438 = vpack.c.b16 %v2432, %v2432
  %v2439 = vpack.c.b16 %v2433, %v2433
  %v2441 = vsel %vm70, %v2421, 0
  %v2444 = vsel %vm74, %v2434, 0
  %v2447 = vsel %vm74, %v2435, 0
  %v2450 = vsel %vm74, %v2436, 0
  %v2453 = vsel %vm74, %v2437, 0
  %v2456 = vsel %vm74, %v2438, 0
  %v2459 = vsel %vm74, %v2439, 0
  %2461 = vmatprep.subr.bf16.mxu0 %v2447
  %2462 = vmatpush1.bf16.msra.mxu0 %v2444
  %2463 = vmatprep.subr.bf16.mxu0 0
  %2464 = vmatpush1.bf16.msra.mxu0 0
  %2465 = vmatprep.subr.bf16.mxu0 0
  %2466 = vmatpush1.bf16.msra.mxu0 0
  %2467 = vmatprep.subr.bf16.mxu0 0
  %2468 = vmatpush1.bf16.msra.mxu0 0
  %2469 = vmatprep.subr.bf16.mxu0 0
  %2470 = vmatpush1.bf16.msra.mxu0 0
  %2471 = vmatprep.subr.bf16.mxu0 0
  %2472 = vmatpush1.bf16.msra.mxu0 0
  %2473 = vmatprep.subr.bf16.mxu0 0
  %2474 = vmatpush1.bf16.msra.mxu0 0
  %2475 = vmatprep.subr.bf16.mxu0 0
  %2476 = vmatpush1.bf16.msra.mxu0 0
  %2477 = vmatprep.subr.bf16.mxu0 0
  %2478 = vmatpush1.bf16.msra.mxu0 0
  %2479 = vmatprep.subr.bf16.mxu0 0
  %2480 = vmatpush1.bf16.msra.mxu0 0
  %2481 = vmatprep.subr.bf16.mxu0 0
  %2482 = vmatpush1.bf16.msra.mxu0 0
  %2483 = vmatprep.subr.bf16.mxu0 0
  %2484 = vmatpush1.bf16.msra.mxu0 0
  %2485 = vmatprep.subr.bf16.mxu0 0
  %2486 = vmatpush1.bf16.msra.mxu0 0
  %2487 = vmatprep.subr.bf16.mxu0 0
  %2488 = vmatpush1.bf16.msra.mxu0 0
  %2489 = vmatprep.subr.bf16.mxu0 0
  %2490 = vmatpush1.bf16.msra.mxu0 0
  %2491 = vmatprep.subr.bf16.mxu0 0
  %2492 = vmatpush1.bf16.msra.mxu0 0
  %2493 = vmatprep.mubr.bf16.mxu0 0
  %2494 = vmatmul.mubr.bf16.gmra.mrb[0].mxu0 %v2441
  %v2495 = vpop.f32.mrb[0].mxu0
  %v2496 = vadd.f32 0.0, %v2495
  %v2497 = vpop.f32.mrb[0].mxu0
  %v2498 = vadd.f32 0.0, %v2497
  %v2499 = vpop.f32.mrb[0].mxu0
  %v2500 = vpop.f32.mrb[0].mxu0
  %2501 = vdwg.mxu0
  %2502 = vmatprep.subr.bf16.mxu0 %v2453
  %2503 = vmatpush1.bf16.msra.mxu0 %v2450
  %2504 = vmatprep.subr.bf16.mxu0 0
  %2505 = vmatpush1.bf16.msra.mxu0 0
  %2506 = vmatprep.subr.bf16.mxu0 0
  %2507 = vmatpush1.bf16.msra.mxu0 0
  %2508 = vmatprep.subr.bf16.mxu0 0
  %2509 = vmatpush1.bf16.msra.mxu0 0
  %2510 = vmatprep.subr.bf16.mxu0 0
  %2511 = vmatpush1.bf16.msra.mxu0 0
  %2512 = vmatprep.subr.bf16.mxu0 0
  %2513 = vmatpush1.bf16.msra.mxu0 0
  %2514 = vmatprep.subr.bf16.mxu0 0
  %2515 = vmatpush1.bf16.msra.mxu0 0
  %2516 = vmatprep.subr.bf16.mxu0 0
  %2517 = vmatpush1.bf16.msra.mxu0 0
  %2518 = vmatprep.subr.bf16.mxu0 0
  %2519 = vmatpush1.bf16.msra.mxu0 0
  %2520 = vmatprep.subr.bf16.mxu0 0
  %2521 = vmatpush1.bf16.msra.mxu0 0
  %2522 = vmatprep.subr.bf16.mxu0 0
  %2523 = vmatpush1.bf16.msra.mxu0 0
  %2524 = vmatprep.subr.bf16.mxu0 0
  %2525 = vmatpush1.bf16.msra.mxu0 0
  %2526 = vmatprep.subr.bf16.mxu0 0
  %2527 = vmatpush1.bf16.msra.mxu0 0
  %2528 = vmatprep.subr.bf16.mxu0 0
  %2529 = vmatpush1.bf16.msra.mxu0 0
  %2530 = vmatprep.subr.bf16.mxu0 0
  %2531 = vmatpush1.bf16.msra.mxu0 0
  %2532 = vmatprep.subr.bf16.mxu0 0
  %2533 = vmatpush1.bf16.msra.mxu0 0
  %2534 = vmatprep.mubr.bf16.mxu0 0
  %2535 = vmatmul.mubr.bf16.gmra.mrb[0].mxu0 %v2441
  %v2536 = vpop.f32.mrb[0].mxu0
  %v2537 = vadd.f32 0.0, %v2536
  %v2538 = vpop.f32.mrb[0].mxu0
  %v2539 = vadd.f32 0.0, %v2538
  %v2540 = vpop.f32.mrb[0].mxu0
  %v2541 = vpop.f32.mrb[0].mxu0
  %2542 = vdwg.mxu0
  %2543 = vmatprep.subr.bf16.mxu0 %v2459
  %2544 = vmatpush1.bf16.msra.mxu0 %v2456
  %2545 = vmatprep.subr.bf16.mxu0 0
  %2546 = vmatpush1.bf16.msra.mxu0 0
  %2547 = vmatprep.subr.bf16.mxu0 0
  %2548 = vmatpush1.bf16.msra.mxu0 0
  %2549 = vmatprep.subr.bf16.mxu0 0
  %2550 = vmatpush1.bf16.msra.mxu0 0
  %2551 = vmatprep.subr.bf16.mxu0 0
  %2552 = vmatpush1.bf16.msra.mxu0 0
  %2553 = vmatprep.subr.bf16.mxu0 0
  %2554 = vmatpush1.bf16.msra.mxu0 0
  %2555 = vmatprep.subr.bf16.mxu0 0
  %2556 = vmatpush1.bf16.msra.mxu0 0
  %2557 = vmatprep.subr.bf16.mxu0 0
  %2558 = vmatpush1.bf16.msra.mxu0 0
  %2559 = vmatprep.subr.bf16.mxu0 0
  %2560 = vmatpush1.bf16.msra.mxu0 0
  %2561 = vmatprep.subr.bf16.mxu0 0
  %2562 = vmatpush1.bf16.msra.mxu0 0
  %2563 = vmatprep.subr.bf16.mxu0 0
  %2564 = vmatpush1.bf16.msra.mxu0 0
  %2565 = vmatprep.subr.bf16.mxu0 0
  %2566 = vmatpush1.bf16.msra.mxu0 0
  %2567 = vmatprep.subr.bf16.mxu0 0
  %2568 = vmatpush1.bf16.msra.mxu0 0
  %2569 = vmatprep.subr.bf16.mxu0 0
  %2570 = vmatpush1.bf16.msra.mxu0 0
  %2571 = vmatprep.subr.bf16.mxu0 0
  %2572 = vmatpush1.bf16.msra.mxu0 0
  %2573 = vmatprep.subr.bf16.mxu0 0
  %2574 = vmatpush1.bf16.msra.mxu0 0
  %2575 = vmatprep.mubr.bf16.mxu0 0
  %2576 = vmatmul.mubr.bf16.gmra.mrb[0].mxu0 %v2441
  %v2577 = vpop.f32.mrb[0].mxu0
  %v2578 = vadd.f32 0.0, %v2577
  %v2579 = vpop.f32.mrb[0].mxu0
  %v2580 = vadd.f32 0.0, %v2579
  %v2581 = vpop.f32.mrb[0].mxu0
  %v2582 = vpop.f32.mrb[0].mxu0
  %2583 = vdwg.mxu0
  %v2584 = vadd.f32 %v2414, %v2496
  %v2585 = vadd.f32 %v2415, %v2498
  %v2586 = vadd.f32 %v2416, %v2537
  %v2587 = vadd.f32 %v2417, %v2539
  %v2588 = vadd.f32 %v2418, %v2578
  %v2589 = vadd.f32 %v2419, %v2580
  %s2590 = scalar_lea.vmem %s3, 20
  %v2591 = vld [vmem:[%s2590] sm:$0xf]
  %v2592 = vld [vmem:[#allocation2 + $0x4] sm:$0xff]
  %v2593 = vld [vmem:[#allocation2 + $0xc] sm:$0xff]
  %v2594 = vld [vmem:[#allocation2 + $0x14] sm:$0xff]
  %v2595 = vld [vmem:[#allocation2 + $0x1c] sm:$0xf]
  %v2600 = vunpack.c.l.b16 %v2592
  %v2601 = vunpack.c.h.b16 %v2592
  %v2602 = vunpack.c.l.b16 %v2593
  %v2603 = vunpack.c.h.b16 %v2593
  %v2604 = vunpack.c.l.b16 %v2594
  %v2605 = vunpack.c.h.b16 %v2594
  %v2606 = vunpack.c.l.b16 %v2595
  %v2607 = vpack.c.b16 %v2600, %v2600
  %v2608 = vpack.c.b16 %v2601, %v2601
  %v2609 = vpack.c.b16 %v2602, %v2602
  %v2610 = vpack.c.b16 %v2603, %v2603
  %v2611 = vpack.c.b16 %v2604, %v2604
  %v2612 = vpack.c.b16 %v2605, %v2605
  %v2613 = vpack.c.b16 %v2606, %v2606
  %2614 = vrot.lane.b32.xlu0 %v2607, 127
  %v2615 = vpop.permute.xlu0 %2614
  %2616 = vrot.lane.b32.xlu0 %v2608, 127
  %v2617 = vpop.permute.xlu0 %2616
  %2618 = vrot.lane.b32.xlu0 %v2609, 127
  %v2619 = vpop.permute.xlu0 %2618
  %2620 = vrot.lane.b32.xlu0 %v2610, 127
  %v2621 = vpop.permute.xlu0 %2620
  %2622 = vrot.lane.b32.xlu0 %v2611, 127
  %v2623 = vpop.permute.xlu0 %2622
  %2624 = vrot.lane.b32.xlu0 %v2612, 127
  %v2625 = vpop.permute.xlu0 %2624
  %2626 = vrot.lane.b32.xlu0 %v2613, 127
  %v2627 = vpop.permute.xlu0 %2626
  %v2628 = vsel %vm896, %v2615, %v2617
  %v2629 = vsel %vm896, %v2617, %v2619
  %v2630 = vsel %vm896, %v2619, %v2621
  %v2631 = vsel %vm896, %v2621, %v2623
  %v2632 = vsel %vm896, %v2623, %v2625
  %v2633 = vsel %vm896, %v2625, %v2627
  %v2635 = vsel %vm70, %v2591, 0
  %v2638 = vsel %vm74, %v2628, 0
  %v2641 = vsel %vm74, %v2629, 0
  %v2644 = vsel %vm74, %v2630, 0
  %v2647 = vsel %vm74, %v2631, 0
  %v2650 = vsel %vm74, %v2632, 0
  %v2653 = vsel %vm74, %v2633, 0
  %2655 = vmatprep.subr.bf16.mxu0 %v2641
  %2656 = vmatpush1.bf16.msra.mxu0 %v2638
  %2657 = vmatprep.subr.bf16.mxu0 0
  %2658 = vmatpush1.bf16.msra.mxu0 0
  %2659 = vmatprep.subr.bf16.mxu0 0
  %2660 = vmatpush1.bf16.msra.mxu0 0
  %2661 = vmatprep.subr.bf16.mxu0 0
  %2662 = vmatpush1.bf16.msra.mxu0 0
  %2663 = vmatprep.subr.bf16.mxu0 0
  %2664 = vmatpush1.bf16.msra.mxu0 0
  %2665 = vmatprep.subr.bf16.mxu0 0
  %2666 = vmatpush1.bf16.msra.mxu0 0
  %2667 = vmatprep.subr.bf16.mxu0 0
  %2668 = vmatpush1.bf16.msra.mxu0 0
  %2669 = vmatprep.subr.bf16.mxu0 0
  %2670 = vmatpush1.bf16.msra.mxu0 0
  %2671 = vmatprep.subr.bf16.mxu0 0
  %2672 = vmatpush1.bf16.msra.mxu0 0
  %2673 = vmatprep.subr.bf16.mxu0 0
  %2674 = vmatpush1.bf16.msra.mxu0 0
  %2675 = vmatprep.subr.bf16.mxu0 0
  %2676 = vmatpush1.bf16.msra.mxu0 0
  %2677 = vmatprep.subr.bf16.mxu0 0
  %2678 = vmatpush1.bf16.msra.mxu0 0
  %2679 = vmatprep.subr.bf16.mxu0 0
  %2680 = vmatpush1.bf16.msra.mxu0 0
  %2681 = vmatprep.subr.bf16.mxu0 0
  %2682 = vmatpush1.bf16.msra.mxu0 0
  %2683 = vmatprep.subr.bf16.mxu0 0
  %2684 = vmatpush1.bf16.msra.mxu0 0
  %2685 = vmatprep.subr.bf16.mxu0 0
  %2686 = vmatpush1.bf16.msra.mxu0 0
  %2687 = vmatprep.mubr.bf16.mxu0 0
  %2688 = vmatmul.mubr.bf16.gmra.mrb[0].mxu0 %v2635
  %v2689 = vpop.f32.mrb[0].mxu0
  %v2690 = vadd.f32 0.0, %v2689
  %v2691 = vpop.f32.mrb[0].mxu0
  %v2692 = vadd.f32 0.0, %v2691
  %v2693 = vpop.f32.mrb[0].mxu0
  %v2694 = vpop.f32.mrb[0].mxu0
  %2695 = vdwg.mxu0
  %2696 = vmatprep.subr.bf16.mxu0 %v2647
  %2697 = vmatpush1.bf16.msra.mxu0 %v2644
  %2698 = vmatprep.subr.bf16.mxu0 0
  %2699 = vmatpush1.bf16.msra.mxu0 0
  %2700 = vmatprep.subr.bf16.mxu0 0
  %2701 = vmatpush1.bf16.msra.mxu0 0
  %2702 = vmatprep.subr.bf16.mxu0 0
  %2703 = vmatpush1.bf16.msra.mxu0 0
  %2704 = vmatprep.subr.bf16.mxu0 0
  %2705 = vmatpush1.bf16.msra.mxu0 0
  %2706 = vmatprep.subr.bf16.mxu0 0
  %2707 = vmatpush1.bf16.msra.mxu0 0
  %2708 = vmatprep.subr.bf16.mxu0 0
  %2709 = vmatpush1.bf16.msra.mxu0 0
  %2710 = vmatprep.subr.bf16.mxu0 0
  %2711 = vmatpush1.bf16.msra.mxu0 0
  %2712 = vmatprep.subr.bf16.mxu0 0
  %2713 = vmatpush1.bf16.msra.mxu0 0
  %2714 = vmatprep.subr.bf16.mxu0 0
  %2715 = vmatpush1.bf16.msra.mxu0 0
  %2716 = vmatprep.subr.bf16.mxu0 0
  %2717 = vmatpush1.bf16.msra.mxu0 0
  %2718 = vmatprep.subr.bf16.mxu0 0
  %2719 = vmatpush1.bf16.msra.mxu0 0
  %2720 = vmatprep.subr.bf16.mxu0 0
  %2721 = vmatpush1.bf16.msra.mxu0 0
  %2722 = vmatprep.subr.bf16.mxu0 0
  %2723 = vmatpush1.bf16.msra.mxu0 0
  %2724 = vmatprep.subr.bf16.mxu0 0
  %2725 = vmatpush1.bf16.msra.mxu0 0
  %2726 = vmatprep.subr.bf16.mxu0 0
  %2727 = vmatpush1.bf16.msra.mxu0 0
  %2728 = vmatprep.mubr.bf16.mxu0 0
  %2729 = vmatmul.mubr.bf16.gmra.mrb[0].mxu0 %v2635
  %v2730 = vpop.f32.mrb[0].mxu0
  %v2731 = vadd.f32 0.0, %v2730
  %v2732 = vpop.f32.mrb[0].mxu0
  %v2733 = vadd.f32 0.0, %v2732
  %v2734 = vpop.f32.mrb[0].mxu0
  %v2735 = vpop.f32.mrb[0].mxu0
  %2736 = vdwg.mxu0
  %2737 = vmatprep.subr.bf16.mxu0 %v2653
  %2738 = vmatpush1.bf16.msra.mxu0 %v2650
  %2739 = vmatprep.subr.bf16.mxu0 0
  %2740 = vmatpush1.bf16.msra.mxu0 0
  %2741 = vmatprep.subr.bf16.mxu0 0
  %2742 = vmatpush1.bf16.msra.mxu0 0
  %2743 = vmatprep.subr.bf16.mxu0 0
  %2744 = vmatpush1.bf16.msra.mxu0 0
  %2745 = vmatprep.subr.bf16.mxu0 0
  %2746 = vmatpush1.bf16.msra.mxu0 0
  %2747 = vmatprep.subr.bf16.mxu0 0
  %2748 = vmatpush1.bf16.msra.mxu0 0
  %2749 = vmatprep.subr.bf16.mxu0 0
  %2750 = vmatpush1.bf16.msra.mxu0 0
  %2751 = vmatprep.subr.bf16.mxu0 0
  %2752 = vmatpush1.bf16.msra.mxu0 0
  %2753 = vmatprep.subr.bf16.mxu0 0
  %2754 = vmatpush1.bf16.msra.mxu0 0
  %2755 = vmatprep.subr.bf16.mxu0 0
  %2756 = vmatpush1.bf16.msra.mxu0 0
  %2757 = vmatprep.subr.bf16.mxu0 0
  %2758 = vmatpush1.bf16.msra.mxu0 0
  %2759 = vmatprep.subr.bf16.mxu0 0
  %2760 = vmatpush1.bf16.msra.mxu0 0
  %2761 = vmatprep.subr.bf16.mxu0 0
  %2762 = vmatpush1.bf16.msra.mxu0 0
  %2763 = vmatprep.subr.bf16.mxu0 0
  %2764 = vmatpush1.bf16.msra.mxu0 0
  %2765 = vmatprep.subr.bf16.mxu0 0
  %2766 = vmatpush1.bf16.msra.mxu0 0
  %2767 = vmatprep.subr.bf16.mxu0 0
  %2768 = vmatpush1.bf16.msra.mxu0 0
  %2769 = vmatprep.mubr.bf16.mxu0 0
  %2770 = vmatmul.mubr.bf16.gmra.mrb[0].mxu0 %v2635
  %v2771 = vpop.f32.mrb[0].mxu0
  %v2772 = vadd.f32 0.0, %v2771
  %v2773 = vpop.f32.mrb[0].mxu0
  %v2774 = vadd.f32 0.0, %v2773
  %v2775 = vpop.f32.mrb[0].mxu0
  %v2776 = vpop.f32.mrb[0].mxu0
  %2777 = vdwg.mxu0
  %v2778 = vadd.f32 %v2584, %v2690
  %v2779 = vadd.f32 %v2585, %v2692
  %v2780 = vadd.f32 %v2586, %v2731
  %v2781 = vadd.f32 %v2587, %v2733
  %v2782 = vadd.f32 %v2588, %v2772
  %v2783 = vadd.f32 %v2589, %v2774
  %s2784 = scalar_lea.vmem %s3, 24
  %v2785 = vld [vmem:[%s2784] sm:$0xf]
  %2786 = vrot.lane.b32.xlu0 %v2607, 111
  %v2787 = vpop.permute.xlu0 %2786
  %2788 = vrot.lane.b32.xlu0 %v2608, 111
  %v2789 = vpop.permute.xlu0 %2788
  %2790 = vrot.lane.b32.xlu0 %v2609, 111
  %v2791 = vpop.permute.xlu0 %2790
  %2792 = vrot.lane.b32.xlu0 %v2610, 111
  %v2793 = vpop.permute.xlu0 %2792
  %2794 = vrot.lane.b32.xlu0 %v2611, 111
  %v2795 = vpop.permute.xlu0 %2794
  %2796 = vrot.lane.b32.xlu0 %v2612, 111
  %v2797 = vpop.permute.xlu0 %2796
  %2798 = vrot.lane.b32.xlu0 %v2613, 111
  %v2799 = vpop.permute.xlu0 %2798
  %v2800 = vsel %vm1069, %v2787, %v2789
  %v2801 = vsel %vm1069, %v2789, %v2791
  %v2802 = vsel %vm1069, %v2791, %v2793
  %v2803 = vsel %vm1069, %v2793, %v2795
  %v2804 = vsel %vm1069, %v2795, %v2797
  %v2805 = vsel %vm1069, %v2797, %v2799
  %v2807 = vsel %vm70, %v2785, 0
  %v2810 = vsel %vm74, %v2800, 0
  %v2813 = vsel %vm74, %v2801, 0
  %v2816 = vsel %vm74, %v2802, 0
  %v2819 = vsel %vm74, %v2803, 0
  %v2822 = vsel %vm74, %v2804, 0
  %v2825 = vsel %vm74, %v2805, 0
  %2827 = vmatprep.subr.bf16.mxu0 %v2813
  %2828 = vmatpush1.bf16.msra.mxu0 %v2810
  %2829 = vmatprep.subr.bf16.mxu0 0
  %2830 = vmatpush1.bf16.msra.mxu0 0
  %2831 = vmatprep.subr.bf16.mxu0 0
  %2832 = vmatpush1.bf16.msra.mxu0 0
  %2833 = vmatprep.subr.bf16.mxu0 0
  %2834 = vmatpush1.bf16.msra.mxu0 0
  %2835 = vmatprep.subr.bf16.mxu0 0
  %2836 = vmatpush1.bf16.msra.mxu0 0
  %2837 = vmatprep.subr.bf16.mxu0 0
  %2838 = vmatpush1.bf16.msra.mxu0 0
  %2839 = vmatprep.subr.bf16.mxu0 0
  %2840 = vmatpush1.bf16.msra.mxu0 0
  %2841 = vmatprep.subr.bf16.mxu0 0
  %2842 = vmatpush1.bf16.msra.mxu0 0
  %2843 = vmatprep.subr.bf16.mxu0 0
  %2844 = vmatpush1.bf16.msra.mxu0 0
  %2845 = vmatprep.subr.bf16.mxu0 0
  %2846 = vmatpush1.bf16.msra.mxu0 0
  %2847 = vmatprep.subr.bf16.mxu0 0
  %2848 = vmatpush1.bf16.msra.mxu0 0
  %2849 = vmatprep.subr.bf16.mxu0 0
  %2850 = vmatpush1.bf16.msra.mxu0 0
  %2851 = vmatprep.subr.bf16.mxu0 0
  %2852 = vmatpush1.bf16.msra.mxu0 0
  %2853 = vmatprep.subr.bf16.mxu0 0
  %2854 = vmatpush1.bf16.msra.mxu0 0
  %2855 = vmatprep.subr.bf16.mxu0 0
  %2856 = vmatpush1.bf16.msra.mxu0 0
  %2857 = vmatprep.subr.bf16.mxu0 0
  %2858 = vmatpush1.bf16.msra.mxu0 0
  %2859 = vmatprep.mubr.bf16.mxu0 0
  %2860 = vmatmul.mubr.bf16.gmra.mrb[0].mxu0 %v2807
  %v2861 = vpop.f32.mrb[0].mxu0
  %v2862 = vadd.f32 0.0, %v2861
  %v2863 = vpop.f32.mrb[0].mxu0
  %v2864 = vadd.f32 0.0, %v2863
  %v2865 = vpop.f32.mrb[0].mxu0
  %v2866 = vpop.f32.mrb[0].mxu0
  %2867 = vdwg.mxu0
  %2868 = vmatprep.subr.bf16.mxu0 %v2819
  %2869 = vmatpush1.bf16.msra.mxu0 %v2816
  %2870 = vmatprep.subr.bf16.mxu0 0
  %2871 = vmatpush1.bf16.msra.mxu0 0
  %2872 = vmatprep.subr.bf16.mxu0 0
  %2873 = vmatpush1.bf16.msra.mxu0 0
  %2874 = vmatprep.subr.bf16.mxu0 0
  %2875 = vmatpush1.bf16.msra.mxu0 0
  %2876 = vmatprep.subr.bf16.mxu0 0
  %2877 = vmatpush1.bf16.msra.mxu0 0
  %2878 = vmatprep.subr.bf16.mxu0 0
  %2879 = vmatpush1.bf16.msra.mxu0 0
  %2880 = vmatprep.subr.bf16.mxu0 0
  %2881 = vmatpush1.bf16.msra.mxu0 0
  %2882 = vmatprep.subr.bf16.mxu0 0
  %2883 = vmatpush1.bf16.msra.mxu0 0
  %2884 = vmatprep.subr.bf16.mxu0 0
  %2885 = vmatpush1.bf16.msra.mxu0 0
  %2886 = vmatprep.subr.bf16.mxu0 0
  %2887 = vmatpush1.bf16.msra.mxu0 0
  %2888 = vmatprep.subr.bf16.mxu0 0
  %2889 = vmatpush1.bf16.msra.mxu0 0
  %2890 = vmatprep.subr.bf16.mxu0 0
  %2891 = vmatpush1.bf16.msra.mxu0 0
  %2892 = vmatprep.subr.bf16.mxu0 0
  %2893 = vmatpush1.bf16.msra.mxu0 0
  %2894 = vmatprep.subr.bf16.mxu0 0
  %2895 = vmatpush1.bf16.msra.mxu0 0
  %2896 = vmatprep.subr.bf16.mxu0 0
  %2897 = vmatpush1.bf16.msra.mxu0 0
  %2898 = vmatprep.subr.bf16.mxu0 0
  %2899 = vmatpush1.bf16.msra.mxu0 0
  %2900 = vmatprep.mubr.bf16.mxu0 0
  %2901 = vmatmul.mubr.bf16.gmra.mrb[0].mxu0 %v2807
  %v2902 = vpop.f32.mrb[0].mxu0
  %v2903 = vadd.f32 0.0, %v2902
  %v2904 = vpop.f32.mrb[0].mxu0
  %v2905 = vadd.f32 0.0, %v2904
  %v2906 = vpop.f32.mrb[0].mxu0
  %v2907 = vpop.f32.mrb[0].mxu0
  %2908 = vdwg.mxu0
  %2909 = vmatprep.subr.bf16.mxu0 %v2825
  %2910 = vmatpush1.bf16.msra.mxu0 %v2822
  %2911 = vmatprep.subr.bf16.mxu0 0
  %2912 = vmatpush1.bf16.msra.mxu0 0
  %2913 = vmatprep.subr.bf16.mxu0 0
  %2914 = vmatpush1.bf16.msra.mxu0 0
  %2915 = vmatprep.subr.bf16.mxu0 0
  %2916 = vmatpush1.bf16.msra.mxu0 0
  %2917 = vmatprep.subr.bf16.mxu0 0
  %2918 = vmatpush1.bf16.msra.mxu0 0
  %2919 = vmatprep.subr.bf16.mxu0 0
  %2920 = vmatpush1.bf16.msra.mxu0 0
  %2921 = vmatprep.subr.bf16.mxu0 0
  %2922 = vmatpush1.bf16.msra.mxu0 0
  %2923 = vmatprep.subr.bf16.mxu0 0
  %2924 = vmatpush1.bf16.msra.mxu0 0
  %2925 = vmatprep.subr.bf16.mxu0 0
  %2926 = vmatpush1.bf16.msra.mxu0 0
  %2927 = vmatprep.subr.bf16.mxu0 0
  %2928 = vmatpush1.bf16.msra.mxu0 0
  %2929 = vmatprep.subr.bf16.mxu0 0
  %2930 = vmatpush1.bf16.msra.mxu0 0
  %2931 = vmatprep.subr.bf16.mxu0 0
  %2932 = vmatpush1.bf16.msra.mxu0 0
  %2933 = vmatprep.subr.bf16.mxu0 0
  %2934 = vmatpush1.bf16.msra.mxu0 0
  %2935 = vmatprep.subr.bf16.mxu0 0
  %2936 = vmatpush1.bf16.msra.mxu0 0
  %2937 = vmatprep.subr.bf16.mxu0 0
  %2938 = vmatpush1.bf16.msra.mxu0 0
  %2939 = vmatprep.subr.bf16.mxu0 0
  %2940 = vmatpush1.bf16.msra.mxu0 0
  %2941 = vmatprep.mubr.bf16.mxu0 0
  %2942 = vmatmul.mubr.bf16.gmra.mrb[0].mxu0 %v2807
  %v2943 = vpop.f32.mrb[0].mxu0
  %v2944 = vadd.f32 0.0, %v2943
  %v2945 = vpop.f32.mrb[0].mxu0
  %v2946 = vadd.f32 0.0, %v2945
  %v2947 = vpop.f32.mrb[0].mxu0
  %v2948 = vpop.f32.mrb[0].mxu0
  %2949 = vdwg.mxu0
  %v2950 = vadd.f32 %v2778, %v2862
  %v2951 = vadd.f32 %v2779, %v2864
  %v2952 = vadd.f32 %v2780, %v2903
  %v2953 = vadd.f32 %v2781, %v2905
  %v2954 = vadd.f32 %v2782, %v2944
  %v2955 = vadd.f32 %v2783, %v2946
  %s2956 = scalar_lea.vmem %s3, 28
  %v2957 = vld [vmem:[%s2956] sm:$0xf]
  %2958 = vrot.lane.b32.xlu0 %v2607, 110
  %v2959 = vpop.permute.xlu0 %2958
  %2960 = vrot.lane.b32.xlu0 %v2608, 110
  %v2961 = vpop.permute.xlu0 %2960
  %2962 = vrot.lane.b32.xlu0 %v2609, 110
  %v2963 = vpop.permute.xlu0 %2962
  %2964 = vrot.lane.b32.xlu0 %v2610, 110
  %v2965 = vpop.permute.xlu0 %2964
  %2966 = vrot.lane.b32.xlu0 %v2611, 110
  %v2967 = vpop.permute.xlu0 %2966
  %2968 = vrot.lane.b32.xlu0 %v2612, 110
  %v2969 = vpop.permute.xlu0 %2968
  %2970 = vrot.lane.b32.xlu0 %v2613, 110
  %v2971 = vpop.permute.xlu0 %2970
  %v2972 = vsel %vm1242, %v2959, %v2961
  %v2973 = vsel %vm1242, %v2961, %v2963
  %v2974 = vsel %vm1242, %v2963, %v2965
  %v2975 = vsel %vm1242, %v2965, %v2967
  %v2976 = vsel %vm1242, %v2967, %v2969
  %v2977 = vsel %vm1242, %v2969, %v2971
  %v2979 = vsel %vm70, %v2957, 0
  %v2982 = vsel %vm74, %v2972, 0
  %v2985 = vsel %vm74, %v2973, 0
  %v2988 = vsel %vm74, %v2974, 0
  %v2991 = vsel %vm74, %v2975, 0
  %v2994 = vsel %vm74, %v2976, 0
  %v2997 = vsel %vm74, %v2977, 0
  %2999 = vmatprep.subr.bf16.mxu0 %v2985
  %3000 = vmatpush1.bf16.msra.mxu0 %v2982
  %3001 = vmatprep.subr.bf16.mxu0 0
  %3002 = vmatpush1.bf16.msra.mxu0 0
  %3003 = vmatprep.subr.bf16.mxu0 0
  %3004 = vmatpush1.bf16.msra.mxu0 0
  %3005 = vmatprep.subr.bf16.mxu0 0
  %3006 = vmatpush1.bf16.msra.mxu0 0
  %3007 = vmatprep.subr.bf16.mxu0 0
  %3008 = vmatpush1.bf16.msra.mxu0 0
  %3009 = vmatprep.subr.bf16.mxu0 0
  %3010 = vmatpush1.bf16.msra.mxu0 0
  %3011 = vmatprep.subr.bf16.mxu0 0
  %3012 = vmatpush1.bf16.msra.mxu0 0
  %3013 = vmatprep.subr.bf16.mxu0 0
  %3014 = vmatpush1.bf16.msra.mxu0 0
  %3015 = vmatprep.subr.bf16.mxu0 0
  %3016 = vmatpush1.bf16.msra.mxu0 0
  %3017 = vmatprep.subr.bf16.mxu0 0
  %3018 = vmatpush1.bf16.msra.mxu0 0
  %3019 = vmatprep.subr.bf16.mxu0 0
  %3020 = vmatpush1.bf16.msra.mxu0 0
  %3021 = vmatprep.subr.bf16.mxu0 0
  %3022 = vmatpush1.bf16.msra.mxu0 0
  %3023 = vmatprep.subr.bf16.mxu0 0
  %3024 = vmatpush1.bf16.msra.mxu0 0
  %3025 = vmatprep.subr.bf16.mxu0 0
  %3026 = vmatpush1.bf16.msra.mxu0 0
  %3027 = vmatprep.subr.bf16.mxu0 0
  %3028 = vmatpush1.bf16.msra.mxu0 0
  %3029 = vmatprep.subr.bf16.mxu0 0
  %3030 = vmatpush1.bf16.msra.mxu0 0
  %3031 = vmatprep.mubr.bf16.mxu0 0
  %3032 = vmatmul.mubr.bf16.gmra.mrb[0].mxu0 %v2979
  %v3033 = vpop.f32.mrb[0].mxu0
  %v3034 = vadd.f32 0.0, %v3033
  %v3035 = vpop.f32.mrb[0].mxu0
  %v3036 = vadd.f32 0.0, %v3035
  %v3037 = vpop.f32.mrb[0].mxu0
  %v3038 = vpop.f32.mrb[0].mxu0
  %3039 = vdwg.mxu0
  %3040 = vmatprep.subr.bf16.mxu0 %v2991
  %3041 = vmatpush1.bf16.msra.mxu0 %v2988
  %3042 = vmatprep.subr.bf16.mxu0 0
  %3043 = vmatpush1.bf16.msra.mxu0 0
  %3044 = vmatprep.subr.bf16.mxu0 0
  %3045 = vmatpush1.bf16.msra.mxu0 0
  %3046 = vmatprep.subr.bf16.mxu0 0
  %3047 = vmatpush1.bf16.msra.mxu0 0
  %3048 = vmatprep.subr.bf16.mxu0 0
  %3049 = vmatpush1.bf16.msra.mxu0 0
  %3050 = vmatprep.subr.bf16.mxu0 0
  %3051 = vmatpush1.bf16.msra.mxu0 0
  %3052 = vmatprep.subr.bf16.mxu0 0
  %3053 = vmatpush1.bf16.msra.mxu0 0
  %3054 = vmatprep.subr.bf16.mxu0 0
  %3055 = vmatpush1.bf16.msra.mxu0 0
  %3056 = vmatprep.subr.bf16.mxu0 0
  %3057 = vmatpush1.bf16.msra.mxu0 0
  %3058 = vmatprep.subr.bf16.mxu0 0
  %3059 = vmatpush1.bf16.msra.mxu0 0
  %3060 = vmatprep.subr.bf16.mxu0 0
  %3061 = vmatpush1.bf16.msra.mxu0 0
  %3062 = vmatprep.subr.bf16.mxu0 0
  %3063 = vmatpush1.bf16.msra.mxu0 0
  %3064 = vmatprep.subr.bf16.mxu0 0
  %3065 = vmatpush1.bf16.msra.mxu0 0
  %3066 = vmatprep.subr.bf16.mxu0 0
  %3067 = vmatpush1.bf16.msra.mxu0 0
  %3068 = vmatprep.subr.bf16.mxu0 0
  %3069 = vmatpush1.bf16.msra.mxu0 0
  %3070 = vmatprep.subr.bf16.mxu0 0
  %3071 = vmatpush1.bf16.msra.mxu0 0
  %3072 = vmatprep.mubr.bf16.mxu0 0
  %3073 = vmatmul.mubr.bf16.gmra.mrb[0].mxu0 %v2979
  %v3074 = vpop.f32.mrb[0].mxu0
  %v3075 = vadd.f32 0.0, %v3074
  %v3076 = vpop.f32.mrb[0].mxu0
  %v3077 = vadd.f32 0.0, %v3076
  %v3078 = vpop.f32.mrb[0].mxu0
  %v3079 = vpop.f32.mrb[0].mxu0
  %3080 = vdwg.mxu0
  %3081 = vmatprep.subr.bf16.mxu0 %v2997
  %3082 = vmatpush1.bf16.msra.mxu0 %v2994
  %3083 = vmatprep.subr.bf16.mxu0 0
  %3084 = vmatpush1.bf16.msra.mxu0 0
  %3085 = vmatprep.subr.bf16.mxu0 0
  %3086 = vmatpush1.bf16.msra.mxu0 0
  %3087 = vmatprep.subr.bf16.mxu0 0
  %3088 = vmatpush1.bf16.msra.mxu0 0
  %3089 = vmatprep.subr.bf16.mxu0 0
  %3090 = vmatpush1.bf16.msra.mxu0 0
  %3091 = vmatprep.subr.bf16.mxu0 0
  %3092 = vmatpush1.bf16.msra.mxu0 0
  %3093 = vmatprep.subr.bf16.mxu0 0
  %3094 = vmatpush1.bf16.msra.mxu0 0
  %3095 = vmatprep.subr.bf16.mxu0 0
  %3096 = vmatpush1.bf16.msra.mxu0 0
  %3097 = vmatprep.subr.bf16.mxu0 0
  %3098 = vmatpush1.bf16.msra.mxu0 0
  %3099 = vmatprep.subr.bf16.mxu0 0
  %3100 = vmatpush1.bf16.msra.mxu0 0
  %3101 = vmatprep.subr.bf16.mxu0 0
  %3102 = vmatpush1.bf16.msra.mxu0 0
  %3103 = vmatprep.subr.bf16.mxu0 0
  %3104 = vmatpush1.bf16.msra.mxu0 0
  %3105 = vmatprep.subr.bf16.mxu0 0
  %3106 = vmatpush1.bf16.msra.mxu0 0
  %3107 = vmatprep.subr.bf16.mxu0 0
  %3108 = vmatpush1.bf16.msra.mxu0 0
  %3109 = vmatprep.subr.bf16.mxu0 0
  %3110 = vmatpush1.bf16.msra.mxu0 0
  %3111 = vmatprep.subr.bf16.mxu0 0
  %3112 = vmatpush1.bf16.msra.mxu0 0
  %3113 = vmatprep.mubr.bf16.mxu0 0
  %3114 = vmatmul.mubr.bf16.gmra.mrb[0].mxu0 %v2979
  %v3115 = vpop.f32.mrb[0].mxu0
  %v3116 = vadd.f32 0.0, %v3115
  %v3117 = vpop.f32.mrb[0].mxu0
  %v3118 = vadd.f32 0.0, %v3117
  %v3119 = vpop.f32.mrb[0].mxu0
  %v3120 = vpop.f32.mrb[0].mxu0
  %3121 = vdwg.mxu0
  %v3122 = vadd.f32 %v2950, %v3034
  %v3123 = vadd.f32 %v2951, %v3036
  %v3124 = vadd.f32 %v2952, %v3075
  %v3125 = vadd.f32 %v2953, %v3077
  %v3126 = vadd.f32 %v2954, %v3116
  %v3127 = vadd.f32 %v2955, %v3118
  %s3128 = scalar_lea.vmem %s3, 32
  %v3129 = vld [vmem:[%s3128] sm:$0xf]
  %3130 = vrot.lane.b32.xlu0 %v2607, 109
  %v3131 = vpop.permute.xlu0 %3130
  %3132 = vrot.lane.b32.xlu0 %v2608, 109
  %v3133 = vpop.permute.xlu0 %3132
  %3134 = vrot.lane.b32.xlu0 %v2609, 109
  %v3135 = vpop.permute.xlu0 %3134
  %3136 = vrot.lane.b32.xlu0 %v2610, 109
  %v3137 = vpop.permute.xlu0 %3136
  %3138 = vrot.lane.b32.xlu0 %v2611, 109
  %v3139 = vpop.permute.xlu0 %3138
  %3140 = vrot.lane.b32.xlu0 %v2612, 109
  %v3141 = vpop.permute.xlu0 %3140
  %3142 = vrot.lane.b32.xlu0 %v2613, 109
  %v3143 = vpop.permute.xlu0 %3142
  %v3144 = vsel %vm1415, %v3131, %v3133
  %v3145 = vsel %vm1415, %v3133, %v3135
  %v3146 = vsel %vm1415, %v3135, %v3137
  %v3147 = vsel %vm1415, %v3137, %v3139
  %v3148 = vsel %vm1415, %v3139, %v3141
  %v3149 = vsel %vm1415, %v3141, %v3143
  %v3151 = vsel %vm70, %v3129, 0
  %v3154 = vsel %vm74, %v3144, 0
  %v3157 = vsel %vm74, %v3145, 0
  %v3160 = vsel %vm74, %v3146, 0
  %v3163 = vsel %vm74, %v3147, 0
  %v3166 = vsel %vm74, %v3148, 0
  %v3169 = vsel %vm74, %v3149, 0
  %3171 = vmatprep.subr.bf16.mxu0 %v3157
  %3172 = vmatpush1.bf16.msra.mxu0 %v3154
  %3173 = vmatprep.subr.bf16.mxu0 0
  %3174 = vmatpush1.bf16.msra.mxu0 0
  %3175 = vmatprep.subr.bf16.mxu0 0
  %3176 = vmatpush1.bf16.msra.mxu0 0
  %3177 = vmatprep.subr.bf16.mxu0 0
  %3178 = vmatpush1.bf16.msra.mxu0 0
  %3179 = vmatprep.subr.bf16.mxu0 0
  %3180 = vmatpush1.bf16.msra.mxu0 0
  %3181 = vmatprep.subr.bf16.mxu0 0
  %3182 = vmatpush1.bf16.msra.mxu0 0
  %3183 = vmatprep.subr.bf16.mxu0 0
  %3184 = vmatpush1.bf16.msra.mxu0 0
  %3185 = vmatprep.subr.bf16.mxu0 0
  %3186 = vmatpush1.bf16.msra.mxu0 0
  %3187 = vmatprep.subr.bf16.mxu0 0
  %3188 = vmatpush1.bf16.msra.mxu0 0
  %3189 = vmatprep.subr.bf16.mxu0 0
  %3190 = vmatpush1.bf16.msra.mxu0 0
  %3191 = vmatprep.subr.bf16.mxu0 0
  %3192 = vmatpush1.bf16.msra.mxu0 0
  %3193 = vmatprep.subr.bf16.mxu0 0
  %3194 = vmatpush1.bf16.msra.mxu0 0
  %3195 = vmatprep.subr.bf16.mxu0 0
  %3196 = vmatpush1.bf16.msra.mxu0 0
  %3197 = vmatprep.subr.bf16.mxu0 0
  %3198 = vmatpush1.bf16.msra.mxu0 0
  %3199 = vmatprep.subr.bf16.mxu0 0
  %3200 = vmatpush1.bf16.msra.mxu0 0
  %3201 = vmatprep.subr.bf16.mxu0 0
  %3202 = vmatpush1.bf16.msra.mxu0 0
  %3203 = vmatprep.mubr.bf16.mxu0 0
  %3204 = vmatmul.mubr.bf16.gmra.mrb[0].mxu0 %v3151
  %v3205 = vpop.f32.mrb[0].mxu0
  %v3206 = vadd.f32 0.0, %v3205
  %v3207 = vpop.f32.mrb[0].mxu0
  %v3208 = vadd.f32 0.0, %v3207
  %v3209 = vpop.f32.mrb[0].mxu0
  %v3210 = vpop.f32.mrb[0].mxu0
  %3211 = vdwg.mxu0
  %3212 = vmatprep.subr.bf16.mxu0 %v3163
  %3213 = vmatpush1.bf16.msra.mxu0 %v3160
  %3214 = vmatprep.subr.bf16.mxu0 0
  %3215 = vmatpush1.bf16.msra.mxu0 0
  %3216 = vmatprep.subr.bf16.mxu0 0
  %3217 = vmatpush1.bf16.msra.mxu0 0
  %3218 = vmatprep.subr.bf16.mxu0 0
  %3219 = vmatpush1.bf16.msra.mxu0 0
  %3220 = vmatprep.subr.bf16.mxu0 0
  %3221 = vmatpush1.bf16.msra.mxu0 0
  %3222 = vmatprep.subr.bf16.mxu0 0
  %3223 = vmatpush1.bf16.msra.mxu0 0
  %3224 = vmatprep.subr.bf16.mxu0 0
  %3225 = vmatpush1.bf16.msra.mxu0 0
  %3226 = vmatprep.subr.bf16.mxu0 0
  %3227 = vmatpush1.bf16.msra.mxu0 0
  %3228 = vmatprep.subr.bf16.mxu0 0
  %3229 = vmatpush1.bf16.msra.mxu0 0
  %3230 = vmatprep.subr.bf16.mxu0 0
  %3231 = vmatpush1.bf16.msra.mxu0 0
  %3232 = vmatprep.subr.bf16.mxu0 0
  %3233 = vmatpush1.bf16.msra.mxu0 0
  %3234 = vmatprep.subr.bf16.mxu0 0
  %3235 = vmatpush1.bf16.msra.mxu0 0
  %3236 = vmatprep.subr.bf16.mxu0 0
  %3237 = vmatpush1.bf16.msra.mxu0 0
  %3238 = vmatprep.subr.bf16.mxu0 0
  %3239 = vmatpush1.bf16.msra.mxu0 0
  %3240 = vmatprep.subr.bf16.mxu0 0
  %3241 = vmatpush1.bf16.msra.mxu0 0
  %3242 = vmatprep.subr.bf16.mxu0 0
  %3243 = vmatpush1.bf16.msra.mxu0 0
  %3244 = vmatprep.mubr.bf16.mxu0 0
  %3245 = vmatmul.mubr.bf16.gmra.mrb[0].mxu0 %v3151
  %v3246 = vpop.f32.mrb[0].mxu0
  %v3247 = vadd.f32 0.0, %v3246
  %v3248 = vpop.f32.mrb[0].mxu0
  %v3249 = vadd.f32 0.0, %v3248
  %v3250 = vpop.f32.mrb[0].mxu0
  %v3251 = vpop.f32.mrb[0].mxu0
  %3252 = vdwg.mxu0
  %3253 = vmatprep.subr.bf16.mxu0 %v3169
  %3254 = vmatpush1.bf16.msra.mxu0 %v3166
  %3255 = vmatprep.subr.bf16.mxu0 0
  %3256 = vmatpush1.bf16.msra.mxu0 0
  %3257 = vmatprep.subr.bf16.mxu0 0
  %3258 = vmatpush1.bf16.msra.mxu0 0
  %3259 = vmatprep.subr.bf16.mxu0 0
  %3260 = vmatpush1.bf16.msra.mxu0 0
  %3261 = vmatprep.subr.bf16.mxu0 0
  %3262 = vmatpush1.bf16.msra.mxu0 0
  %3263 = vmatprep.subr.bf16.mxu0 0
  %3264 = vmatpush1.bf16.msra.mxu0 0
  %3265 = vmatprep.subr.bf16.mxu0 0
  %3266 = vmatpush1.bf16.msra.mxu0 0
  %3267 = vmatprep.subr.bf16.mxu0 0
  %3268 = vmatpush1.bf16.msra.mxu0 0
  %3269 = vmatprep.subr.bf16.mxu0 0
  %3270 = vmatpush1.bf16.msra.mxu0 0
  %3271 = vmatprep.subr.bf16.mxu0 0
  %3272 = vmatpush1.bf16.msra.mxu0 0
  %3273 = vmatprep.subr.bf16.mxu0 0
  %3274 = vmatpush1.bf16.msra.mxu0 0
  %3275 = vmatprep.subr.bf16.mxu0 0
  %3276 = vmatpush1.bf16.msra.mxu0 0
  %3277 = vmatprep.subr.bf16.mxu0 0
  %3278 = vmatpush1.bf16.msra.mxu0 0
  %3279 = vmatprep.subr.bf16.mxu0 0
  %3280 = vmatpush1.bf16.msra.mxu0 0
  %3281 = vmatprep.subr.bf16.mxu0 0
  %3282 = vmatpush1.bf16.msra.mxu0 0
  %3283 = vmatprep.subr.bf16.mxu0 0
  %3284 = vmatpush1.bf16.msra.mxu0 0
  %3285 = vmatprep.mubr.bf16.mxu0 0
  %3286 = vmatmul.mubr.bf16.gmra.mrb[0].mxu0 %v3151
  %v3287 = vpop.f32.mrb[0].mxu0
  %v3288 = vadd.f32 0.0, %v3287
  %v3289 = vpop.f32.mrb[0].mxu0
  %v3290 = vadd.f32 0.0, %v3289
  %v3291 = vpop.f32.mrb[0].mxu0
  %v3292 = vpop.f32.mrb[0].mxu0
  %3293 = vdwg.mxu0
  %v3294 = vadd.f32 %v3122, %v3206
  %v3295 = vadd.f32 %v3123, %v3208
  %v3296 = vadd.f32 %v3124, %v3247
  %v3297 = vadd.f32 %v3125, %v3249
  %v3298 = vadd.f32 %v3126, %v3288
  %v3299 = vadd.f32 %v3127, %v3290
  %v3300 = vmul.f32 %v3294, %v1576
  %v3301 = vmul.f32 %v3295, %v1580
  %v3302 = vmul.f32 %v3296, %v1584
  %v3303 = vmul.f32 %v3297, %v1588
  %v3304 = vmul.f32 %v3298, %v1592
  %v3305 = vmul.f32 %v3299, %v1596
  %v3306 = vadd.f32 %v3300, %v3301
  %v3307 = vadd.f32 %v3306, %v3302
  %v3308 = vadd.f32 %v3307, %v3303
  %v3309 = vadd.f32 %v3308, %v3304
  %v3310 = vadd.f32 %v3309, %v3305
  %3311 = vadd.xlane.f32.xlu0 %v3310
  %v3312 = vpop.xlane.xlu0 %3311
  %v3313 = vmul.f32 %v3312, 0.001953125
  %v3314 = vmul.f32 %v3300, %v3300
  %v3315 = vmul.f32 %v3301, %v3301
  %v3316 = vmul.f32 %v3302, %v3302
  %v3317 = vmul.f32 %v3303, %v3303
  %v3318 = vmul.f32 %v3304, %v3304
  %v3319 = vmul.f32 %v3305, %v3305
  %v3320 = vadd.f32 %v3314, %v3315
  %v3321 = vadd.f32 %v3320, %v3316
  %v3322 = vadd.f32 %v3321, %v3317
  %v3323 = vadd.f32 %v3322, %v3318
  %v3324 = vadd.f32 %v3323, %v3319
  %3325 = vadd.xlane.f32.xlu0 %v3324
  %v3326 = vpop.xlane.xlu0 %3325
  %v3327 = vmul.f32 %v3326, 0.001953125
  %v3328 = vmul.f32 %v3313, %v3313
  %v3329 = vsub.f32 %v3327, %v3328
  %v3330 = vmax.f32 %v3329, 0.0
  %v3331 = vadd.f32 %v3330, 1e-05
  %v3332 = vrsqrt.pop %v3331
  %v3333 = vmul.f32 %v22, %v3332
  %v3334 = vmul.f32 %v3313, %v3333
  %3336 = vrot.lane.b32.xlu0 %v3334, 1
  %v3337 = vpop.permute.xlu0 %3336
  %v3339 = vsub.f32 %v22, %v3337
  %3341 = vset.pattern.permute.xlu0 3
  %3342 = vperm.xlu0 %3341, %v3333
  %v3343 = vpop.permute.xlu0 %3342
  %v3345 = vmul.f32 %v3300, %v3343
  %v3346 = vmul.f32 %v3301, %v3343
  %v3347 = vmul.f32 %v3302, %v3343
  %v3348 = vmul.f32 %v3303, %v3343
  %v3349 = vmul.f32 %v3304, %v3343
  %v3350 = vmul.f32 %v3305, %v3343
  %3352 = vset.pattern.permute.xlu0 4
  %3353 = vperm.xlu0 %3352, %v3339
  %v3354 = vpop.permute.xlu0 %3353
  %v3356 = vadd.f32 %v3345, %v3354
  %v3357 = vadd.f32 %v3346, %v3354
  %v3358 = vadd.f32 %v3347, %v3354
  %v3359 = vadd.f32 %v3348, %v3354
  %v3360 = vadd.f32 %v3349, %v3354
  %v3361 = vadd.f32 %v3350, %v3354
  %v3362 = vld [vmem:[%s0 + $0x8] sm:$0xff]
  %v3363 = vld [vmem:[%s0 + $0x10] sm:$0xff]
  %v3364 = vld [vmem:[%s0 + $0x18] sm:$0xff]
  %v3365 = vld [vmem:[%s0 + $0x20] sm:$0xff]
  %v3366 = vld [vmem:[%s0 + $0x28] sm:$0xff]
  %v3367 = vld [vmem:[%s0 + $0x30] sm:$0xff]
  %v3368 = vadd.f32 %v3356, %v3362
  %v3369 = vadd.f32 %v3357, %v3363
  %v3370 = vadd.f32 %v3358, %v3364
  %v3371 = vadd.f32 %v3359, %v3365
  %v3372 = vadd.f32 %v3360, %v3366
  %v3373 = vadd.f32 %v3361, %v3367
  %3374 = vst [vmem:[%s5] sm:$0xff] %v3368
  %3375 = vst [vmem:[%s5 + $0x8] sm:$0xff] %v3369
  %3376 = vst [vmem:[%s5 + $0x10] sm:$0xff] %v3370
  %3377 = vst [vmem:[%s5 + $0x18] sm:$0xff] %v3371
  %3378 = vst [vmem:[%s5 + $0x20] sm:$0xff] %v3372
  %3379 = vst [vmem:[%s5 + $0x28] sm:$0xff] %v3373
  // Predicated region
  $region22: #{residual_pallas.1} parent=0 // pred_check
    _
  $region23: #{residual_pallas.1} parent=0 // pred_check_branch
    %3381 = sbr.rel (0) target = $region25
  $region24: #{residual_pallas.1} parent=0 // pred_region
    _
  $region25: #{residual_pallas.1} parent=0 // pred_fallthru
    _
  // Predicated region
  $region26: #{residual_pallas.1} parent=0 // pred_check
    _
  $region27: #{residual_pallas.1} parent=0 // pred_check_branch
    %3383 = sbr.rel (0) target = $region29
  $region28: #{residual_pallas.1} parent=0 // pred_region
    _
  $region29: #{residual_pallas.1} parent=0 // pred_fallthru
    _

</llo_original>
